<compile_context>
chip_gen: v7x
topology: tpu7x:2x2x1
jax: 0.10.0
libtpu: 0.0.40
codegen_flags: <defaults>
</compile_context>

<pallas_src>
import jax
import jax.numpy as jnp
from jax import lax
from jax.experimental import pallas as pl
from jax.experimental.pallas import tpu as pltpu


def make_fused_kernel(filter_sizes, B, T_query, T_question, T_answers, H, E, F):
    n = len(filter_sizes)
    G = 8 * H        # combined (both-direction) gate width
    H2 = 2 * H

    def kernel(query_ids_ref, question_ids_ref, answers_ids_ref, emb_ref,
               wihf_ref, wihb_ref, bih_ref, whh_ref, *rest):
        conv_refs = rest[:2 * n]
        (wfc1_ref, bfc1_ref, wfc2_ref, bfc2_ref,
         w1_ref, b1_ref, w2_ref, b2_ref, w3_ref, b3_ref,
         wo_ref, bo_ref, out_ref, proj_ref) = rest[2 * n:]

        emb_tab = emb_ref[...]                       # (V, E), resident in VMEM
        V = emb_tab.shape[0]

        # ---- embedding lookup: one-hot matmul against the VMEM table --------
        def embed(ids_ref, Tv):
            ids2 = ids_ref[...]                      # (B*Tv, 1) int32
            iota = lax.broadcasted_iota(jnp.int32, (B * Tv, V), 1)
            onehot = (iota == ids2).astype(jnp.float32)
            e = jnp.dot(onehot, emb_tab, preferred_element_type=jnp.float32)
            return e.reshape(B, Tv, E)               # (B, T, E)

        # ---- BiLSTM over the question (fwd+bwd fused), mean over time -------
        q_emb = embed(question_ids_ref, T_question)  # (B, Tq, E)
        T = T_question
        x2 = q_emb.reshape(B * T, E)

        # hoisted input projection for all timesteps (one matmul per direction)
        pf = (jnp.dot(x2, wihf_ref[...], preferred_element_type=jnp.float32)
              + bih_ref[...]).reshape(B, T, G)       # fwd gate slots (+ biases)
        pb = jnp.dot(x2, wihb_ref[...],
                     preferred_element_type=jnp.float32).reshape(B, T, G)
        for t in range(T):                           # static: align bwd time rev
            proj_ref[t] = pf[:, t, :] + pb[:, T - 1 - t, :]

        whh = whh_ref[...]                           # (2H, 8H) per-dir block-diag
        zeros = jnp.zeros((B, H2), jnp.float32)

        def step(t, carry):
            h, c, s = carry                          # (B, 2H) each, [fwd | bwd]
            gates = proj_ref[t] + jnp.dot(h, whh,
                                          preferred_element_type=jnp.float32)
            sg = jax.nn.sigmoid(gates)               # full-slab (B, 8H) EUP ops
            tg = jnp.tanh(gates)
            i = sg[:, 0 * H2:1 * H2]                 # gate layout: i,f,g,o with
            f = sg[:, 1 * H2:2 * H2]                 # each block = [fwd | bwd]
            g = tg[:, 2 * H2:3 * H2]
            o = sg[:, 3 * H2:4 * H2]
            c_new = f * c + i * g
            h_new = o * jnp.tanh(c_new)
            return h_new, c_new, s + h_new

        _, _, hsum = lax.fori_loop(0, T, step, (zeros, zeros, zeros),
                                   unroll=True)
        lstm_mean = hsum * jnp.float32(1.0 / T)      # (B, 2H) = [mean_f | mean_b]

        # ---- CNN branch (im2col conv + relu + maxpool -> fc1 -> fc2) --------
        conv_ws = [conv_refs[2 * i][...] for i in range(n)]       # (fs*E, F)
        conv_bs = [conv_refs[2 * i + 1][...] for i in range(n)]   # (1, F)
        wfc1, bfc1 = wfc1_ref[...], bfc1_ref[...]
        wfc2, bfc2 = wfc2_ref[...], bfc2_ref[...]

        def cnn_branch(emb3):                        # (B, T, E) -> (B, F)
            Tv = emb3.shape[1]
            pooled = []
            for idx, fs in enumerate(filter_sizes):
                L = Tv - fs + 1
                cols = jnp.concatenate(
                    [emb3[:, k:k + L, :] for k in range(fs)], axis=2)  # (B,L,fs*E)
                y = jnp.dot(cols.reshape(B * L, fs * E), conv_ws[idx],
                            preferred_element_type=jnp.float32)        # 1 MXU push
                y = jnp.maximum(y.reshape(B, L, F) + conv_bs[idx][None, :, :], 0.0)
                pooled.append(jnp.max(y, axis=1))                       # (B, F)
            z = jnp.concatenate(pooled, axis=1)                         # (B, n*F)
            z = jnp.dot(z, wfc1, preferred_element_type=jnp.float32) + bfc1
            z = jnp.dot(z, wfc2, preferred_element_type=jnp.float32) + bfc2
            return z

        ans_cnn = cnn_branch(embed(answers_ids_ref, T_answers))
        qry_cnn = cnn_branch(embed(query_ids_ref, T_query))

        # ---- head: (linear + folded BN) -> relu  x3 -> linear -> sigmoid ----
        x = jnp.concatenate([qry_cnn, lstm_mean, ans_cnn], axis=1)  # (B, 4H=128)
        x = jnp.maximum(jnp.dot(x, w1_ref[...], preferred_element_type=jnp.float32)
                        + b1_ref[...], 0.0)
        x = jnp.maximum(jnp.dot(x, w2_ref[...], preferred_element_type=jnp.float32)
                        + b2_ref[...], 0.0)
        x = jnp.maximum(jnp.dot(x, w3_ref[...], preferred_element_type=jnp.float32)
                        + b3_ref[...], 0.0)
        out_ref[...] = jax.nn.sigmoid(
            jnp.dot(x, wo_ref[...], preferred_element_type=jnp.float32) + bo_ref[...])

    return kernel


def infoseek_forward(query_ids, question_ids, answers_ids, params,
                     filter_sizes, H, E, F):
    B, T_query = query_ids.shape
    _, T_question = question_ids.shape
    _, T_answers = answers_ids.shape

    # Flatten token ids to (B*T, 1) so the in-kernel one-hot compare is a plain
    # lane-broadcast (no int relayout inside the kernel). Row-major reshape is
    # metadata-only on the XLA side.
    q2 = query_ids.reshape(B * T_query, 1).astype(jnp.int32)
    qs2 = question_ids.reshape(B * T_question, 1).astype(jnp.int32)
    a2 = answers_ids.reshape(B * T_answers, 1).astype(jnp.int32)

    kernel = make_fused_kernel(filter_sizes, B, T_query, T_question,
                               T_answers, H, E, F)
    args = (q2, qs2, a2) + tuple(params)

    def full_spec(a):
        nd = a.ndim
        return pl.BlockSpec(a.shape, lambda i, _nd=nd: (0,) * _nd)

    grid_spec = pltpu.PrefetchScalarGridSpec(
        num_scalar_prefetch=0,
        grid=(1,),
        in_specs=[full_spec(a) for a in args],
        out_specs=pl.BlockSpec((B, 1), lambda i: (0, 0)),
        scratch_shapes=[pltpu.VMEM((T_question, B, 8 * H), jnp.float32)],
    )
    return pl.pallas_call(
        kernel,
        out_shape=jax.ShapeDtypeStruct((B, 1), jnp.float32),
        grid_spec=grid_spec,
    )(*args)


if __name__ == "__main__":
    B = 2
    VOCAB = 64
    E = 32                 # embedding dim
    H = 32                 # LSTM hidden dim per direction
    F = 32                 # n_filters (== H so layer1 in-dim = 4*H)
    FILTER_SIZES = (2, 3)
    T_QUERY, T_QUESTION, T_ANSWERS = 8, 10, 12

    keys = iter(jax.random.split(jax.random.PRNGKey(0), 40))

    def init(shape, scale=0.1):
        return scale * jax.random.normal(next(keys), shape, dtype=jnp.float32)

    # frozen embedding table
    emb_w = init((VOCAB, E), 1.0)

    # per-direction LSTM params (gate order i,f,g,o), b = b_ih + b_hh folded
    wih_f, whh_f, b_f = init((E, 4 * H)), init((H, 4 * H)), init((1, 4 * H))
    wih_b, whh_b, b_b = init((E, 4 * H)), init((H, 4 * H)), init((1, 4 * H))

    # combined-direction layout: gate blocks [i_f i_b f_f f_b g_f g_b o_f o_b]
    def expand_dir(m, direction):
        zero = jnp.zeros_like(m[..., :H])
        blocks = []
        for k in range(4):
            blk = m[..., k * H:(k + 1) * H]
            blocks += ([blk, zero] if direction == 0 else [zero, blk])
        return jnp.concatenate(blocks, axis=-1)

    wih_f_c = expand_dir(wih_f, 0)                       # (E, 8H), bwd slots zero
    wih_b_c = expand_dir(wih_b, 1)                       # (E, 8H), fwd slots zero
    b_c = expand_dir(b_f, 0) + expand_dir(b_b, 1)        # (1, 8H)
    whh_c = jnp.concatenate([expand_dir(whh_f, 0),
                             expand_dir(whh_b, 1)], axis=0)   # (2H, 8H)

    # Conv2d(1, F, (fs, E)) weights pre-flattened to (fs*E, F) for im2col matmul
    conv_params = []
    for fs in FILTER_SIZES:
        conv_params += [init((fs, E, F)).reshape(fs * E, F), init((1, F))]

    w_fc1, b_fc1 = init((len(FILTER_SIZES) * F, E)), init((1, E))
    w_fc2, b_fc2 = init((E, F)), init((1, F))

    w1, b1 = init((4 * H, 2 * E)), init((1, 2 * E))
    w2, b2 = init((2 * E, 256)), init((1, 256))
    w3, b3 = init((256, 128)), init((1, 128))
    wo, bo = init((128, 1)), init((1, 1))

    # BatchNorm1d eval-mode (PyTorch default init) folded into adjacent linears
    eps = 1e-5

    def bn_fold(dim):
        gamma = jnp.ones((1, dim), jnp.float32)
        beta = jnp.zeros((1, dim), jnp.float32)
        rmean = jnp.zeros((1, dim), jnp.float32)
        rvar = jnp.ones((1, dim), jnp.float32)
        scale = gamma / jnp.sqrt(rvar + eps)
        shift = beta - rmean * scale
        return scale, shift

    s1, t1 = bn_fold(2 * E)
    s2, t2 = bn_fold(256)
    s3, t3 = bn_fold(128)
    w1f, b1f = w1 * s1, b1 * s1 + t1
    w2f, b2f = w2 * s2, b2 * s2 + t2
    w3f, b3f = w3 * s3, b3 * s3 + t3
    # TODO(synk): training-mode BatchNorm (batch stats) / Dropout not modeled;
    # this kernel reproduces eval-mode forward semantics.

    # token-id inputs
    query = jax.random.randint(next(keys), (B, T_QUERY), 0, VOCAB, dtype=jnp.int32)
    question = jax.random.randint(next(keys), (B, T_QUESTION), 0, VOCAB, dtype=jnp.int32)
    answers = jax.random.randint(next(keys), (B, T_ANSWERS), 0, VOCAB, dtype=jnp.int32)

    params = (emb_w, wih_f_c, wih_b_c, b_c, whh_c) + tuple(conv_params) + (
        w_fc1, b_fc1, w_fc2, b_fc2,
        w1f, b1f, w2f, b2f, w3f, b3f, wo, bo)

    out = infoseek_forward(query, question, answers, params,
                           FILTER_SIZES, H, E, F)
    out = jax.block_until_ready(out)
    assert out.shape == (B, 1) and out.dtype == jnp.float32
    assert bool(jnp.all(jnp.isfinite(out)))
    print("KERNEL_OK")
</pallas_src>

<mosaic_0001>
module attributes {stable_mosaic.version = 11 : i64} {
  func.func @kernel(%arg0: i32, %arg1: memref<16x1xi32, #tpu.memory_space<vmem>>, %arg2: memref<20x1xi32, #tpu.memory_space<vmem>>, %arg3: memref<24x1xi32, #tpu.memory_space<vmem>>, %arg4: memref<64x32xf32, #tpu.memory_space<vmem>>, %arg5: memref<32x256xf32, #tpu.memory_space<vmem>>, %arg6: memref<32x256xf32, #tpu.memory_space<vmem>>, %arg7: memref<1x256xf32, #tpu.memory_space<vmem>>, %arg8: memref<64x256xf32, #tpu.memory_space<vmem>>, %arg9: memref<64x32xf32, #tpu.memory_space<vmem>>, %arg10: memref<1x32xf32, #tpu.memory_space<vmem>>, %arg11: memref<96x32xf32, #tpu.memory_space<vmem>>, %arg12: memref<1x32xf32, #tpu.memory_space<vmem>>, %arg13: memref<64x32xf32, #tpu.memory_space<vmem>>, %arg14: memref<1x32xf32, #tpu.memory_space<vmem>>, %arg15: memref<32x32xf32, #tpu.memory_space<vmem>>, %arg16: memref<1x32xf32, #tpu.memory_space<vmem>>, %arg17: memref<128x64xf32, #tpu.memory_space<vmem>>, %arg18: memref<1x64xf32, #tpu.memory_space<vmem>>, %arg19: memref<64x256xf32, #tpu.memory_space<vmem>>, %arg20: memref<1x256xf32, #tpu.memory_space<vmem>>, %arg21: memref<256x128xf32, #tpu.memory_space<vmem>>, %arg22: memref<1x128xf32, #tpu.memory_space<vmem>>, %arg23: memref<128x1xf32, #tpu.memory_space<vmem>>, %arg24: memref<1x1xf32, #tpu.memory_space<vmem>>, %arg25: memref<2x1xf32, #tpu.memory_space<vmem>>, %arg26: memref<10x2x256xf32, #tpu.memory_space<vmem>>) attributes {dimension_semantics = [#tpu.dimension_semantics<arbitrary>], iteration_bounds = array<i64: 1>, scalar_prefetch = 0 : i64, scratch_operands = 1 : i64, tpu.core_type = #tpu.core_type<tc>, window_params = [{pipeline_mode = #tpu.pipeline_mode<synchronous>, transform_indices = @transform_0, window_bounds = array<i64: 16, 1>}, {pipeline_mode = #tpu.pipeline_mode<synchronous>, transform_indices = @transform_1, window_bounds = array<i64: 20, 1>}, {pipeline_mode = #tpu.pipeline_mode<synchronous>, transform_indices = @transform_2, window_bounds = array<i64: 24, 1>}, {pipeline_mode = #tpu.pipeline_mode<synchronous>, transform_indices = @transform_3, window_bounds = array<i64: 64, 32>}, {pipeline_mode = #tpu.pipeline_mode<synchronous>, transform_indices = @transform_4, window_bounds = array<i64: 32, 256>}, {pipeline_mode = #tpu.pipeline_mode<synchronous>, transform_indices = @transform_5, window_bounds = array<i64: 32, 256>}, {pipeline_mode = #tpu.pipeline_mode<synchronous>, transform_indices = @transform_6, window_bounds = array<i64: 1, 256>}, {pipeline_mode = #tpu.pipeline_mode<synchronous>, transform_indices = @transform_7, window_bounds = array<i64: 64, 256>}, {pipeline_mode = #tpu.pipeline_mode<synchronous>, transform_indices = @transform_8, window_bounds = array<i64: 64, 32>}, {pipeline_mode = #tpu.pipeline_mode<synchronous>, transform_indices = @transform_9, window_bounds = array<i64: 1, 32>}, {pipeline_mode = #tpu.pipeline_mode<synchronous>, transform_indices = @transform_10, window_bounds = array<i64: 96, 32>}, {pipeline_mode = #tpu.pipeline_mode<synchronous>, transform_indices = @transform_11, window_bounds = array<i64: 1, 32>}, {pipeline_mode = #tpu.pipeline_mode<synchronous>, transform_indices = @transform_12, window_bounds = array<i64: 64, 32>}, {pipeline_mode = #tpu.pipeline_mode<synchronous>, transform_indices = @transform_13, window_bounds = array<i64: 1, 32>}, {pipeline_mode = #tpu.pipeline_mode<synchronous>, transform_indices = @transform_14, window_bounds = array<i64: 32, 32>}, {pipeline_mode = #tpu.pipeline_mode<synchronous>, transform_indices = @transform_15, window_bounds = array<i64: 1, 32>}, {pipeline_mode = #tpu.pipeline_mode<synchronous>, transform_indices = @transform_16, window_bounds = array<i64: 128, 64>}, {pipeline_mode = #tpu.pipeline_mode<synchronous>, transform_indices = @transform_17, window_bounds = array<i64: 1, 64>}, {pipeline_mode = #tpu.pipeline_mode<synchronous>, transform_indices = @transform_18, window_bounds = array<i64: 64, 256>}, {pipeline_mode = #tpu.pipeline_mode<synchronous>, transform_indices = @transform_19, window_bounds = array<i64: 1, 256>}, {pipeline_mode = #tpu.pipeline_mode<synchronous>, transform_indices = @transform_20, window_bounds = array<i64: 256, 128>}, {pipeline_mode = #tpu.pipeline_mode<synchronous>, transform_indices = @transform_21, window_bounds = array<i64: 1, 128>}, {pipeline_mode = #tpu.pipeline_mode<synchronous>, transform_indices = @transform_22, window_bounds = array<i64: 128, 1>}, {pipeline_mode = #tpu.pipeline_mode<synchronous>, transform_indices = @transform_23, window_bounds = array<i64: 1, 1>}, {pipeline_mode = #tpu.pipeline_mode<synchronous>, transform_indices = @transform_24, window_bounds = array<i64: 2, 1>}]} {
    %c0 = arith.constant 0 : index
    %c0_0 = arith.constant 0 : index
    %0 = vector.load %arg4[%c0, %c0_0] : memref<64x32xf32, #tpu.memory_space<vmem>>, vector<64x32xf32>
    %c0_1 = arith.constant 0 : index
    %c0_2 = arith.constant 0 : index
    %1 = vector.load %arg2[%c0_1, %c0_2] : memref<20x1xi32, #tpu.memory_space<vmem>>, vector<20x1xi32>
    %2 = tpu.iota {dimensions = array<i32: 1>} : vector<20x64xi32>
    %3 = vector.broadcast %1 : vector<20x1xi32> to vector<20x64xi32>
    %4 = arith.cmpi eq, %2, %3 : vector<20x64xi32>
    %5 = arith.extui %4 : vector<20x64xi1> to vector<20x64xi32>
    %6 = arith.sitofp %5 : vector<20x64xi32> to vector<20x64xf32>
    %cst = arith.constant dense<0.000000e+00> : vector<20x32xf32>
    %7 = tpu.matmul %6, %0, %cst {dimension_numbers = #tpu.dot_dimension_numbers<[1], [0], [0], [1], [0, 0, 1, 1], [], []>} : vector<20x64xf32>, vector<64x32xf32>, vector<20x32xf32> -> vector<20x32xf32>
    %8 = vector.shape_cast %7 : vector<20x32xf32> to vector<2x10x32xf32>
    %9 = vector.shape_cast %8 : vector<2x10x32xf32> to vector<20x32xf32>
    %c0_3 = arith.constant 0 : index
    %c0_4 = arith.constant 0 : index
    %10 = vector.load %arg5[%c0_3, %c0_4] : memref<32x256xf32, #tpu.memory_space<vmem>>, vector<32x256xf32>
    %cst_5 = arith.constant dense<0.000000e+00> : vector<20x256xf32>
    %11 = tpu.matmul %9, %10, %cst_5 {dimension_numbers = #tpu.dot_dimension_numbers<[1], [0], [0], [1], [0, 0, 1, 1], [], []>} : vector<20x32xf32>, vector<32x256xf32>, vector<20x256xf32> -> vector<20x256xf32>
    %c0_6 = arith.constant 0 : index
    %c0_7 = arith.constant 0 : index
    %12 = vector.load %arg7[%c0_6, %c0_7] : memref<1x256xf32, #tpu.memory_space<vmem>>, vector<1x256xf32>
    %13 = vector.broadcast %12 : vector<1x256xf32> to vector<20x256xf32>
    %14 = arith.addf %11, %13 : vector<20x256xf32>
    %15 = vector.shape_cast %14 : vector<20x256xf32> to vector<2x10x256xf32>
    %c0_8 = arith.constant 0 : index
    %c0_9 = arith.constant 0 : index
    %16 = vector.load %arg6[%c0_8, %c0_9] : memref<32x256xf32, #tpu.memory_space<vmem>>, vector<32x256xf32>
    %cst_10 = arith.constant dense<0.000000e+00> : vector<20x256xf32>
    %17 = tpu.matmul %9, %16, %cst_10 {dimension_numbers = #tpu.dot_dimension_numbers<[1], [0], [0], [1], [0, 0, 1, 1], [], []>} : vector<20x32xf32>, vector<32x256xf32>, vector<20x256xf32> -> vector<20x256xf32>
    %18 = vector.shape_cast %17 : vector<20x256xf32> to vector<2x10x256xf32>
    %19 = vector.extract_strided_slice %15 {offsets = [0, 0, 0], sizes = [2, 1, 256], strides = [1, 1, 1]} : vector<2x10x256xf32> to vector<2x1x256xf32>
    %20 = vector.shape_cast %19 : vector<2x1x256xf32> to vector<2x256xf32>
    %21 = vector.extract_strided_slice %18 {offsets = [0, 9, 0], sizes = [2, 1, 256], strides = [1, 1, 1]} : vector<2x10x256xf32> to vector<2x1x256xf32>
    %22 = vector.shape_cast %21 : vector<2x1x256xf32> to vector<2x256xf32>
    %23 = arith.addf %20, %22 : vector<2x256xf32>
    %c0_11 = arith.constant 0 : index
    %c0_12 = arith.constant 0 : index
    %c0_13 = arith.constant 0 : index
    %24 = vector.load %arg26[%c0_11, %c0_12, %c0_13] : memref<10x2x256xf32, #tpu.memory_space<vmem>>, vector<1x2x256xf32>
    %25 = vector.shape_cast %24 : vector<1x2x256xf32> to vector<2x256xf32>
    %26 = vector.shape_cast %23 : vector<2x256xf32> to vector<1x2x256xf32>
    tpu.vector_store %arg26[%c0_11, %c0_12, %c0_13], %26 {strides = array<i32>} : memref<10x2x256xf32, #tpu.memory_space<vmem>>, vector<1x2x256xf32>,
    %27 = vector.extract_strided_slice %15 {offsets = [0, 1, 0], sizes = [2, 1, 256], strides = [1, 1, 1]} : vector<2x10x256xf32> to vector<2x1x256xf32>
    %28 = vector.shape_cast %27 : vector<2x1x256xf32> to vector<2x256xf32>
    %29 = vector.extract_strided_slice %18 {offsets = [0, 8, 0], sizes = [2, 1, 256], strides = [1, 1, 1]} : vector<2x10x256xf32> to vector<2x1x256xf32>
    %30 = vector.shape_cast %29 : vector<2x1x256xf32> to vector<2x256xf32>
    %31 = arith.addf %28, %30 : vector<2x256xf32>
    %c1 = arith.constant 1 : index
    %c0_14 = arith.constant 0 : index
    %c0_15 = arith.constant 0 : index
    %32 = vector.load %arg26[%c1, %c0_14, %c0_15] : memref<10x2x256xf32, #tpu.memory_space<vmem>>, vector<1x2x256xf32>
    %33 = vector.shape_cast %32 : vector<1x2x256xf32> to vector<2x256xf32>
    %34 = vector.shape_cast %31 : vector<2x256xf32> to vector<1x2x256xf32>
    tpu.vector_store %arg26[%c1, %c0_14, %c0_15], %34 {strides = array<i32>} : memref<10x2x256xf32, #tpu.memory_space<vmem>>, vector<1x2x256xf32>,
    %35 = vector.extract_strided_slice %15 {offsets = [0, 2, 0], sizes = [2, 1, 256], strides = [1, 1, 1]} : vector<2x10x256xf32> to vector<2x1x256xf32>
    %36 = vector.shape_cast %35 : vector<2x1x256xf32> to vector<2x256xf32>
    %37 = vector.extract_strided_slice %18 {offsets = [0, 7, 0], sizes = [2, 1, 256], strides = [1, 1, 1]} : vector<2x10x256xf32> to vector<2x1x256xf32>
    %38 = vector.shape_cast %37 : vector<2x1x256xf32> to vector<2x256xf32>
    %39 = arith.addf %36, %38 : vector<2x256xf32>
    %c2 = arith.constant 2 : index
    %c0_16 = arith.constant 0 : index
    %c0_17 = arith.constant 0 : index
    %40 = vector.load %arg26[%c2, %c0_16, %c0_17] : memref<10x2x256xf32, #tpu.memory_space<vmem>>, vector<1x2x256xf32>
    %41 = vector.shape_cast %40 : vector<1x2x256xf32> to vector<2x256xf32>
    %42 = vector.shape_cast %39 : vector<2x256xf32> to vector<1x2x256xf32>
    tpu.vector_store %arg26[%c2, %c0_16, %c0_17], %42 {strides = array<i32>} : memref<10x2x256xf32, #tpu.memory_space<vmem>>, vector<1x2x256xf32>,
    %43 = vector.extract_strided_slice %15 {offsets = [0, 3, 0], sizes = [2, 1, 256], strides = [1, 1, 1]} : vector<2x10x256xf32> to vector<2x1x256xf32>
    %44 = vector.shape_cast %43 : vector<2x1x256xf32> to vector<2x256xf32>
    %45 = vector.extract_strided_slice %18 {offsets = [0, 6, 0], sizes = [2, 1, 256], strides = [1, 1, 1]} : vector<2x10x256xf32> to vector<2x1x256xf32>
    %46 = vector.shape_cast %45 : vector<2x1x256xf32> to vector<2x256xf32>
    %47 = arith.addf %44, %46 : vector<2x256xf32>
    %c3 = arith.constant 3 : index
    %c0_18 = arith.constant 0 : index
    %c0_19 = arith.constant 0 : index
    %48 = vector.load %arg26[%c3, %c0_18, %c0_19] : memref<10x2x256xf32, #tpu.memory_space<vmem>>, vector<1x2x256xf32>
    %49 = vector.shape_cast %48 : vector<1x2x256xf32> to vector<2x256xf32>
    %50 = vector.shape_cast %47 : vector<2x256xf32> to vector<1x2x256xf32>
    tpu.vector_store %arg26[%c3, %c0_18, %c0_19], %50 {strides = array<i32>} : memref<10x2x256xf32, #tpu.memory_space<vmem>>, vector<1x2x256xf32>,
    %51 = vector.extract_strided_slice %15 {offsets = [0, 4, 0], sizes = [2, 1, 256], strides = [1, 1, 1]} : vector<2x10x256xf32> to vector<2x1x256xf32>
    %52 = vector.shape_cast %51 : vector<2x1x256xf32> to vector<2x256xf32>
    %53 = vector.extract_strided_slice %18 {offsets = [0, 5, 0], sizes = [2, 1, 256], strides = [1, 1, 1]} : vector<2x10x256xf32> to vector<2x1x256xf32>
    %54 = vector.shape_cast %53 : vector<2x1x256xf32> to vector<2x256xf32>
    %55 = arith.addf %52, %54 : vector<2x256xf32>
    %c4 = arith.constant 4 : index
    %c0_20 = arith.constant 0 : index
    %c0_21 = arith.constant 0 : index
    %56 = vector.load %arg26[%c4, %c0_20, %c0_21] : memref<10x2x256xf32, #tpu.memory_space<vmem>>, vector<1x2x256xf32>
    %57 = vector.shape_cast %56 : vector<1x2x256xf32> to vector<2x256xf32>
    %58 = vector.shape_cast %55 : vector<2x256xf32> to vector<1x2x256xf32>
    tpu.vector_store %arg26[%c4, %c0_20, %c0_21], %58 {strides = array<i32>} : memref<10x2x256xf32, #tpu.memory_space<vmem>>, vector<1x2x256xf32>,
    %59 = vector.extract_strided_slice %15 {offsets = [0, 5, 0], sizes = [2, 1, 256], strides = [1, 1, 1]} : vector<2x10x256xf32> to vector<2x1x256xf32>
    %60 = vector.shape_cast %59 : vector<2x1x256xf32> to vector<2x256xf32>
    %61 = vector.extract_strided_slice %18 {offsets = [0, 4, 0], sizes = [2, 1, 256], strides = [1, 1, 1]} : vector<2x10x256xf32> to vector<2x1x256xf32>
    %62 = vector.shape_cast %61 : vector<2x1x256xf32> to vector<2x256xf32>
    %63 = arith.addf %60, %62 : vector<2x256xf32>
    %c5 = arith.constant 5 : index
    %c0_22 = arith.constant 0 : index
    %c0_23 = arith.constant 0 : index
    %64 = vector.load %arg26[%c5, %c0_22, %c0_23] : memref<10x2x256xf32, #tpu.memory_space<vmem>>, vector<1x2x256xf32>
    %65 = vector.shape_cast %64 : vector<1x2x256xf32> to vector<2x256xf32>
    %66 = vector.shape_cast %63 : vector<2x256xf32> to vector<1x2x256xf32>
    tpu.vector_store %arg26[%c5, %c0_22, %c0_23], %66 {strides = array<i32>} : memref<10x2x256xf32, #tpu.memory_space<vmem>>, vector<1x2x256xf32>,
    %67 = vector.extract_strided_slice %15 {offsets = [0, 6, 0], sizes = [2, 1, 256], strides = [1, 1, 1]} : vector<2x10x256xf32> to vector<2x1x256xf32>
    %68 = vector.shape_cast %67 : vector<2x1x256xf32> to vector<2x256xf32>
    %69 = vector.extract_strided_slice %18 {offsets = [0, 3, 0], sizes = [2, 1, 256], strides = [1, 1, 1]} : vector<2x10x256xf32> to vector<2x1x256xf32>
    %70 = vector.shape_cast %69 : vector<2x1x256xf32> to vector<2x256xf32>
    %71 = arith.addf %68, %70 : vector<2x256xf32>
    %c6 = arith.constant 6 : index
    %c0_24 = arith.constant 0 : index
    %c0_25 = arith.constant 0 : index
    %72 = vector.load %arg26[%c6, %c0_24, %c0_25] : memref<10x2x256xf32, #tpu.memory_space<vmem>>, vector<1x2x256xf32>
    %73 = vector.shape_cast %72 : vector<1x2x256xf32> to vector<2x256xf32>
    %74 = vector.shape_cast %71 : vector<2x256xf32> to vector<1x2x256xf32>
    tpu.vector_store %arg26[%c6, %c0_24, %c0_25], %74 {strides = array<i32>} : memref<10x2x256xf32, #tpu.memory_space<vmem>>, vector<1x2x256xf32>,
    %75 = vector.extract_strided_slice %15 {offsets = [0, 7, 0], sizes = [2, 1, 256], strides = [1, 1, 1]} : vector<2x10x256xf32> to vector<2x1x256xf32>
    %76 = vector.shape_cast %75 : vector<2x1x256xf32> to vector<2x256xf32>
    %77 = vector.extract_strided_slice %18 {offsets = [0, 2, 0], sizes = [2, 1, 256], strides = [1, 1, 1]} : vector<2x10x256xf32> to vector<2x1x256xf32>
    %78 = vector.shape_cast %77 : vector<2x1x256xf32> to vector<2x256xf32>
    %79 = arith.addf %76, %78 : vector<2x256xf32>
    %c7 = arith.constant 7 : index
    %c0_26 = arith.constant 0 : index
    %c0_27 = arith.constant 0 : index
    %80 = vector.load %arg26[%c7, %c0_26, %c0_27] : memref<10x2x256xf32, #tpu.memory_space<vmem>>, vector<1x2x256xf32>
    %81 = vector.shape_cast %80 : vector<1x2x256xf32> to vector<2x256xf32>
    %82 = vector.shape_cast %79 : vector<2x256xf32> to vector<1x2x256xf32>
    tpu.vector_store %arg26[%c7, %c0_26, %c0_27], %82 {strides = array<i32>} : memref<10x2x256xf32, #tpu.memory_space<vmem>>, vector<1x2x256xf32>,
    %83 = vector.extract_strided_slice %15 {offsets = [0, 8, 0], sizes = [2, 1, 256], strides = [1, 1, 1]} : vector<2x10x256xf32> to vector<2x1x256xf32>
    %84 = vector.shape_cast %83 : vector<2x1x256xf32> to vector<2x256xf32>
    %85 = vector.extract_strided_slice %18 {offsets = [0, 1, 0], sizes = [2, 1, 256], strides = [1, 1, 1]} : vector<2x10x256xf32> to vector<2x1x256xf32>
    %86 = vector.shape_cast %85 : vector<2x1x256xf32> to vector<2x256xf32>
    %87 = arith.addf %84, %86 : vector<2x256xf32>
    %c8 = arith.constant 8 : index
    %c0_28 = arith.constant 0 : index
    %c0_29 = arith.constant 0 : index
    %88 = vector.load %arg26[%c8, %c0_28, %c0_29] : memref<10x2x256xf32, #tpu.memory_space<vmem>>, vector<1x2x256xf32>
    %89 = vector.shape_cast %88 : vector<1x2x256xf32> to vector<2x256xf32>
    %90 = vector.shape_cast %87 : vector<2x256xf32> to vector<1x2x256xf32>
    tpu.vector_store %arg26[%c8, %c0_28, %c0_29], %90 {strides = array<i32>} : memref<10x2x256xf32, #tpu.memory_space<vmem>>, vector<1x2x256xf32>,
    %91 = vector.extract_strided_slice %15 {offsets = [0, 9, 0], sizes = [2, 1, 256], strides = [1, 1, 1]} : vector<2x10x256xf32> to vector<2x1x256xf32>
    %92 = vector.shape_cast %91 : vector<2x1x256xf32> to vector<2x256xf32>
    %93 = vector.extract_strided_slice %18 {offsets = [0, 0, 0], sizes = [2, 1, 256], strides = [1, 1, 1]} : vector<2x10x256xf32> to vector<2x1x256xf32>
    %94 = vector.shape_cast %93 : vector<2x1x256xf32> to vector<2x256xf32>
    %95 = arith.addf %92, %94 : vector<2x256xf32>
    %c9 = arith.constant 9 : index
    %c0_30 = arith.constant 0 : index
    %c0_31 = arith.constant 0 : index
    %96 = vector.load %arg26[%c9, %c0_30, %c0_31] : memref<10x2x256xf32, #tpu.memory_space<vmem>>, vector<1x2x256xf32>
    %97 = vector.shape_cast %96 : vector<1x2x256xf32> to vector<2x256xf32>
    %98 = vector.shape_cast %95 : vector<2x256xf32> to vector<1x2x256xf32>
    tpu.vector_store %arg26[%c9, %c0_30, %c0_31], %98 {strides = array<i32>} : memref<10x2x256xf32, #tpu.memory_space<vmem>>, vector<1x2x256xf32>,
    %c0_32 = arith.constant 0 : index
    %c0_33 = arith.constant 0 : index
    %99 = vector.load %arg8[%c0_32, %c0_33] : memref<64x256xf32, #tpu.memory_space<vmem>>, vector<64x256xf32>
    %cst_34 = arith.constant 0.000000e+00 : f32
    %100 = vector.broadcast %cst_34 : f32 to vector<2x64xf32>
    %c0_i32 = arith.constant 0 : i32
    %101 = arith.index_cast %c0_i32 : i32 to index
    %c0_35 = arith.constant 0 : index
    %c0_36 = arith.constant 0 : index
    %102 = vector.load %arg26[%101, %c0_35, %c0_36] : memref<10x2x256xf32, #tpu.memory_space<vmem>>, vector<1x2x256xf32>
    %103 = vector.shape_cast %102 : vector<1x2x256xf32> to vector<2x256xf32>
    %cst_37 = arith.constant dense<0.000000e+00> : vector<2x256xf32>
    %104 = tpu.matmul %100, %99, %cst_37 {dimension_numbers = #tpu.dot_dimension_numbers<[1], [0], [0], [1], [0, 0, 1, 1], [], []>} : vector<2x64xf32>, vector<64x256xf32>, vector<2x256xf32> -> vector<2x256xf32>
    %105 = arith.addf %103, %104 : vector<2x256xf32>
    %106 = arith.negf %105 : vector<2x256xf32>
    %107 = math.exp %106 : vector<2x256xf32>
    %cst_38 = arith.constant 1.000000e+00 : f32
    %108 = vector.broadcast %cst_38 : f32 to vector<2x256xf32>
    %109 = arith.addf %108, %107 : vector<2x256xf32>
    %110 = arith.divf %108, %109 : vector<2x256xf32>
    %111 = math.tanh %105 : vector<2x256xf32>
    %112 = vector.extract_strided_slice %110 {offsets = [0, 0], sizes = [2, 64], strides = [1, 1]} : vector<2x256xf32> to vector<2x64xf32>
    %113 = vector.extract_strided_slice %110 {offsets = [0, 64], sizes = [2, 64], strides = [1, 1]} : vector<2x256xf32> to vector<2x64xf32>
    %114 = vector.extract_strided_slice %111 {offsets = [0, 128], sizes = [2, 64], strides = [1, 1]} : vector<2x256xf32> to vector<2x64xf32>
    %115 = vector.extract_strided_slice %110 {offsets = [0, 192], sizes = [2, 64], strides = [1, 1]} : vector<2x256xf32> to vector<2x64xf32>
    %116 = arith.mulf %113, %100 : vector<2x64xf32>
    %117 = arith.mulf %112, %114 : vector<2x64xf32>
    %118 = arith.addf %116, %117 : vector<2x64xf32>
    %119 = math.tanh %118 : vector<2x64xf32>
    %120 = arith.mulf %115, %119 : vector<2x64xf32>
    %121 = arith.addf %100, %120 : vector<2x64xf32>
    %c1_i32 = arith.constant 1 : i32
    %122 = arith.index_cast %c1_i32 : i32 to index
    %c0_39 = arith.constant 0 : index
    %c0_40 = arith.constant 0 : index
    %123 = vector.load %arg26[%122, %c0_39, %c0_40] : memref<10x2x256xf32, #tpu.memory_space<vmem>>, vector<1x2x256xf32>
    %124 = vector.shape_cast %123 : vector<1x2x256xf32> to vector<2x256xf32>
    %cst_41 = arith.constant dense<0.000000e+00> : vector<2x256xf32>
    %125 = tpu.matmul %120, %99, %cst_41 {dimension_numbers = #tpu.dot_dimension_numbers<[1], [0], [0], [1], [0, 0, 1, 1], [], []>} : vector<2x64xf32>, vector<64x256xf32>, vector<2x256xf32> -> vector<2x256xf32>
    %126 = arith.addf %124, %125 : vector<2x256xf32>
    %127 = arith.negf %126 : vector<2x256xf32>
    %128 = math.exp %127 : vector<2x256xf32>
    %cst_42 = arith.constant 1.000000e+00 : f32
    %129 = vector.broadcast %cst_42 : f32 to vector<2x256xf32>
    %130 = arith.addf %129, %128 : vector<2x256xf32>
    %131 = arith.divf %129, %130 : vector<2x256xf32>
    %132 = math.tanh %126 : vector<2x256xf32>
    %133 = vector.extract_strided_slice %131 {offsets = [0, 0], sizes = [2, 64], strides = [1, 1]} : vector<2x256xf32> to vector<2x64xf32>
    %134 = vector.extract_strided_slice %131 {offsets = [0, 64], sizes = [2, 64], strides = [1, 1]} : vector<2x256xf32> to vector<2x64xf32>
    %135 = vector.extract_strided_slice %132 {offsets = [0, 128], sizes = [2, 64], strides = [1, 1]} : vector<2x256xf32> to vector<2x64xf32>
    %136 = vector.extract_strided_slice %131 {offsets = [0, 192], sizes = [2, 64], strides = [1, 1]} : vector<2x256xf32> to vector<2x64xf32>
    %137 = arith.mulf %134, %118 : vector<2x64xf32>
    %138 = arith.mulf %133, %135 : vector<2x64xf32>
    %139 = arith.addf %137, %138 : vector<2x64xf32>
    %140 = math.tanh %139 : vector<2x64xf32>
    %141 = arith.mulf %136, %140 : vector<2x64xf32>
    %142 = arith.addf %121, %141 : vector<2x64xf32>
    %c2_i32 = arith.constant 2 : i32
    %143 = arith.index_cast %c2_i32 : i32 to index
    %c0_43 = arith.constant 0 : index
    %c0_44 = arith.constant 0 : index
    %144 = vector.load %arg26[%143, %c0_43, %c0_44] : memref<10x2x256xf32, #tpu.memory_space<vmem>>, vector<1x2x256xf32>
    %145 = vector.shape_cast %144 : vector<1x2x256xf32> to vector<2x256xf32>
    %cst_45 = arith.constant dense<0.000000e+00> : vector<2x256xf32>
    %146 = tpu.matmul %141, %99, %cst_45 {dimension_numbers = #tpu.dot_dimension_numbers<[1], [0], [0], [1], [0, 0, 1, 1], [], []>} : vector<2x64xf32>, vector<64x256xf32>, vector<2x256xf32> -> vector<2x256xf32>
    %147 = arith.addf %145, %146 : vector<2x256xf32>
    %148 = arith.negf %147 : vector<2x256xf32>
    %149 = math.exp %148 : vector<2x256xf32>
    %cst_46 = arith.constant 1.000000e+00 : f32
    %150 = vector.broadcast %cst_46 : f32 to vector<2x256xf32>
    %151 = arith.addf %150, %149 : vector<2x256xf32>
    %152 = arith.divf %150, %151 : vector<2x256xf32>
    %153 = math.tanh %147 : vector<2x256xf32>
    %154 = vector.extract_strided_slice %152 {offsets = [0, 0], sizes = [2, 64], strides = [1, 1]} : vector<2x256xf32> to vector<2x64xf32>
    %155 = vector.extract_strided_slice %152 {offsets = [0, 64], sizes = [2, 64], strides = [1, 1]} : vector<2x256xf32> to vector<2x64xf32>
    %156 = vector.extract_strided_slice %153 {offsets = [0, 128], sizes = [2, 64], strides = [1, 1]} : vector<2x256xf32> to vector<2x64xf32>
    %157 = vector.extract_strided_slice %152 {offsets = [0, 192], sizes = [2, 64], strides = [1, 1]} : vector<2x256xf32> to vector<2x64xf32>
    %158 = arith.mulf %155, %139 : vector<2x64xf32>
    %159 = arith.mulf %154, %156 : vector<2x64xf32>
    %160 = arith.addf %158, %159 : vector<2x64xf32>
    %161 = math.tanh %160 : vector<2x64xf32>
    %162 = arith.mulf %157, %161 : vector<2x64xf32>
    %163 = arith.addf %142, %162 : vector<2x64xf32>
    %c3_i32 = arith.constant 3 : i32
    %164 = arith.index_cast %c3_i32 : i32 to index
    %c0_47 = arith.constant 0 : index
    %c0_48 = arith.constant 0 : index
    %165 = vector.load %arg26[%164, %c0_47, %c0_48] : memref<10x2x256xf32, #tpu.memory_space<vmem>>, vector<1x2x256xf32>
    %166 = vector.shape_cast %165 : vector<1x2x256xf32> to vector<2x256xf32>
    %cst_49 = arith.constant dense<0.000000e+00> : vector<2x256xf32>
    %167 = tpu.matmul %162, %99, %cst_49 {dimension_numbers = #tpu.dot_dimension_numbers<[1], [0], [0], [1], [0, 0, 1, 1], [], []>} : vector<2x64xf32>, vector<64x256xf32>, vector<2x256xf32> -> vector<2x256xf32>
    %168 = arith.addf %166, %167 : vector<2x256xf32>
    %169 = arith.negf %168 : vector<2x256xf32>
    %170 = math.exp %169 : vector<2x256xf32>
    %cst_50 = arith.constant 1.000000e+00 : f32
    %171 = vector.broadcast %cst_50 : f32 to vector<2x256xf32>
    %172 = arith.addf %171, %170 : vector<2x256xf32>
    %173 = arith.divf %171, %172 : vector<2x256xf32>
    %174 = math.tanh %168 : vector<2x256xf32>
    %175 = vector.extract_strided_slice %173 {offsets = [0, 0], sizes = [2, 64], strides = [1, 1]} : vector<2x256xf32> to vector<2x64xf32>
    %176 = vector.extract_strided_slice %173 {offsets = [0, 64], sizes = [2, 64], strides = [1, 1]} : vector<2x256xf32> to vector<2x64xf32>
    %177 = vector.extract_strided_slice %174 {offsets = [0, 128], sizes = [2, 64], strides = [1, 1]} : vector<2x256xf32> to vector<2x64xf32>
    %178 = vector.extract_strided_slice %173 {offsets = [0, 192], sizes = [2, 64], strides = [1, 1]} : vector<2x256xf32> to vector<2x64xf32>
    %179 = arith.mulf %176, %160 : vector<2x64xf32>
    %180 = arith.mulf %175, %177 : vector<2x64xf32>
    %181 = arith.addf %179, %180 : vector<2x64xf32>
    %182 = math.tanh %181 : vector<2x64xf32>
    %183 = arith.mulf %178, %182 : vector<2x64xf32>
    %184 = arith.addf %163, %183 : vector<2x64xf32>
    %c4_i32 = arith.constant 4 : i32
    %185 = arith.index_cast %c4_i32 : i32 to index
    %c0_51 = arith.constant 0 : index
    %c0_52 = arith.constant 0 : index
    %186 = vector.load %arg26[%185, %c0_51, %c0_52] : memref<10x2x256xf32, #tpu.memory_space<vmem>>, vector<1x2x256xf32>
    %187 = vector.shape_cast %186 : vector<1x2x256xf32> to vector<2x256xf32>
    %cst_53 = arith.constant dense<0.000000e+00> : vector<2x256xf32>
    %188 = tpu.matmul %183, %99, %cst_53 {dimension_numbers = #tpu.dot_dimension_numbers<[1], [0], [0], [1], [0, 0, 1, 1], [], []>} : vector<2x64xf32>, vector<64x256xf32>, vector<2x256xf32> -> vector<2x256xf32>
    %189 = arith.addf %187, %188 : vector<2x256xf32>
    %190 = arith.negf %189 : vector<2x256xf32>
    %191 = math.exp %190 : vector<2x256xf32>
    %cst_54 = arith.constant 1.000000e+00 : f32
    %192 = vector.broadcast %cst_54 : f32 to vector<2x256xf32>
    %193 = arith.addf %192, %191 : vector<2x256xf32>
    %194 = arith.divf %192, %193 : vector<2x256xf32>
    %195 = math.tanh %189 : vector<2x256xf32>
    %196 = vector.extract_strided_slice %194 {offsets = [0, 0], sizes = [2, 64], strides = [1, 1]} : vector<2x256xf32> to vector<2x64xf32>
    %197 = vector.extract_strided_slice %194 {offsets = [0, 64], sizes = [2, 64], strides = [1, 1]} : vector<2x256xf32> to vector<2x64xf32>
    %198 = vector.extract_strided_slice %195 {offsets = [0, 128], sizes = [2, 64], strides = [1, 1]} : vector<2x256xf32> to vector<2x64xf32>
    %199 = vector.extract_strided_slice %194 {offsets = [0, 192], sizes = [2, 64], strides = [1, 1]} : vector<2x256xf32> to vector<2x64xf32>
    %200 = arith.mulf %197, %181 : vector<2x64xf32>
    %201 = arith.mulf %196, %198 : vector<2x64xf32>
    %202 = arith.addf %200, %201 : vector<2x64xf32>
    %203 = math.tanh %202 : vector<2x64xf32>
    %204 = arith.mulf %199, %203 : vector<2x64xf32>
    %205 = arith.addf %184, %204 : vector<2x64xf32>
    %c5_i32 = arith.constant 5 : i32
    %206 = arith.index_cast %c5_i32 : i32 to index
    %c0_55 = arith.constant 0 : index
    %c0_56 = arith.constant 0 : index
    %207 = vector.load %arg26[%206, %c0_55, %c0_56] : memref<10x2x256xf32, #tpu.memory_space<vmem>>, vector<1x2x256xf32>
    %208 = vector.shape_cast %207 : vector<1x2x256xf32> to vector<2x256xf32>
    %cst_57 = arith.constant dense<0.000000e+00> : vector<2x256xf32>
    %209 = tpu.matmul %204, %99, %cst_57 {dimension_numbers = #tpu.dot_dimension_numbers<[1], [0], [0], [1], [0, 0, 1, 1], [], []>} : vector<2x64xf32>, vector<64x256xf32>, vector<2x256xf32> -> vector<2x256xf32>
    %210 = arith.addf %208, %209 : vector<2x256xf32>
    %211 = arith.negf %210 : vector<2x256xf32>
    %212 = math.exp %211 : vector<2x256xf32>
    %cst_58 = arith.constant 1.000000e+00 : f32
    %213 = vector.broadcast %cst_58 : f32 to vector<2x256xf32>
    %214 = arith.addf %213, %212 : vector<2x256xf32>
    %215 = arith.divf %213, %214 : vector<2x256xf32>
    %216 = math.tanh %210 : vector<2x256xf32>
    %217 = vector.extract_strided_slice %215 {offsets = [0, 0], sizes = [2, 64], strides = [1, 1]} : vector<2x256xf32> to vector<2x64xf32>
    %218 = vector.extract_strided_slice %215 {offsets = [0, 64], sizes = [2, 64], strides = [1, 1]} : vector<2x256xf32> to vector<2x64xf32>
    %219 = vector.extract_strided_slice %216 {offsets = [0, 128], sizes = [2, 64], strides = [1, 1]} : vector<2x256xf32> to vector<2x64xf32>
    %220 = vector.extract_strided_slice %215 {offsets = [0, 192], sizes = [2, 64], strides = [1, 1]} : vector<2x256xf32> to vector<2x64xf32>
    %221 = arith.mulf %218, %202 : vector<2x64xf32>
    %222 = arith.mulf %217, %219 : vector<2x64xf32>
    %223 = arith.addf %221, %222 : vector<2x64xf32>
    %224 = math.tanh %223 : vector<2x64xf32>
    %225 = arith.mulf %220, %224 : vector<2x64xf32>
    %226 = arith.addf %205, %225 : vector<2x64xf32>
    %c6_i32 = arith.constant 6 : i32
    %227 = arith.index_cast %c6_i32 : i32 to index
    %c0_59 = arith.constant 0 : index
    %c0_60 = arith.constant 0 : index
    %228 = vector.load %arg26[%227, %c0_59, %c0_60] : memref<10x2x256xf32, #tpu.memory_space<vmem>>, vector<1x2x256xf32>
    %229 = vector.shape_cast %228 : vector<1x2x256xf32> to vector<2x256xf32>
    %cst_61 = arith.constant dense<0.000000e+00> : vector<2x256xf32>
    %230 = tpu.matmul %225, %99, %cst_61 {dimension_numbers = #tpu.dot_dimension_numbers<[1], [0], [0], [1], [0, 0, 1, 1], [], []>} : vector<2x64xf32>, vector<64x256xf32>, vector<2x256xf32> -> vector<2x256xf32>
    %231 = arith.addf %229, %230 : vector<2x256xf32>
    %232 = arith.negf %231 : vector<2x256xf32>
    %233 = math.exp %232 : vector<2x256xf32>
    %cst_62 = arith.constant 1.000000e+00 : f32
    %234 = vector.broadcast %cst_62 : f32 to vector<2x256xf32>
    %235 = arith.addf %234, %233 : vector<2x256xf32>
    %236 = arith.divf %234, %235 : vector<2x256xf32>
    %237 = math.tanh %231 : vector<2x256xf32>
    %238 = vector.extract_strided_slice %236 {offsets = [0, 0], sizes = [2, 64], strides = [1, 1]} : vector<2x256xf32> to vector<2x64xf32>
    %239 = vector.extract_strided_slice %236 {offsets = [0, 64], sizes = [2, 64], strides = [1, 1]} : vector<2x256xf32> to vector<2x64xf32>
    %240 = vector.extract_strided_slice %237 {offsets = [0, 128], sizes = [2, 64], strides = [1, 1]} : vector<2x256xf32> to vector<2x64xf32>
    %241 = vector.extract_strided_slice %236 {offsets = [0, 192], sizes = [2, 64], strides = [1, 1]} : vector<2x256xf32> to vector<2x64xf32>
    %242 = arith.mulf %239, %223 : vector<2x64xf32>
    %243 = arith.mulf %238, %240 : vector<2x64xf32>
    %244 = arith.addf %242, %243 : vector<2x64xf32>
    %245 = math.tanh %244 : vector<2x64xf32>
    %246 = arith.mulf %241, %245 : vector<2x64xf32>
    %247 = arith.addf %226, %246 : vector<2x64xf32>
    %c7_i32 = arith.constant 7 : i32
    %248 = arith.index_cast %c7_i32 : i32 to index
    %c0_63 = arith.constant 0 : index
    %c0_64 = arith.constant 0 : index
    %249 = vector.load %arg26[%248, %c0_63, %c0_64] : memref<10x2x256xf32, #tpu.memory_space<vmem>>, vector<1x2x256xf32>
    %250 = vector.shape_cast %249 : vector<1x2x256xf32> to vector<2x256xf32>
    %cst_65 = arith.constant dense<0.000000e+00> : vector<2x256xf32>
    %251 = tpu.matmul %246, %99, %cst_65 {dimension_numbers = #tpu.dot_dimension_numbers<[1], [0], [0], [1], [0, 0, 1, 1], [], []>} : vector<2x64xf32>, vector<64x256xf32>, vector<2x256xf32> -> vector<2x256xf32>
    %252 = arith.addf %250, %251 : vector<2x256xf32>
    %253 = arith.negf %252 : vector<2x256xf32>
    %254 = math.exp %253 : vector<2x256xf32>
    %cst_66 = arith.constant 1.000000e+00 : f32
    %255 = vector.broadcast %cst_66 : f32 to vector<2x256xf32>
    %256 = arith.addf %255, %254 : vector<2x256xf32>
    %257 = arith.divf %255, %256 : vector<2x256xf32>
    %258 = math.tanh %252 : vector<2x256xf32>
    %259 = vector.extract_strided_slice %257 {offsets = [0, 0], sizes = [2, 64], strides = [1, 1]} : vector<2x256xf32> to vector<2x64xf32>
    %260 = vector.extract_strided_slice %257 {offsets = [0, 64], sizes = [2, 64], strides = [1, 1]} : vector<2x256xf32> to vector<2x64xf32>
    %261 = vector.extract_strided_slice %258 {offsets = [0, 128], sizes = [2, 64], strides = [1, 1]} : vector<2x256xf32> to vector<2x64xf32>
    %262 = vector.extract_strided_slice %257 {offsets = [0, 192], sizes = [2, 64], strides = [1, 1]} : vector<2x256xf32> to vector<2x64xf32>
    %263 = arith.mulf %260, %244 : vector<2x64xf32>
    %264 = arith.mulf %259, %261 : vector<2x64xf32>
    %265 = arith.addf %263, %264 : vector<2x64xf32>
    %266 = math.tanh %265 : vector<2x64xf32>
    %267 = arith.mulf %262, %266 : vector<2x64xf32>
    %268 = arith.addf %247, %267 : vector<2x64xf32>
    %c8_i32 = arith.constant 8 : i32
    %269 = arith.index_cast %c8_i32 : i32 to index
    %c0_67 = arith.constant 0 : index
    %c0_68 = arith.constant 0 : index
    %270 = vector.load %arg26[%269, %c0_67, %c0_68] : memref<10x2x256xf32, #tpu.memory_space<vmem>>, vector<1x2x256xf32>
    %271 = vector.shape_cast %270 : vector<1x2x256xf32> to vector<2x256xf32>
    %cst_69 = arith.constant dense<0.000000e+00> : vector<2x256xf32>
    %272 = tpu.matmul %267, %99, %cst_69 {dimension_numbers = #tpu.dot_dimension_numbers<[1], [0], [0], [1], [0, 0, 1, 1], [], []>} : vector<2x64xf32>, vector<64x256xf32>, vector<2x256xf32> -> vector<2x256xf32>
    %273 = arith.addf %271, %272 : vector<2x256xf32>
    %274 = arith.negf %273 : vector<2x256xf32>
    %275 = math.exp %274 : vector<2x256xf32>
    %cst_70 = arith.constant 1.000000e+00 : f32
    %276 = vector.broadcast %cst_70 : f32 to vector<2x256xf32>
    %277 = arith.addf %276, %275 : vector<2x256xf32>
    %278 = arith.divf %276, %277 : vector<2x256xf32>
    %279 = math.tanh %273 : vector<2x256xf32>
    %280 = vector.extract_strided_slice %278 {offsets = [0, 0], sizes = [2, 64], strides = [1, 1]} : vector<2x256xf32> to vector<2x64xf32>
    %281 = vector.extract_strided_slice %278 {offsets = [0, 64], sizes = [2, 64], strides = [1, 1]} : vector<2x256xf32> to vector<2x64xf32>
    %282 = vector.extract_strided_slice %279 {offsets = [0, 128], sizes = [2, 64], strides = [1, 1]} : vector<2x256xf32> to vector<2x64xf32>
    %283 = vector.extract_strided_slice %278 {offsets = [0, 192], sizes = [2, 64], strides = [1, 1]} : vector<2x256xf32> to vector<2x64xf32>
    %284 = arith.mulf %281, %265 : vector<2x64xf32>
    %285 = arith.mulf %280, %282 : vector<2x64xf32>
    %286 = arith.addf %284, %285 : vector<2x64xf32>
    %287 = math.tanh %286 : vector<2x64xf32>
    %288 = arith.mulf %283, %287 : vector<2x64xf32>
    %289 = arith.addf %268, %288 : vector<2x64xf32>
    %c9_i32 = arith.constant 9 : i32
    %290 = arith.index_cast %c9_i32 : i32 to index
    %c0_71 = arith.constant 0 : index
    %c0_72 = arith.constant 0 : index
    %291 = vector.load %arg26[%290, %c0_71, %c0_72] : memref<10x2x256xf32, #tpu.memory_space<vmem>>, vector<1x2x256xf32>
    %292 = vector.shape_cast %291 : vector<1x2x256xf32> to vector<2x256xf32>
    %cst_73 = arith.constant dense<0.000000e+00> : vector<2x256xf32>
    %293 = tpu.matmul %288, %99, %cst_73 {dimension_numbers = #tpu.dot_dimension_numbers<[1], [0], [0], [1], [0, 0, 1, 1], [], []>} : vector<2x64xf32>, vector<64x256xf32>, vector<2x256xf32> -> vector<2x256xf32>
    %294 = arith.addf %292, %293 : vector<2x256xf32>
    %295 = arith.negf %294 : vector<2x256xf32>
    %296 = math.exp %295 : vector<2x256xf32>
    %cst_74 = arith.constant 1.000000e+00 : f32
    %297 = vector.broadcast %cst_74 : f32 to vector<2x256xf32>
    %298 = arith.addf %297, %296 : vector<2x256xf32>
    %299 = arith.divf %297, %298 : vector<2x256xf32>
    %300 = math.tanh %294 : vector<2x256xf32>
    %301 = vector.extract_strided_slice %299 {offsets = [0, 0], sizes = [2, 64], strides = [1, 1]} : vector<2x256xf32> to vector<2x64xf32>
    %302 = vector.extract_strided_slice %299 {offsets = [0, 64], sizes = [2, 64], strides = [1, 1]} : vector<2x256xf32> to vector<2x64xf32>
    %303 = vector.extract_strided_slice %300 {offsets = [0, 128], sizes = [2, 64], strides = [1, 1]} : vector<2x256xf32> to vector<2x64xf32>
    %304 = vector.extract_strided_slice %299 {offsets = [0, 192], sizes = [2, 64], strides = [1, 1]} : vector<2x256xf32> to vector<2x64xf32>
    %305 = arith.mulf %302, %286 : vector<2x64xf32>
    %306 = arith.mulf %301, %303 : vector<2x64xf32>
    %307 = arith.addf %305, %306 : vector<2x64xf32>
    %308 = math.tanh %307 : vector<2x64xf32>
    %309 = arith.mulf %304, %308 : vector<2x64xf32>
    %310 = arith.addf %289, %309 : vector<2x64xf32>
    %c10_i32 = arith.constant 10 : i32
    %cst_75 = arith.constant 1.000000e-01 : f32
    %311 = vector.broadcast %cst_75 : f32 to vector<2x64xf32>
    %312 = arith.mulf %310, %311 : vector<2x64xf32>
    %c0_76 = arith.constant 0 : index
    %c0_77 = arith.constant 0 : index
    %313 = vector.load %arg9[%c0_76, %c0_77] : memref<64x32xf32, #tpu.memory_space<vmem>>, vector<64x32xf32>
    %c0_78 = arith.constant 0 : index
    %c0_79 = arith.constant 0 : index
    %314 = vector.load %arg11[%c0_78, %c0_79] : memref<96x32xf32, #tpu.memory_space<vmem>>, vector<96x32xf32>
    %c0_80 = arith.constant 0 : index
    %c0_81 = arith.constant 0 : index
    %315 = vector.load %arg10[%c0_80, %c0_81] : memref<1x32xf32, #tpu.memory_space<vmem>>, vector<1x32xf32>
    %c0_82 = arith.constant 0 : index
    %c0_83 = arith.constant 0 : index
    %316 = vector.load %arg12[%c0_82, %c0_83] : memref<1x32xf32, #tpu.memory_space<vmem>>, vector<1x32xf32>
    %c0_84 = arith.constant 0 : index
    %c0_85 = arith.constant 0 : index
    %317 = vector.load %arg13[%c0_84, %c0_85] : memref<64x32xf32, #tpu.memory_space<vmem>>, vector<64x32xf32>
    %c0_86 = arith.constant 0 : index
    %c0_87 = arith.constant 0 : index
    %318 = vector.load %arg14[%c0_86, %c0_87] : memref<1x32xf32, #tpu.memory_space<vmem>>, vector<1x32xf32>
    %c0_88 = arith.constant 0 : index
    %c0_89 = arith.constant 0 : index
    %319 = vector.load %arg15[%c0_88, %c0_89] : memref<32x32xf32, #tpu.memory_space<vmem>>, vector<32x32xf32>
    %c0_90 = arith.constant 0 : index
    %c0_91 = arith.constant 0 : index
    %320 = vector.load %arg16[%c0_90, %c0_91] : memref<1x32xf32, #tpu.memory_space<vmem>>, vector<1x32xf32>
    %c0_92 = arith.constant 0 : index
    %c0_93 = arith.constant 0 : index
    %321 = vector.load %arg3[%c0_92, %c0_93] : memref<24x1xi32, #tpu.memory_space<vmem>>, vector<24x1xi32>
    %322 = tpu.iota {dimensions = array<i32: 1>} : vector<24x64xi32>
    %323 = vector.broadcast %321 : vector<24x1xi32> to vector<24x64xi32>
    %324 = arith.cmpi eq, %322, %323 : vector<24x64xi32>
    %325 = arith.extui %324 : vector<24x64xi1> to vector<24x64xi32>
    %326 = arith.sitofp %325 : vector<24x64xi32> to vector<24x64xf32>
    %cst_94 = arith.constant dense<0.000000e+00> : vector<24x32xf32>
    %327 = tpu.matmul %326, %0, %cst_94 {dimension_numbers = #tpu.dot_dimension_numbers<[1], [0], [0], [1], [0, 0, 1, 1], [], []>} : vector<24x64xf32>, vector<64x32xf32>, vector<24x32xf32> -> vector<24x32xf32>
    %328 = vector.shape_cast %327 : vector<24x32xf32> to vector<2x12x32xf32>
    %329 = vector.extract_strided_slice %328 {offsets = [0, 0, 0], sizes = [2, 11, 32], strides = [1, 1, 1]} : vector<2x12x32xf32> to vector<2x11x32xf32>
    %330 = vector.extract_strided_slice %328 {offsets = [0, 1, 0], sizes = [2, 11, 32], strides = [1, 1, 1]} : vector<2x12x32xf32> to vector<2x11x32xf32>
    %331 = tpu.concatenate %329, %330 in 2 : vector<2x11x32xf32>, vector<2x11x32xf32> -> vector<2x11x64xf32>
    %332 = vector.shape_cast %331 : vector<2x11x64xf32> to vector<22x64xf32>
    %cst_95 = arith.constant dense<0.000000e+00> : vector<22x32xf32>
    %333 = tpu.matmul %332, %313, %cst_95 {dimension_numbers = #tpu.dot_dimension_numbers<[1], [0], [0], [1], [0, 0, 1, 1], [], []>} : vector<22x64xf32>, vector<64x32xf32>, vector<22x32xf32> -> vector<22x32xf32>
    %334 = vector.shape_cast %333 : vector<22x32xf32> to vector<2x11x32xf32>
    %335 = vector.shape_cast %315 : vector<1x32xf32> to vector<1x1x32xf32>
    %336 = vector.broadcast %335 : vector<1x1x32xf32> to vector<2x11x32xf32>
    %337 = arith.addf %334, %336 : vector<2x11x32xf32>
    %cst_96 = arith.constant 0.000000e+00 : f32
    %338 = vector.broadcast %cst_96 : f32 to vector<2x11x32xf32>
    %339 = arith.maximumf %337, %338 : vector<2x11x32xf32>
    %cst_97 = arith.constant dense<0xFF800000> : vector<2x32xf32>
    %340 = vector.multi_reduction <maximumf>, %339, %cst_97 [1] : vector<2x11x32xf32> to vector<2x32xf32>
    %341 = vector.extract_strided_slice %328 {offsets = [0, 0, 0], sizes = [2, 10, 32], strides = [1, 1, 1]} : vector<2x12x32xf32> to vector<2x10x32xf32>
    %342 = vector.extract_strided_slice %328 {offsets = [0, 1, 0], sizes = [2, 10, 32], strides = [1, 1, 1]} : vector<2x12x32xf32> to vector<2x10x32xf32>
    %343 = vector.extract_strided_slice %328 {offsets = [0, 2, 0], sizes = [2, 10, 32], strides = [1, 1, 1]} : vector<2x12x32xf32> to vector<2x10x32xf32>
    %344 = tpu.concatenate %341, %342, %343 in 2 : vector<2x10x32xf32>, vector<2x10x32xf32>, vector<2x10x32xf32> -> vector<2x10x96xf32>
    %345 = vector.shape_cast %344 : vector<2x10x96xf32> to vector<20x96xf32>
    %cst_98 = arith.constant dense<0.000000e+00> : vector<20x32xf32>
    %346 = tpu.matmul %345, %314, %cst_98 {dimension_numbers = #tpu.dot_dimension_numbers<[1], [0], [0], [1], [0, 0, 1, 1], [], []>} : vector<20x96xf32>, vector<96x32xf32>, vector<20x32xf32> -> vector<20x32xf32>
    %347 = vector.shape_cast %346 : vector<20x32xf32> to vector<2x10x32xf32>
    %348 = vector.shape_cast %316 : vector<1x32xf32> to vector<1x1x32xf32>
    %349 = vector.broadcast %348 : vector<1x1x32xf32> to vector<2x10x32xf32>
    %350 = arith.addf %347, %349 : vector<2x10x32xf32>
    %cst_99 = arith.constant 0.000000e+00 : f32
    %351 = vector.broadcast %cst_99 : f32 to vector<2x10x32xf32>
    %352 = arith.maximumf %350, %351 : vector<2x10x32xf32>
    %cst_100 = arith.constant dense<0xFF800000> : vector<2x32xf32>
    %353 = vector.multi_reduction <maximumf>, %352, %cst_100 [1] : vector<2x10x32xf32> to vector<2x32xf32>
    %354 = tpu.concatenate %340, %353 in 1 : vector<2x32xf32>, vector<2x32xf32> -> vector<2x64xf32>
    %cst_101 = arith.constant dense<0.000000e+00> : vector<2x32xf32>
    %355 = tpu.matmul %354, %317, %cst_101 {dimension_numbers = #tpu.dot_dimension_numbers<[1], [0], [0], [1], [0, 0, 1, 1], [], []>} : vector<2x64xf32>, vector<64x32xf32>, vector<2x32xf32> -> vector<2x32xf32>
    %356 = vector.broadcast %318 : vector<1x32xf32> to vector<2x32xf32>
    %357 = arith.addf %355, %356 : vector<2x32xf32>
    %cst_102 = arith.constant dense<0.000000e+00> : vector<2x32xf32>
    %358 = tpu.matmul %357, %319, %cst_102 {dimension_numbers = #tpu.dot_dimension_numbers<[1], [0], [0], [1], [0, 0, 1, 1], [], []>} : vector<2x32xf32>, vector<32x32xf32>, vector<2x32xf32> -> vector<2x32xf32>
    %359 = vector.broadcast %320 : vector<1x32xf32> to vector<2x32xf32>
    %360 = arith.addf %358, %359 : vector<2x32xf32>
    %c0_103 = arith.constant 0 : index
    %c0_104 = arith.constant 0 : index
    %361 = vector.load %arg1[%c0_103, %c0_104] : memref<16x1xi32, #tpu.memory_space<vmem>>, vector<16x1xi32>
    %362 = tpu.iota {dimensions = array<i32: 1>} : vector<16x64xi32>
    %363 = vector.broadcast %361 : vector<16x1xi32> to vector<16x64xi32>
    %364 = arith.cmpi eq, %362, %363 : vector<16x64xi32>
    %365 = arith.extui %364 : vector<16x64xi1> to vector<16x64xi32>
    %366 = arith.sitofp %365 : vector<16x64xi32> to vector<16x64xf32>
    %cst_105 = arith.constant dense<0.000000e+00> : vector<16x32xf32>
    %367 = tpu.matmul %366, %0, %cst_105 {dimension_numbers = #tpu.dot_dimension_numbers<[1], [0], [0], [1], [0, 0, 1, 1], [], []>} : vector<16x64xf32>, vector<64x32xf32>, vector<16x32xf32> -> vector<16x32xf32>
    %368 = vector.shape_cast %367 : vector<16x32xf32> to vector<2x8x32xf32>
    %369 = vector.extract_strided_slice %368 {offsets = [0, 0, 0], sizes = [2, 7, 32], strides = [1, 1, 1]} : vector<2x8x32xf32> to vector<2x7x32xf32>
    %370 = vector.extract_strided_slice %368 {offsets = [0, 1, 0], sizes = [2, 7, 32], strides = [1, 1, 1]} : vector<2x8x32xf32> to vector<2x7x32xf32>
    %371 = tpu.concatenate %369, %370 in 2 : vector<2x7x32xf32>, vector<2x7x32xf32> -> vector<2x7x64xf32>
    %372 = vector.shape_cast %371 : vector<2x7x64xf32> to vector<14x64xf32>
    %cst_106 = arith.constant dense<0.000000e+00> : vector<14x32xf32>
    %373 = tpu.matmul %372, %313, %cst_106 {dimension_numbers = #tpu.dot_dimension_numbers<[1], [0], [0], [1], [0, 0, 1, 1], [], []>} : vector<14x64xf32>, vector<64x32xf32>, vector<14x32xf32> -> vector<14x32xf32>
    %374 = vector.shape_cast %373 : vector<14x32xf32> to vector<2x7x32xf32>
    %375 = vector.shape_cast %315 : vector<1x32xf32> to vector<1x1x32xf32>
    %376 = vector.broadcast %375 : vector<1x1x32xf32> to vector<2x7x32xf32>
    %377 = arith.addf %374, %376 : vector<2x7x32xf32>
    %cst_107 = arith.constant 0.000000e+00 : f32
    %378 = vector.broadcast %cst_107 : f32 to vector<2x7x32xf32>
    %379 = arith.maximumf %377, %378 : vector<2x7x32xf32>
    %cst_108 = arith.constant dense<0xFF800000> : vector<2x32xf32>
    %380 = vector.multi_reduction <maximumf>, %379, %cst_108 [1] : vector<2x7x32xf32> to vector<2x32xf32>
    %381 = vector.extract_strided_slice %368 {offsets = [0, 0, 0], sizes = [2, 6, 32], strides = [1, 1, 1]} : vector<2x8x32xf32> to vector<2x6x32xf32>
    %382 = vector.extract_strided_slice %368 {offsets = [0, 1, 0], sizes = [2, 6, 32], strides = [1, 1, 1]} : vector<2x8x32xf32> to vector<2x6x32xf32>
    %383 = vector.extract_strided_slice %368 {offsets = [0, 2, 0], sizes = [2, 6, 32], strides = [1, 1, 1]} : vector<2x8x32xf32> to vector<2x6x32xf32>
    %384 = tpu.concatenate %381, %382, %383 in 2 : vector<2x6x32xf32>, vector<2x6x32xf32>, vector<2x6x32xf32> -> vector<2x6x96xf32>
    %385 = vector.shape_cast %384 : vector<2x6x96xf32> to vector<12x96xf32>
    %cst_109 = arith.constant dense<0.000000e+00> : vector<12x32xf32>
    %386 = tpu.matmul %385, %314, %cst_109 {dimension_numbers = #tpu.dot_dimension_numbers<[1], [0], [0], [1], [0, 0, 1, 1], [], []>} : vector<12x96xf32>, vector<96x32xf32>, vector<12x32xf32> -> vector<12x32xf32>
    %387 = vector.shape_cast %386 : vector<12x32xf32> to vector<2x6x32xf32>
    %388 = vector.shape_cast %316 : vector<1x32xf32> to vector<1x1x32xf32>
    %389 = vector.broadcast %388 : vector<1x1x32xf32> to vector<2x6x32xf32>
    %390 = arith.addf %387, %389 : vector<2x6x32xf32>
    %cst_110 = arith.constant 0.000000e+00 : f32
    %391 = vector.broadcast %cst_110 : f32 to vector<2x6x32xf32>
    %392 = arith.maximumf %390, %391 : vector<2x6x32xf32>
    %cst_111 = arith.constant dense<0xFF800000> : vector<2x32xf32>
    %393 = vector.multi_reduction <maximumf>, %392, %cst_111 [1] : vector<2x6x32xf32> to vector<2x32xf32>
    %394 = tpu.concatenate %380, %393 in 1 : vector<2x32xf32>, vector<2x32xf32> -> vector<2x64xf32>
    %cst_112 = arith.constant dense<0.000000e+00> : vector<2x32xf32>
    %395 = tpu.matmul %394, %317, %cst_112 {dimension_numbers = #tpu.dot_dimension_numbers<[1], [0], [0], [1], [0, 0, 1, 1], [], []>} : vector<2x64xf32>, vector<64x32xf32>, vector<2x32xf32> -> vector<2x32xf32>
    %396 = vector.broadcast %318 : vector<1x32xf32> to vector<2x32xf32>
    %397 = arith.addf %395, %396 : vector<2x32xf32>
    %cst_113 = arith.constant dense<0.000000e+00> : vector<2x32xf32>
    %398 = tpu.matmul %397, %319, %cst_113 {dimension_numbers = #tpu.dot_dimension_numbers<[1], [0], [0], [1], [0, 0, 1, 1], [], []>} : vector<2x32xf32>, vector<32x32xf32>, vector<2x32xf32> -> vector<2x32xf32>
    %399 = vector.broadcast %320 : vector<1x32xf32> to vector<2x32xf32>
    %400 = arith.addf %398, %399 : vector<2x32xf32>
    %401 = tpu.concatenate %400, %312, %360 in 1 : vector<2x32xf32>, vector<2x64xf32>, vector<2x32xf32> -> vector<2x128xf32>
    %c0_114 = arith.constant 0 : index
    %c0_115 = arith.constant 0 : index
    %402 = vector.load %arg17[%c0_114, %c0_115] : memref<128x64xf32, #tpu.memory_space<vmem>>, vector<128x64xf32>
    %cst_116 = arith.constant dense<0.000000e+00> : vector<2x64xf32>
    %403 = tpu.matmul %401, %402, %cst_116 {dimension_numbers = #tpu.dot_dimension_numbers<[1], [0], [0], [1], [0, 0, 1, 1], [], []>} : vector<2x128xf32>, vector<128x64xf32>, vector<2x64xf32> -> vector<2x64xf32>
    %c0_117 = arith.constant 0 : index
    %c0_118 = arith.constant 0 : index
    %404 = vector.load %arg18[%c0_117, %c0_118] : memref<1x64xf32, #tpu.memory_space<vmem>>, vector<1x64xf32>
    %405 = vector.broadcast %404 : vector<1x64xf32> to vector<2x64xf32>
    %406 = arith.addf %403, %405 : vector<2x64xf32>
    %cst_119 = arith.constant 0.000000e+00 : f32
    %407 = vector.broadcast %cst_119 : f32 to vector<2x64xf32>
    %408 = arith.maximumf %406, %407 : vector<2x64xf32>
    %c0_120 = arith.constant 0 : index
    %c0_121 = arith.constant 0 : index
    %409 = vector.load %arg19[%c0_120, %c0_121] : memref<64x256xf32, #tpu.memory_space<vmem>>, vector<64x256xf32>
    %cst_122 = arith.constant dense<0.000000e+00> : vector<2x256xf32>
    %410 = tpu.matmul %408, %409, %cst_122 {dimension_numbers = #tpu.dot_dimension_numbers<[1], [0], [0], [1], [0, 0, 1, 1], [], []>} : vector<2x64xf32>, vector<64x256xf32>, vector<2x256xf32> -> vector<2x256xf32>
    %c0_123 = arith.constant 0 : index
    %c0_124 = arith.constant 0 : index
    %411 = vector.load %arg20[%c0_123, %c0_124] : memref<1x256xf32, #tpu.memory_space<vmem>>, vector<1x256xf32>
    %412 = vector.broadcast %411 : vector<1x256xf32> to vector<2x256xf32>
    %413 = arith.addf %410, %412 : vector<2x256xf32>
    %cst_125 = arith.constant 0.000000e+00 : f32
    %414 = vector.broadcast %cst_125 : f32 to vector<2x256xf32>
    %415 = arith.maximumf %413, %414 : vector<2x256xf32>
    %c0_126 = arith.constant 0 : index
    %c0_127 = arith.constant 0 : index
    %416 = vector.load %arg21[%c0_126, %c0_127] : memref<256x128xf32, #tpu.memory_space<vmem>>, vector<256x128xf32>
    %cst_128 = arith.constant dense<0.000000e+00> : vector<2x128xf32>
    %417 = tpu.matmul %415, %416, %cst_128 {dimension_numbers = #tpu.dot_dimension_numbers<[1], [0], [0], [1], [0, 0, 1, 1], [], []>} : vector<2x256xf32>, vector<256x128xf32>, vector<2x128xf32> -> vector<2x128xf32>
    %c0_129 = arith.constant 0 : index
    %c0_130 = arith.constant 0 : index
    %418 = vector.load %arg22[%c0_129, %c0_130] : memref<1x128xf32, #tpu.memory_space<vmem>>, vector<1x128xf32>
    %419 = vector.broadcast %418 : vector<1x128xf32> to vector<2x128xf32>
    %420 = arith.addf %417, %419 : vector<2x128xf32>
    %cst_131 = arith.constant 0.000000e+00 : f32
    %421 = vector.broadcast %cst_131 : f32 to vector<2x128xf32>
    %422 = arith.maximumf %420, %421 : vector<2x128xf32>
    %c0_132 = arith.constant 0 : index
    %c0_133 = arith.constant 0 : index
    %423 = vector.load %arg23[%c0_132, %c0_133] : memref<128x1xf32, #tpu.memory_space<vmem>>, vector<128x1xf32>
    %cst_134 = arith.constant dense<0.000000e+00> : vector<2x1xf32>
    %424 = tpu.matmul %422, %423, %cst_134 {dimension_numbers = #tpu.dot_dimension_numbers<[1], [0], [0], [1], [0, 0, 1, 1], [], []>} : vector<2x128xf32>, vector<128x1xf32>, vector<2x1xf32> -> vector<2x1xf32>
    %c0_135 = arith.constant 0 : index
    %c0_136 = arith.constant 0 : index
    %425 = vector.load %arg24[%c0_135, %c0_136] : memref<1x1xf32, #tpu.memory_space<vmem>>, vector<1x1xf32>
    %426 = vector.broadcast %425 : vector<1x1xf32> to vector<2x1xf32>
    %427 = arith.addf %424, %426 : vector<2x1xf32>
    %428 = arith.negf %427 : vector<2x1xf32>
    %429 = math.exp %428 : vector<2x1xf32>
    %cst_137 = arith.constant 1.000000e+00 : f32
    %430 = vector.broadcast %cst_137 : f32 to vector<2x1xf32>
    %431 = arith.addf %430, %429 : vector<2x1xf32>
    %432 = arith.divf %430, %431 : vector<2x1xf32>
    %c0_138 = arith.constant 0 : index
    %c0_139 = arith.constant 0 : index
    %433 = vector.load %arg25[%c0_138, %c0_139] : memref<2x1xf32, #tpu.memory_space<vmem>>, vector<2x1xf32>
    tpu.vector_store %arg25[%c0_138, %c0_139], %432 {strides = array<i32>} : memref<2x1xf32, #tpu.memory_space<vmem>>, vector<2x1xf32>,
    return
  }
  func.func @transform_0(%arg0: i32) -> (i32, i32) {
    %c0_i32 = arith.constant 0 : i32
    %c0_i32_0 = arith.constant 0 : i32
    %c0_i32_1 = arith.constant 0 : i32
    return %c0_i32, %c0_i32_0 : i32, i32
  }
  func.func @transform_1(%arg0: i32) -> (i32, i32) {
    %c0_i32 = arith.constant 0 : i32
    %c0_i32_0 = arith.constant 0 : i32
    %c0_i32_1 = arith.constant 0 : i32
    return %c0_i32, %c0_i32_0 : i32, i32
  }
  func.func @transform_2(%arg0: i32) -> (i32, i32) {
    %c0_i32 = arith.constant 0 : i32
    %c0_i32_0 = arith.constant 0 : i32
    %c0_i32_1 = arith.constant 0 : i32
    return %c0_i32, %c0_i32_0 : i32, i32
  }
  func.func @transform_3(%arg0: i32) -> (i32, i32) {
    %c0_i32 = arith.constant 0 : i32
    %c0_i32_0 = arith.constant 0 : i32
    %c0_i32_1 = arith.constant 0 : i32
    return %c0_i32, %c0_i32_0 : i32, i32
  }
  func.func @transform_4(%arg0: i32) -> (i32, i32) {
    %c0_i32 = arith.constant 0 : i32
    %c0_i32_0 = arith.constant 0 : i32
    %c0_i32_1 = arith.constant 0 : i32
    return %c0_i32, %c0_i32_0 : i32, i32
  }
  func.func @transform_5(%arg0: i32) -> (i32, i32) {
    %c0_i32 = arith.constant 0 : i32
    %c0_i32_0 = arith.constant 0 : i32
    %c0_i32_1 = arith.constant 0 : i32
    return %c0_i32, %c0_i32_0 : i32, i32
  }
  func.func @transform_6(%arg0: i32) -> (i32, i32) {
    %c0_i32 = arith.constant 0 : i32
    %c0_i32_0 = arith.constant 0 : i32
    %c0_i32_1 = arith.constant 0 : i32
    return %c0_i32, %c0_i32_0 : i32, i32
  }
  func.func @transform_7(%arg0: i32) -> (i32, i32) {
    %c0_i32 = arith.constant 0 : i32
    %c0_i32_0 = arith.constant 0 : i32
    %c0_i32_1 = arith.constant 0 : i32
    return %c0_i32, %c0_i32_0 : i32, i32
  }
  func.func @transform_8(%arg0: i32) -> (i32, i32) {
    %c0_i32 = arith.constant 0 : i32
    %c0_i32_0 = arith.constant 0 : i32
    %c0_i32_1 = arith.constant 0 : i32
    return %c0_i32, %c0_i32_0 : i32, i32
  }
  func.func @transform_9(%arg0: i32) -> (i32, i32) {
    %c0_i32 = arith.constant 0 : i32
    %c0_i32_0 = arith.constant 0 : i32
    %c0_i32_1 = arith.constant 0 : i32
    return %c0_i32, %c0_i32_0 : i32, i32
  }
  func.func @transform_10(%arg0: i32) -> (i32, i32) {
    %c0_i32 = arith.constant 0 : i32
    %c0_i32_0 = arith.constant 0 : i32
    %c0_i32_1 = arith.constant 0 : i32
    return %c0_i32, %c0_i32_0 : i32, i32
  }
  func.func @transform_11(%arg0: i32) -> (i32, i32) {
    %c0_i32 = arith.constant 0 : i32
    %c0_i32_0 = arith.constant 0 : i32
    %c0_i32_1 = arith.constant 0 : i32
    return %c0_i32, %c0_i32_0 : i32, i32
  }
  func.func @transform_12(%arg0: i32) -> (i32, i32) {
    %c0_i32 = arith.constant 0 : i32
    %c0_i32_0 = arith.constant 0 : i32
    %c0_i32_1 = arith.constant 0 : i32
    return %c0_i32, %c0_i32_0 : i32, i32
  }
  func.func @transform_13(%arg0: i32) -> (i32, i32) {
    %c0_i32 = arith.constant 0 : i32
    %c0_i32_0 = arith.constant 0 : i32
    %c0_i32_1 = arith.constant 0 : i32
    return %c0_i32, %c0_i32_0 : i32, i32
  }
  func.func @transform_14(%arg0: i32) -> (i32, i32) {
    %c0_i32 = arith.constant 0 : i32
    %c0_i32_0 = arith.constant 0 : i32
    %c0_i32_1 = arith.constant 0 : i32
    return %c0_i32, %c0_i32_0 : i32, i32
  }
  func.func @transform_15(%arg0: i32) -> (i32, i32) {
    %c0_i32 = arith.constant 0 : i32
    %c0_i32_0 = arith.constant 0 : i32
    %c0_i32_1 = arith.constant 0 : i32
    return %c0_i32, %c0_i32_0 : i32, i32
  }
  func.func @transform_16(%arg0: i32) -> (i32, i32) {
    %c0_i32 = arith.constant 0 : i32
    %c0_i32_0 = arith.constant 0 : i32
    %c0_i32_1 = arith.constant 0 : i32
    return %c0_i32, %c0_i32_0 : i32, i32
  }
  func.func @transform_17(%arg0: i32) -> (i32, i32) {
    %c0_i32 = arith.constant 0 : i32
    %c0_i32_0 = arith.constant 0 : i32
    %c0_i32_1 = arith.constant 0 : i32
    return %c0_i32, %c0_i32_0 : i32, i32
  }
  func.func @transform_18(%arg0: i32) -> (i32, i32) {
    %c0_i32 = arith.constant 0 : i32
    %c0_i32_0 = arith.constant 0 : i32
    %c0_i32_1 = arith.constant 0 : i32
    return %c0_i32, %c0_i32_0 : i32, i32
  }
  func.func @transform_19(%arg0: i32) -> (i32, i32) {
    %c0_i32 = arith.constant 0 : i32
    %c0_i32_0 = arith.constant 0 : i32
    %c0_i32_1 = arith.constant 0 : i32
    return %c0_i32, %c0_i32_0 : i32, i32
  }
  func.func @transform_20(%arg0: i32) -> (i32, i32) {
    %c0_i32 = arith.constant 0 : i32
    %c0_i32_0 = arith.constant 0 : i32
    %c0_i32_1 = arith.constant 0 : i32
    return %c0_i32, %c0_i32_0 : i32, i32
  }
  func.func @transform_21(%arg0: i32) -> (i32, i32) {
    %c0_i32 = arith.constant 0 : i32
    %c0_i32_0 = arith.constant 0 : i32
    %c0_i32_1 = arith.constant 0 : i32
    return %c0_i32, %c0_i32_0 : i32, i32
  }
  func.func @transform_22(%arg0: i32) -> (i32, i32) {
    %c0_i32 = arith.constant 0 : i32
    %c0_i32_0 = arith.constant 0 : i32
    %c0_i32_1 = arith.constant 0 : i32
    return %c0_i32, %c0_i32_0 : i32, i32
  }
  func.func @transform_23(%arg0: i32) -> (i32, i32) {
    %c0_i32 = arith.constant 0 : i32
    %c0_i32_0 = arith.constant 0 : i32
    %c0_i32_1 = arith.constant 0 : i32
    return %c0_i32, %c0_i32_0 : i32, i32
  }
  func.func @transform_24(%arg0: i32) -> (i32, i32) {
    %c0_i32 = arith.constant 0 : i32
    %c0_i32_0 = arith.constant 0 : i32
    %c0_i32_1 = arith.constant 0 : i32
    return %c0_i32, %c0_i32_0 : i32, i32
  }
}

</mosaic_0001>

<llo_original>
// kernel: tpu_custom_call.1
$region0: #{tpu_custom_call.1}
  #allocation0 [shape = 'u32[]', space=smem, size = 0x4, offset = 0x4, fixed_abs, tag = 'smem constant byte address 0x4 - core index']
  #allocation1 [shape = 'u32[144,128]{1,0:T(1,128)}', space=vmem, size = 0x12000, scoped, tag = 'internal scratch']
  #allocation2 [shape = 'f32[10,2,256]{2,1,0:T(2,128)}', space=vmem, size = 0x5000, scoped, tag = 'scratch operand']
  #allocation3 [shape = 'f32[1,1]{1,0:T(1,128)S(1)}', space=vmem, size = 0x200, scoped, tag = 'scoped memory for tpu_custom_call.1']
  %s0 = inlined_call_operand.vmem [shape: s32[16,1], index: 0, kind: input, shape index: {}]
  %s1 = inlined_call_operand.vmem [shape: s32[20,1], index: 1, kind: input, shape index: {}]
  %s2 = inlined_call_operand.vmem [shape: s32[24,1], index: 2, kind: input, shape index: {}]
  %s3 = inlined_call_operand.vmem [shape: f32[64,32], index: 3, kind: input, shape index: {}]
  %s4 = inlined_call_operand.vmem [shape: f32[32,256], index: 4, kind: input, shape index: {}]
  %s5 = inlined_call_operand.vmem [shape: f32[32,256], index: 5, kind: input, shape index: {}]
  %s6 = inlined_call_operand.vmem [shape: f32[1,256], index: 6, kind: input, shape index: {}]
  %s7 = inlined_call_operand.vmem [shape: f32[64,256], index: 7, kind: input, shape index: {}]
  %s8 = inlined_call_operand.vmem [shape: f32[64,32], index: 8, kind: input, shape index: {}]
  %s9 = inlined_call_operand.hbm [shape: f32[1,32], index: 9, kind: input, shape index: {}]
  %s10 = inlined_call_operand.vmem [shape: f32[96,32], index: 10, kind: input, shape index: {}]
  %s11 = inlined_call_operand.vmem [shape: f32[1,32], index: 11, kind: input, shape index: {}]
  %s12 = inlined_call_operand.vmem [shape: f32[64,32], index: 12, kind: input, shape index: {}]
  %s13 = inlined_call_operand.vmem [shape: f32[1,32], index: 13, kind: input, shape index: {}]
  %s14 = inlined_call_operand.vmem [shape: f32[32,32], index: 14, kind: input, shape index: {}]
  %s15 = inlined_call_operand.vmem [shape: f32[1,32], index: 15, kind: input, shape index: {}]
  %s16 = inlined_call_operand.vmem [shape: f32[128,64], index: 16, kind: input, shape index: {}]
  %s17 = inlined_call_operand.vmem [shape: f32[1,64], index: 17, kind: input, shape index: {}]
  %s18 = inlined_call_operand.vmem [shape: f32[64,256], index: 18, kind: input, shape index: {}]
  %s19 = inlined_call_operand.vmem [shape: f32[1,256], index: 19, kind: input, shape index: {}]
  %s20 = inlined_call_operand.vmem [shape: f32[256,128], index: 20, kind: input, shape index: {}]
  %s21 = inlined_call_operand.vmem [shape: f32[1,128], index: 21, kind: input, shape index: {}]
  %s22 = inlined_call_operand.vmem [shape: f32[128,1], index: 22, kind: input, shape index: {}]
  %s23 = inlined_call_operand.<no memory space> [shape: f32[1,1], index: 23, kind: input, shape index: {}]
  %s24 = inlined_call_operand.vmem [shape: f32[2,1], index: 24, kind: output, shape index: {}]
  %s25 = sld [smem:[#allocation0]]
  $region110: #{tpu_custom_call.1} parent=0
    _
  %s27 = ssub.s32 1, %s25
  %s28 = scalar_select 0, %s27, %s25
  %v29 = vstv %s23
  %30 = vst [vmem:[#allocation3] sm:$0x1] %v29
  $region1: #{tpu_custom_call.1} parent=0
    #allocation4 [shape = 'u8[512]{0}', space=vmem, size = 0x400, scoped, tag = 'input window, operand 9, single buffered']
    #allocation5 [shape = 's32[1]{0}', space=sflag, size = 0x4, scoped, tag = 'scoped memory for tpu_custom_call.1']
    %31 = vsyncpa [#allocation5], 0
    // Predicated region
    $region2: #{tpu_custom_call.1} parent=1 // pred_check
      _
    $region3: #{tpu_custom_call.1} parent=1 // pred_check_branch
      %33 = sbr.rel (0) target = $region5
    $region4: #{tpu_custom_call.1} parent=1 // pred_region
      _
    $region5: #{tpu_custom_call.1} parent=1 // pred_fallthru
      _
    // Predicated region
    $region6: #{tpu_custom_call.1} parent=1 // pred_check
      _
    $region7: #{tpu_custom_call.1} parent=1 // pred_check_branch
      %35 = sbr.rel (0) target = $region9
    $region8: #{tpu_custom_call.1} parent=1 // pred_region
      _
    $region9: #{tpu_custom_call.1} parent=1 // pred_fallthru
      _
    // Predicated region
    $region10: #{tpu_custom_call.1} parent=1 // pred_check
      _
    $region11: #{tpu_custom_call.1} parent=1 // pred_check_branch
      %37 = sbr.rel (0) target = $region13
    $region12: #{tpu_custom_call.1} parent=1 // pred_region
      _
    $region13: #{tpu_custom_call.1} parent=1 // pred_fallthru
      _
    // Predicated region
    $region14: #{tpu_custom_call.1} parent=1 // pred_check
      _
    $region15: #{tpu_custom_call.1} parent=1 // pred_check_branch
      %39 = sbr.rel (0) target = $region17
    $region16: #{tpu_custom_call.1} parent=1 // pred_region
      _
    $region17: #{tpu_custom_call.1} parent=1 // pred_fallthru
      _
    // Predicated region
    $region18: #{tpu_custom_call.1} parent=1 // pred_check
      _
    $region19: #{tpu_custom_call.1} parent=1 // pred_check_branch
      %41 = sbr.rel (0) target = $region21
    $region20: #{tpu_custom_call.1} parent=1 // pred_region
      _
    $region21: #{tpu_custom_call.1} parent=1 // pred_fallthru
      _
    // Predicated region
    $region22: #{tpu_custom_call.1} parent=1 // pred_check
      _
    $region23: #{tpu_custom_call.1} parent=1 // pred_check_branch
      %43 = sbr.rel (0) target = $region25
    $region24: #{tpu_custom_call.1} parent=1 // pred_region
      _
    $region25: #{tpu_custom_call.1} parent=1 // pred_fallthru
      _
    // Predicated region
    $region26: #{tpu_custom_call.1} parent=1 // pred_check
      _
    $region27: #{tpu_custom_call.1} parent=1 // pred_check_branch
      %45 = sbr.rel (0) target = $region29
    $region28: #{tpu_custom_call.1} parent=1 // pred_region
      _
    $region29: #{tpu_custom_call.1} parent=1 // pred_fallthru
      _
    // Predicated region
    $region30: #{tpu_custom_call.1} parent=1 // pred_check
      _
    $region31: #{tpu_custom_call.1} parent=1 // pred_check_branch
      %47 = sbr.rel (0) target = $region33
    $region32: #{tpu_custom_call.1} parent=1 // pred_region
      _
    $region33: #{tpu_custom_call.1} parent=1 // pred_fallthru
      _
    // Predicated region
    $region34: #{tpu_custom_call.1} parent=1 // pred_check
      _
    $region35: #{tpu_custom_call.1} parent=1 // pred_check_branch
      %49 = sbr.rel (0) target = $region37
    $region36: #{tpu_custom_call.1} parent=1 // pred_region
      _
    $region37: #{tpu_custom_call.1} parent=1 // pred_fallthru
      _
    // Predicated region
    $region38: #{tpu_custom_call.1} parent=1 // pred_check
      _
    $region39: #{tpu_custom_call.1} parent=1 // pred_check_branch
      %51 = sbr.rel (0) target = $region41
    $region40: #{tpu_custom_call.1} parent=1 // pred_region
      %s53 = ssub.s32 16, 16
      %54 = vsyncadd [#allocation5], %s53
      %s56 = sshll.u32 [#allocation4], 4
      %s57 = int_to_ptr.vmem [resolvable:$true] %s56
      %59 = dma.hbm_to_vmem [thread:$0]  %s9, 16, %s57, [#allocation5]
    $region41: #{tpu_custom_call.1} parent=1 // pred_fallthru
      _
    // Predicated region
    $region42: #{tpu_custom_call.1} parent=1 // pred_check
      _
    $region43: #{tpu_custom_call.1} parent=1 // pred_check_branch
      %61 = sbr.rel (0) target = $region45
    $region44: #{tpu_custom_call.1} parent=1 // pred_region
      _
    $region45: #{tpu_custom_call.1} parent=1 // pred_fallthru
      _
    // Predicated region
    $region46: #{tpu_custom_call.1} parent=1 // pred_check
      _
    $region47: #{tpu_custom_call.1} parent=1 // pred_check_branch
      %63 = sbr.rel (0) target = $region49
    $region48: #{tpu_custom_call.1} parent=1 // pred_region
      _
    $region49: #{tpu_custom_call.1} parent=1 // pred_fallthru
      _
    // Predicated region
    $region50: #{tpu_custom_call.1} parent=1 // pred_check
      _
    $region51: #{tpu_custom_call.1} parent=1 // pred_check_branch
      %65 = sbr.rel (0) target = $region53
    $region52: #{tpu_custom_call.1} parent=1 // pred_region
      _
    $region53: #{tpu_custom_call.1} parent=1 // pred_fallthru
      _
    // Predicated region
    $region54: #{tpu_custom_call.1} parent=1 // pred_check
      _
    $region55: #{tpu_custom_call.1} parent=1 // pred_check_branch
      %67 = sbr.rel (0) target = $region57
    $region56: #{tpu_custom_call.1} parent=1 // pred_region
      _
    $region57: #{tpu_custom_call.1} parent=1 // pred_fallthru
      _
    // Predicated region
    $region58: #{tpu_custom_call.1} parent=1 // pred_check
      _
    $region59: #{tpu_custom_call.1} parent=1 // pred_check_branch
      %69 = sbr.rel (0) target = $region61
    $region60: #{tpu_custom_call.1} parent=1 // pred_region
      _
    $region61: #{tpu_custom_call.1} parent=1 // pred_fallthru
      _
    // Predicated region
    $region62: #{tpu_custom_call.1} parent=1 // pred_check
      _
    $region63: #{tpu_custom_call.1} parent=1 // pred_check_branch
      %71 = sbr.rel (0) target = $region65
    $region64: #{tpu_custom_call.1} parent=1 // pred_region
      _
    $region65: #{tpu_custom_call.1} parent=1 // pred_fallthru
      _
    // Predicated region
    $region66: #{tpu_custom_call.1} parent=1 // pred_check
      _
    $region67: #{tpu_custom_call.1} parent=1 // pred_check_branch
      %73 = sbr.rel (0) target = $region69
    $region68: #{tpu_custom_call.1} parent=1 // pred_region
      _
    $region69: #{tpu_custom_call.1} parent=1 // pred_fallthru
      _
    // Predicated region
    $region70: #{tpu_custom_call.1} parent=1 // pred_check
      _
    $region71: #{tpu_custom_call.1} parent=1 // pred_check_branch
      %75 = sbr.rel (0) target = $region73
    $region72: #{tpu_custom_call.1} parent=1 // pred_region
      _
    $region73: #{tpu_custom_call.1} parent=1 // pred_fallthru
      _
    // Predicated region
    $region74: #{tpu_custom_call.1} parent=1 // pred_check
      _
    $region75: #{tpu_custom_call.1} parent=1 // pred_check_branch
      %77 = sbr.rel (0) target = $region77
    $region76: #{tpu_custom_call.1} parent=1 // pred_region
      _
    $region77: #{tpu_custom_call.1} parent=1 // pred_fallthru
      _
    // Predicated region
    $region78: #{tpu_custom_call.1} parent=1 // pred_check
      _
    $region79: #{tpu_custom_call.1} parent=1 // pred_check_branch
      %79 = sbr.rel (0) target = $region81
    $region80: #{tpu_custom_call.1} parent=1 // pred_region
      _
    $region81: #{tpu_custom_call.1} parent=1 // pred_fallthru
      _
    // Predicated region
    $region82: #{tpu_custom_call.1} parent=1 // pred_check
      _
    $region83: #{tpu_custom_call.1} parent=1 // pred_check_branch
      %81 = sbr.rel (0) target = $region85
    $region84: #{tpu_custom_call.1} parent=1 // pred_region
      _
    $region85: #{tpu_custom_call.1} parent=1 // pred_fallthru
      _
    // Predicated region
    $region86: #{tpu_custom_call.1} parent=1 // pred_check
      _
    $region87: #{tpu_custom_call.1} parent=1 // pred_check_branch
      %83 = sbr.rel (0) target = $region89
    $region88: #{tpu_custom_call.1} parent=1 // pred_region
      _
    $region89: #{tpu_custom_call.1} parent=1 // pred_fallthru
      _
    // Predicated region
    $region90: #{tpu_custom_call.1} parent=1 // pred_check
      _
    $region91: #{tpu_custom_call.1} parent=1 // pred_check_branch
      %85 = sbr.rel (0) target = $region93
    $region92: #{tpu_custom_call.1} parent=1 // pred_region
      _
    $region93: #{tpu_custom_call.1} parent=1 // pred_fallthru
      _
    // Predicated region
    $region94: #{tpu_custom_call.1} parent=1 // pred_check
      _
    $region95: #{tpu_custom_call.1} parent=1 // pred_check_branch
      %87 = sbr.rel (0) target = $region97
    $region96: #{tpu_custom_call.1} parent=1 // pred_region
      _
    $region97: #{tpu_custom_call.1} parent=1 // pred_fallthru
      _
    // Predicated region
    $region98: #{tpu_custom_call.1} parent=1 // pred_check
      _
    $region99: #{tpu_custom_call.1} parent=1 // pred_check_branch
      %89 = sbr.rel (0) target = $region101
    $region100: #{tpu_custom_call.1} parent=1 // pred_region
      %90 = dma.done [#allocation5], 16
    $region101: #{tpu_custom_call.1} parent=1 // pred_fallthru
      _
    %v91 = vld [vmem:[%s3] sm:$0xff]
    %v92 = vld [vmem:[%s3 + $0x8] sm:$0xff]
    %v93 = vld [vmem:[%s3 + $0x10] sm:$0xff]
    %v94 = vld [vmem:[%s3 + $0x18] sm:$0xff]
    %v95 = vld [vmem:[%s3 + $0x20] sm:$0xff]
    %v96 = vld [vmem:[%s3 + $0x28] sm:$0xff]
    %v97 = vld [vmem:[%s3 + $0x30] sm:$0xff]
    %v98 = vld [vmem:[%s3 + $0x38] sm:$0xff]
    %v99 = vld [vmem:[%s1] sm:$0xff]
    %v100 = vld [vmem:[%s1 + $0x8] sm:$0xff]
    %v101 = vld [vmem:[%s1 + $0x10] sm:$0xf]
    %v102 = vlaneseq
    %v103 = vand.u32 %v102, 127
    %104 = vset.pattern.permute.xlu0 0
    %105 = vperm.xlu0 %104, %v99
    %v106 = vpop.permute.xlu0 %105
    %107 = vset.pattern.permute.xlu0 0
    %108 = vperm.xlu0 %107, %v100
    %v109 = vpop.permute.xlu0 %108
    %110 = vset.pattern.permute.xlu0 0
    %111 = vperm.xlu0 %110, %v101
    %v112 = vpop.permute.xlu0 %111
    %vm113 = vcmp.eq.s32.totalorder %v103, %v106
    %vm114 = vcmp.eq.s32.totalorder %v103, %v109
    %vm115 = vcmp.eq.s32.totalorder %v103, %v112
    %v116 = vsel %vm113, 1, 0
    %v117 = vsel %vm114, 1, 0
    %v118 = vsel %vm115, 1, 0
    %v119 = vcvt.s32.f32 %v116
    %v120 = vcvt.s32.f32 %v117
    %v121 = vcvt.s32.f32 %v118
    %vm122 = vcmask 523264
    %v124 = vsel %vm122, %v119, 0
    %v127 = vsel %vm122, %v120, 0
    %v130 = vsel %vm122, %v121, 0
    %132 = vmatprep.subr.mxu0 0.0
    %133 = vmatpush1.msra.mxu0 %v91
    %134 = vmatprep.subr.mxu0 0.0
    %135 = vmatpush1.msra.mxu0 %v92
    %136 = vmatprep.subr.mxu0 0.0
    %137 = vmatpush1.msra.mxu0 %v93
    %138 = vmatprep.subr.mxu0 0.0
    %139 = vmatpush1.msra.mxu0 %v94
    %140 = vmatprep.subr.mxu0 0.0
    %141 = vmatpush1.msra.mxu0 %v95
    %142 = vmatprep.subr.mxu0 0.0
    %143 = vmatpush1.msra.mxu0 %v96
    %144 = vmatprep.subr.mxu0 0.0
    %145 = vmatpush1.msra.mxu0 %v97
    %146 = vmatprep.subr.mxu0 0.0
    %147 = vmatpush1.msra.mxu0 %v98
    %148 = vmatprep.subr.mxu0 0.0
    %149 = vmatpush1.msra.mxu0 0.0
    %150 = vmatprep.subr.mxu0 0.0
    %151 = vmatpush1.msra.mxu0 0.0
    %152 = vmatprep.subr.mxu0 0.0
    %153 = vmatpush1.msra.mxu0 0.0
    %154 = vmatprep.subr.mxu0 0.0
    %155 = vmatpush1.msra.mxu0 0.0
    %156 = vmatprep.subr.mxu0 0.0
    %157 = vmatpush1.msra.mxu0 0.0
    %158 = vmatprep.subr.mxu0 0.0
    %159 = vmatpush1.msra.mxu0 0.0
    %160 = vmatprep.subr.mxu0 0.0
    %161 = vmatpush1.msra.mxu0 0.0
    %162 = vmatprep.subr.mxu0 0.0
    %163 = vmatpush1.msra.mxu0 0.0
    %164 = vmatprep.subr.mxu0 0.0
    %165 = vmatpush1.msra.mxu0 0.0
    %166 = vmatprep.subr.mxu0 0.0
    %167 = vmatpush1.msra.mxu0 0.0
    %168 = vmatprep.subr.mxu0 0.0
    %169 = vmatpush1.msra.mxu0 0.0
    %170 = vmatprep.subr.mxu0 0.0
    %171 = vmatpush1.msra.mxu0 0.0
    %172 = vmatprep.subr.mxu0 0.0
    %173 = vmatpush1.msra.mxu0 0.0
    %174 = vmatprep.subr.mxu0 0.0
    %175 = vmatpush1.msra.mxu0 0.0
    %176 = vmatprep.subr.mxu0 0.0
    %177 = vmatpush1.msra.mxu0 0.0
    %178 = vmatprep.subr.mxu0 0.0
    %179 = vmatpush1.msra.mxu0 0.0
    %180 = vmatprep.subr.mxu0 0.0
    %181 = vmatpush1.msra.mxu0 0.0
    %182 = vmatprep.subr.mxu0 0.0
    %183 = vmatpush1.msra.mxu0 0.0
    %184 = vmatprep.subr.mxu0 0.0
    %185 = vmatpush1.msra.mxu0 0.0
    %186 = vmatprep.subr.mxu0 0.0
    %187 = vmatpush1.msra.mxu0 0.0
    %188 = vmatprep.subr.mxu0 0.0
    %189 = vmatpush1.msra.mxu0 0.0
    %190 = vmatprep.subr.mxu0 0.0
    %191 = vmatpush1.msra.mxu0 0.0
    %192 = vmatprep.subr.mxu0 0.0
    %193 = vmatpush1.msra.mxu0 0.0
    %194 = vmatprep.subr.mxu0 0.0
    %195 = vmatpush1.msra.mxu0 0.0
    %196 = vmatprep.mubr.f32.mxu0 0.0
    %197 = vmatmul.mubr.f32.gmra.mrb[0].mxu0 %v124
    %v198 = vpop.f32.mrb[0].mxu0
    %v199 = vadd.f32 0.0, %v198
    %v200 = vpop.f32.mrb[0].mxu0
    %201 = vmatprep.mubr.f32.mxu0 0.0
    %202 = vmatmul.mubr.f32.gmra.mrb[0].mxu0 %v127
    %v203 = vpop.f32.mrb[0].mxu0
    %v204 = vadd.f32 0.0, %v203
    %v205 = vpop.f32.mrb[0].mxu0
    %206 = vmatprep.mubr.f32.mxu0 0.0
    %207 = vmatmul.mubr.f32.gmra.mrb[0].mxu0 %v130
    %v208 = vpop.f32.mrb[0].mxu0
    %v209 = vadd.f32 0.0, %v208
    %v210 = vpop.f32.mrb[0].mxu0
    %211 = vdwg.mxu0
    %v212 = vld [vmem:[%s4] sm:$0xff]
    %v213 = vld [vmem:[%s4 + $0x8] sm:$0xff]
    %v214 = vld [vmem:[%s4 + $0x10] sm:$0xff]
    %v215 = vld [vmem:[%s4 + $0x18] sm:$0xff]
    %v216 = vld [vmem:[%s4 + $0x20] sm:$0xff]
    %v217 = vld [vmem:[%s4 + $0x28] sm:$0xff]
    %v218 = vld [vmem:[%s4 + $0x30] sm:$0xff]
    %v219 = vld [vmem:[%s4 + $0x38] sm:$0xff]
    %v220 = vld [vmem:[%s6] sm:$0x3]
    %v222 = vlaneseq
    %v223 = vshrl.u32 %v222, 7
    %v224 = vsub.s32 0, %v223
    %v225 = vrot.slane %v220, %v224
    %v226 = vlaneseq
    %v227 = vshrl.u32 %v226, 7
    %v228 = vsub.s32 1, %v227
    %v229 = vrot.slane %v220, %v228
    %vm232 = vcmask 261120
    %v234 = vsel %vm232, %v199, 0
    %v237 = vsel %vm232, %v204, 0
    %v240 = vsel %vm232, %v209, 0
    %242 = vmatprep.subr.mxu0 %v213
    %243 = vmatpush1.msra.mxu0 %v212
    %244 = vmatprep.subr.mxu0 %v215
    %245 = vmatpush1.msra.mxu0 %v214
    %246 = vmatprep.subr.mxu0 %v217
    %247 = vmatpush1.msra.mxu0 %v216
    %248 = vmatprep.subr.mxu0 %v219
    %249 = vmatpush1.msra.mxu0 %v218
    %250 = vmatprep.subr.mxu0 0.0
    %251 = vmatpush1.msra.mxu0 0.0
    %252 = vmatprep.subr.mxu0 0.0
    %253 = vmatpush1.msra.mxu0 0.0
    %254 = vmatprep.subr.mxu0 0.0
    %255 = vmatpush1.msra.mxu0 0.0
    %256 = vmatprep.subr.mxu0 0.0
    %257 = vmatpush1.msra.mxu0 0.0
    %258 = vmatprep.subr.mxu0 0.0
    %259 = vmatpush1.msra.mxu0 0.0
    %260 = vmatprep.subr.mxu0 0.0
    %261 = vmatpush1.msra.mxu0 0.0
    %262 = vmatprep.subr.mxu0 0.0
    %263 = vmatpush1.msra.mxu0 0.0
    %264 = vmatprep.subr.mxu0 0.0
    %265 = vmatpush1.msra.mxu0 0.0
    %266 = vmatprep.subr.mxu0 0.0
    %267 = vmatpush1.msra.mxu0 0.0
    %268 = vmatprep.subr.mxu0 0.0
    %269 = vmatpush1.msra.mxu0 0.0
    %270 = vmatprep.subr.mxu0 0.0
    %271 = vmatpush1.msra.mxu0 0.0
    %272 = vmatprep.subr.mxu0 0.0
    %273 = vmatpush1.msra.mxu0 0.0
    %274 = vmatprep.subr.mxu0 0.0
    %275 = vmatpush1.msra.mxu0 0.0
    %276 = vmatprep.subr.mxu0 0.0
    %277 = vmatpush1.msra.mxu0 0.0
    %278 = vmatprep.subr.mxu0 0.0
    %279 = vmatpush1.msra.mxu0 0.0
    %280 = vmatprep.subr.mxu0 0.0
    %281 = vmatpush1.msra.mxu0 0.0
    %282 = vmatprep.subr.mxu0 0.0
    %283 = vmatpush1.msra.mxu0 0.0
    %284 = vmatprep.subr.mxu0 0.0
    %285 = vmatpush1.msra.mxu0 0.0
    %286 = vmatprep.subr.mxu0 0.0
    %287 = vmatpush1.msra.mxu0 0.0
    %288 = vmatprep.subr.mxu0 0.0
    %289 = vmatpush1.msra.mxu0 0.0
    %290 = vmatprep.subr.mxu0 0.0
    %291 = vmatpush1.msra.mxu0 0.0
    %292 = vmatprep.subr.mxu0 0.0
    %293 = vmatpush1.msra.mxu0 0.0
    %294 = vmatprep.subr.mxu0 0.0
    %295 = vmatpush1.msra.mxu0 0.0
    %296 = vmatprep.subr.mxu0 0.0
    %297 = vmatpush1.msra.mxu0 0.0
    %298 = vmatprep.subr.mxu0 0.0
    %299 = vmatpush1.msra.mxu0 0.0
    %300 = vmatprep.subr.mxu0 0.0
    %301 = vmatpush1.msra.mxu0 0.0
    %302 = vmatprep.subr.mxu0 0.0
    %303 = vmatpush1.msra.mxu0 0.0
    %304 = vmatprep.subr.mxu0 0.0
    %305 = vmatpush1.msra.mxu0 0.0
    %306 = vmatprep.mubr.f32.mxu0 0.0
    %307 = vmatmul.mubr.f32.gmra.mrb[0].mxu0 %v234
    %v308 = vpop.f32.mrb[0].mxu0
    %v309 = vadd.f32 %v225, %v308
    %v310 = vpop.f32.mrb[0].mxu0
    %v311 = vadd.f32 %v229, %v310
    %312 = vmatprep.mubr.f32.mxu0 0.0
    %313 = vmatmul.mubr.f32.gmra.mrb[0].mxu0 %v237
    %v314 = vpop.f32.mrb[0].mxu0
    %v315 = vadd.f32 %v225, %v314
    %v316 = vpop.f32.mrb[0].mxu0
    %v317 = vadd.f32 %v229, %v316
    %318 = vmatprep.mubr.f32.mxu0 0.0
    %319 = vmatmul.mubr.f32.gmra.mrb[0].mxu0 %v240
    %v320 = vpop.f32.mrb[0].mxu0
    %v321 = vadd.f32 %v225, %v320
    %v322 = vpop.f32.mrb[0].mxu0
    %v323 = vadd.f32 %v229, %v322
    %324 = vdwg.mxu0
    %v331 = vcombine.low %v309, %v311
    %v332 = vcombine.high %v309, %v311
    %v334 = vunpack.c.l.s4 1983009808
    %v335 = vunpack.c.0.s8 %v334
    %v336 = vlaneseq
    %v337 = vshrl.u32 %v336, 7
    %v338 = vsub.s32 %v335, %v337
    %v339 = vrot.slane %v331, %v338
    %v341 = vunpack.c.l.s4 1983009808
    %v342 = vunpack.c.0.s8 %v341
    %v343 = vlaneseq
    %v344 = vshrl.u32 %v343, 7
    %v345 = vsub.s32 %v342, %v344
    %v346 = vrot.slane %v332, %v345
    %v347 = vcombine.high %v339, %v339
    %v348 = vcombine.high %v346, %v346
    %v349 = vcombine.low %v315, %v317
    %v350 = vcombine.high %v315, %v317
    %v352 = vunpack.c.l.s4 1983009808
    %v353 = vunpack.c.0.s8 %v352
    %v354 = vlaneseq
    %v355 = vshrl.u32 %v354, 7
    %v356 = vsub.s32 %v353, %v355
    %v357 = vrot.slane %v349, %v356
    %v359 = vunpack.c.l.s4 1983009808
    %v360 = vunpack.c.0.s8 %v359
    %v361 = vlaneseq
    %v362 = vshrl.u32 %v361, 7
    %v363 = vsub.s32 %v360, %v362
    %v364 = vrot.slane %v350, %v363
    %v365 = vcombine.high %v357, %v357
    %v366 = vcombine.high %v364, %v364
    %v367 = vcombine.low %v321, %v323
    %v369 = vunpack.c.l.s4 1983009808
    %v370 = vunpack.c.0.s8 %v369
    %v371 = vlaneseq
    %v372 = vshrl.u32 %v371, 7
    %v373 = vsub.s32 %v370, %v372
    %v374 = vrot.slane %v367, %v373
    %v375 = vcombine.high %v374, %v374
    %v386 = vld [vmem:[%s5] sm:$0xff]
    %v387 = vld [vmem:[%s5 + $0x8] sm:$0xff]
    %v388 = vld [vmem:[%s5 + $0x10] sm:$0xff]
    %v389 = vld [vmem:[%s5 + $0x18] sm:$0xff]
    %v390 = vld [vmem:[%s5 + $0x20] sm:$0xff]
    %v391 = vld [vmem:[%s5 + $0x28] sm:$0xff]
    %v392 = vld [vmem:[%s5 + $0x30] sm:$0xff]
    %v393 = vld [vmem:[%s5 + $0x38] sm:$0xff]
    %394 = vmatprep.subr.mxu0 %v387
    %395 = vmatpush1.msra.mxu0 %v386
    %396 = vmatprep.subr.mxu0 %v389
    %397 = vmatpush1.msra.mxu0 %v388
    %398 = vmatprep.subr.mxu0 %v391
    %399 = vmatpush1.msra.mxu0 %v390
    %400 = vmatprep.subr.mxu0 %v393
    %401 = vmatpush1.msra.mxu0 %v392
    %402 = vmatprep.subr.mxu0 0.0
    %403 = vmatpush1.msra.mxu0 0.0
    %404 = vmatprep.subr.mxu0 0.0
    %405 = vmatpush1.msra.mxu0 0.0
    %406 = vmatprep.subr.mxu0 0.0
    %407 = vmatpush1.msra.mxu0 0.0
    %408 = vmatprep.subr.mxu0 0.0
    %409 = vmatpush1.msra.mxu0 0.0
    %410 = vmatprep.subr.mxu0 0.0
    %411 = vmatpush1.msra.mxu0 0.0
    %412 = vmatprep.subr.mxu0 0.0
    %413 = vmatpush1.msra.mxu0 0.0
    %414 = vmatprep.subr.mxu0 0.0
    %415 = vmatpush1.msra.mxu0 0.0
    %416 = vmatprep.subr.mxu0 0.0
    %417 = vmatpush1.msra.mxu0 0.0
    %418 = vmatprep.subr.mxu0 0.0
    %419 = vmatpush1.msra.mxu0 0.0
    %420 = vmatprep.subr.mxu0 0.0
    %421 = vmatpush1.msra.mxu0 0.0
    %422 = vmatprep.subr.mxu0 0.0
    %423 = vmatpush1.msra.mxu0 0.0
    %424 = vmatprep.subr.mxu0 0.0
    %425 = vmatpush1.msra.mxu0 0.0
    %426 = vmatprep.subr.mxu0 0.0
    %427 = vmatpush1.msra.mxu0 0.0
    %428 = vmatprep.subr.mxu0 0.0
    %429 = vmatpush1.msra.mxu0 0.0
    %430 = vmatprep.subr.mxu0 0.0
    %431 = vmatpush1.msra.mxu0 0.0
    %432 = vmatprep.subr.mxu0 0.0
    %433 = vmatpush1.msra.mxu0 0.0
    %434 = vmatprep.subr.mxu0 0.0
    %435 = vmatpush1.msra.mxu0 0.0
    %436 = vmatprep.subr.mxu0 0.0
    %437 = vmatpush1.msra.mxu0 0.0
    %438 = vmatprep.subr.mxu0 0.0
    %439 = vmatpush1.msra.mxu0 0.0
    %440 = vmatprep.subr.mxu0 0.0
    %441 = vmatpush1.msra.mxu0 0.0
    %442 = vmatprep.subr.mxu0 0.0
    %443 = vmatpush1.msra.mxu0 0.0
    %444 = vmatprep.subr.mxu0 0.0
    %445 = vmatpush1.msra.mxu0 0.0
    %446 = vmatprep.subr.mxu0 0.0
    %447 = vmatpush1.msra.mxu0 0.0
    %448 = vmatprep.subr.mxu0 0.0
    %449 = vmatpush1.msra.mxu0 0.0
    %450 = vmatprep.subr.mxu0 0.0
    %451 = vmatpush1.msra.mxu0 0.0
    %452 = vmatprep.subr.mxu0 0.0
    %453 = vmatpush1.msra.mxu0 0.0
    %454 = vmatprep.subr.mxu0 0.0
    %455 = vmatpush1.msra.mxu0 0.0
    %456 = vmatprep.subr.mxu0 0.0
    %457 = vmatpush1.msra.mxu0 0.0
    %458 = vmatprep.mubr.f32.mxu0 0.0
    %459 = vmatmul.mubr.f32.gmra.mrb[0].mxu0 %v234
    %v460 = vpop.f32.mrb[0].mxu0
    %v461 = vadd.f32 0.0, %v460
    %v462 = vpop.f32.mrb[0].mxu0
    %v463 = vadd.f32 0.0, %v462
    %464 = vmatprep.mubr.f32.mxu0 0.0
    %465 = vmatmul.mubr.f32.gmra.mrb[0].mxu0 %v237
    %v466 = vpop.f32.mrb[0].mxu0
    %v467 = vadd.f32 0.0, %v466
    %v468 = vpop.f32.mrb[0].mxu0
    %v469 = vadd.f32 0.0, %v468
    %470 = vmatprep.mubr.f32.mxu0 0.0
    %471 = vmatmul.mubr.f32.gmra.mrb[0].mxu0 %v240
    %v472 = vpop.f32.mrb[0].mxu0
    %v473 = vadd.f32 0.0, %v472
    %v474 = vpop.f32.mrb[0].mxu0
    %v475 = vadd.f32 0.0, %v474
    %476 = vdwg.mxu0
    %v483 = vcombine.low %v461, %v463
    %v484 = vcombine.high %v461, %v463
    %v486 = vunpack.c.l.s4 1983009808
    %v487 = vunpack.c.0.s8 %v486
    %v488 = vlaneseq
    %v489 = vshrl.u32 %v488, 7
    %v490 = vsub.s32 %v487, %v489
    %v491 = vrot.slane %v483, %v490
    %v493 = vunpack.c.l.s4 1983009808
    %v494 = vunpack.c.0.s8 %v493
    %v495 = vlaneseq
    %v496 = vshrl.u32 %v495, 7
    %v497 = vsub.s32 %v494, %v496
    %v498 = vrot.slane %v484, %v497
    %v499 = vcombine.high %v491, %v491
    %v500 = vcombine.high %v498, %v498
    %v501 = vcombine.low %v467, %v469
    %v502 = vcombine.high %v467, %v469
    %v504 = vunpack.c.l.s4 1983009808
    %v505 = vunpack.c.0.s8 %v504
    %v506 = vlaneseq
    %v507 = vshrl.u32 %v506, 7
    %v508 = vsub.s32 %v505, %v507
    %v509 = vrot.slane %v501, %v508
    %v511 = vunpack.c.l.s4 1983009808
    %v512 = vunpack.c.0.s8 %v511
    %v513 = vlaneseq
    %v514 = vshrl.u32 %v513, 7
    %v515 = vsub.s32 %v512, %v514
    %v516 = vrot.slane %v502, %v515
    %v517 = vcombine.high %v509, %v509
    %v518 = vcombine.high %v516, %v516
    %v519 = vcombine.low %v473, %v475
    %v521 = vunpack.c.l.s4 1983009808
    %v522 = vunpack.c.0.s8 %v521
    %v523 = vlaneseq
    %v524 = vshrl.u32 %v523, 7
    %v525 = vsub.s32 %v522, %v524
    %v526 = vrot.slane %v519, %v525
    %v527 = vcombine.high %v526, %v526
    %v528 = vrot.slane %v509, 7
    %v529 = vrot.slane %v528, 2
    %v530 = vrot.slane %v527, 7
    %v531 = vrot.slane %v530, 2
    %v534 = vadd.f32 %v339, %v529
    %v535 = vadd.f32 %v365, %v531
    %vm538 = vcmask 1044484
    %v539 = vsel %vm538, %v534, %v534
    %vm540 = vcmask 1046534
    %v541 = vsel %vm540, %v534, %v539
    %v542 = vrot.slane %v535, 7
    %vm543 = vcmask 1041409
    %v544 = vsel %vm543, %v542, %v541
    %vm545 = vcmask 1043459
    %v546 = vsel %vm545, %v542, %v544
    %vm547 = vcmask 1045509
    %v548 = vsel %vm547, %v542, %v546
    %vm549 = vcmask 1047559
    %v550 = vsel %vm549, %v542, %v548
    %552 = vst [vmem:[#allocation2] sm:$0xf] %v550
    %v555 = vadd.f32 %v339, %v528
    %v556 = vadd.f32 %v365, %v530
    %v559 = vrot.slane %v555, 1
    %v560 = vsel %vm538, %v559, %v559
    %v561 = vsel %vm540, %v559, %v560
    %v562 = vsel %vm543, %v556, %v561
    %v563 = vsel %vm545, %v556, %v562
    %v564 = vsel %vm547, %v556, %v563
    %v565 = vsel %vm549, %v556, %v564
    %s567 = scalar_lea.vmem [#allocation2], 4
    %568 = vst [vmem:[%s567] sm:$0xf] %v565
    %v569 = vrot.slane %v500, 7
    %v570 = vrot.slane %v569, 2
    %v571 = vrot.slane %v526, 7
    %v572 = vrot.slane %v571, 2
    %v575 = vadd.f32 %v347, %v570
    %v576 = vadd.f32 %v364, %v572
    %v579 = vsel %vm538, %v575, %v575
    %v580 = vsel %vm540, %v575, %v579
    %v581 = vrot.slane %v576, 7
    %v582 = vsel %vm543, %v581, %v580
    %v583 = vsel %vm545, %v581, %v582
    %v584 = vsel %vm547, %v581, %v583
    %v585 = vsel %vm549, %v581, %v584
    %s587 = scalar_lea.vmem [#allocation2], 8
    %588 = vst [vmem:[%s587] sm:$0xf] %v585
    %v591 = vadd.f32 %v347, %v569
    %v592 = vadd.f32 %v364, %v571
    %v595 = vrot.slane %v591, 1
    %v596 = vsel %vm538, %v595, %v595
    %v597 = vsel %vm540, %v595, %v596
    %v598 = vsel %vm543, %v592, %v597
    %v599 = vsel %vm545, %v592, %v598
    %v600 = vsel %vm547, %v592, %v599
    %v601 = vsel %vm549, %v592, %v600
    %s603 = scalar_lea.vmem [#allocation2], 12
    %604 = vst [vmem:[%s603] sm:$0xf] %v601
    %v605 = vrot.slane %v498, 7
    %v606 = vrot.slane %v605, 2
    %v607 = vrot.slane %v518, 7
    %v608 = vrot.slane %v607, 2
    %v611 = vadd.f32 %v346, %v606
    %v612 = vadd.f32 %v366, %v608
    %v615 = vsel %vm538, %v611, %v611
    %v616 = vsel %vm540, %v611, %v615
    %v617 = vrot.slane %v612, 7
    %v618 = vsel %vm543, %v617, %v616
    %v619 = vsel %vm545, %v617, %v618
    %v620 = vsel %vm547, %v617, %v619
    %v621 = vsel %vm549, %v617, %v620
    %s623 = scalar_lea.vmem [#allocation2], 16
    %624 = vst [vmem:[%s623] sm:$0xf] %v621
    %v627 = vadd.f32 %v346, %v605
    %v628 = vadd.f32 %v366, %v607
    %v631 = vrot.slane %v627, 1
    %v632 = vsel %vm538, %v631, %v631
    %v633 = vsel %vm540, %v631, %v632
    %v634 = vsel %vm543, %v628, %v633
    %v635 = vsel %vm545, %v628, %v634
    %v636 = vsel %vm547, %v628, %v635
    %v637 = vsel %vm549, %v628, %v636
    %s639 = scalar_lea.vmem [#allocation2], 20
    %640 = vst [vmem:[%s639] sm:$0xf] %v637
    %v641 = vrot.slane %v499, 7
    %v642 = vrot.slane %v641, 2
    %v643 = vrot.slane %v516, 7
    %v644 = vrot.slane %v643, 2
    %v647 = vadd.f32 %v348, %v642
    %v648 = vadd.f32 %v374, %v644
    %v651 = vsel %vm538, %v647, %v647
    %v652 = vsel %vm540, %v647, %v651
    %v653 = vrot.slane %v648, 7
    %v654 = vsel %vm543, %v653, %v652
    %v655 = vsel %vm545, %v653, %v654
    %v656 = vsel %vm547, %v653, %v655
    %v657 = vsel %vm549, %v653, %v656
    %s659 = scalar_lea.vmem [#allocation2], 24
    %660 = vst [vmem:[%s659] sm:$0xf] %v657
    %v663 = vadd.f32 %v348, %v641
    %v664 = vadd.f32 %v374, %v643
    %v667 = vrot.slane %v663, 1
    %v668 = vsel %vm538, %v667, %v667
    %v669 = vsel %vm540, %v667, %v668
    %v670 = vsel %vm543, %v664, %v669
    %v671 = vsel %vm545, %v664, %v670
    %v672 = vsel %vm547, %v664, %v671
    %v673 = vsel %vm549, %v664, %v672
    %s675 = scalar_lea.vmem [#allocation2], 28
    %676 = vst [vmem:[%s675] sm:$0xf] %v673
    %v677 = vrot.slane %v491, 7
    %v678 = vrot.slane %v677, 2
    %v679 = vrot.slane %v517, 7
    %v680 = vrot.slane %v679, 2
    %v683 = vadd.f32 %v357, %v678
    %v684 = vadd.f32 %v375, %v680
    %v687 = vsel %vm538, %v683, %v683
    %v688 = vsel %vm540, %v683, %v687
    %v689 = vrot.slane %v684, 7
    %v690 = vsel %vm543, %v689, %v688
    %v691 = vsel %vm545, %v689, %v690
    %v692 = vsel %vm547, %v689, %v691
    %v693 = vsel %vm549, %v689, %v692
    %s695 = scalar_lea.vmem [#allocation2], 32
    %696 = vst [vmem:[%s695] sm:$0xf] %v693
    %v699 = vadd.f32 %v357, %v677
    %v700 = vadd.f32 %v375, %v679
    %v703 = vrot.slane %v699, 1
    %v704 = vsel %vm538, %v703, %v703
    %v705 = vsel %vm540, %v703, %v704
    %v706 = vsel %vm543, %v700, %v705
    %v707 = vsel %vm545, %v700, %v706
    %v708 = vsel %vm547, %v700, %v707
    %v709 = vsel %vm549, %v700, %v708
    %s711 = scalar_lea.vmem [#allocation2], 36
    %712 = vst [vmem:[%s711] sm:$0xf] %v709
    %v713 = vld [vmem:[%s7] sm:$0xff]
    %v714 = vld [vmem:[%s7 + $0x8] sm:$0xff]
    %v715 = vld [vmem:[%s7 + $0x10] sm:$0xff]
    %v716 = vld [vmem:[%s7 + $0x18] sm:$0xff]
    %v717 = vld [vmem:[%s7 + $0x20] sm:$0xff]
    %v718 = vld [vmem:[%s7 + $0x28] sm:$0xff]
    %v719 = vld [vmem:[%s7 + $0x30] sm:$0xff]
    %v720 = vld [vmem:[%s7 + $0x38] sm:$0xff]
    %v721 = vld [vmem:[%s7 + $0x40] sm:$0xff]
    %v722 = vld [vmem:[%s7 + $0x48] sm:$0xff]
    %v723 = vld [vmem:[%s7 + $0x50] sm:$0xff]
    %v724 = vld [vmem:[%s7 + $0x58] sm:$0xff]
    %v725 = vld [vmem:[%s7 + $0x60] sm:$0xff]
    %v726 = vld [vmem:[%s7 + $0x68] sm:$0xff]
    %v727 = vld [vmem:[%s7 + $0x70] sm:$0xff]
    %v728 = vld [vmem:[%s7 + $0x78] sm:$0xff]
    %v729 = vld [vmem:[#allocation2] sm:$0xf]
    %v731 = vsel %vm122, 0.0, 0
    %733 = vmatprep.subr.mxu0 %v714
    %734 = vmatpush1.msra.mxu0 %v713
    %735 = vmatprep.subr.mxu0 %v716
    %736 = vmatpush1.msra.mxu0 %v715
    %737 = vmatprep.subr.mxu0 %v718
    %738 = vmatpush1.msra.mxu0 %v717
    %739 = vmatprep.subr.mxu0 %v720
    %740 = vmatpush1.msra.mxu0 %v719
    %741 = vmatprep.subr.mxu0 %v722
    %742 = vmatpush1.msra.mxu0 %v721
    %743 = vmatprep.subr.mxu0 %v724
    %744 = vmatpush1.msra.mxu0 %v723
    %745 = vmatprep.subr.mxu0 %v726
    %746 = vmatpush1.msra.mxu0 %v725
    %747 = vmatprep.subr.mxu0 %v728
    %748 = vmatpush1.msra.mxu0 %v727
    %749 = vmatprep.subr.mxu0 0.0
    %750 = vmatpush1.msra.mxu0 0.0
    %751 = vmatprep.subr.mxu0 0.0
    %752 = vmatpush1.msra.mxu0 0.0
    %753 = vmatprep.subr.mxu0 0.0
    %754 = vmatpush1.msra.mxu0 0.0
    %755 = vmatprep.subr.mxu0 0.0
    %756 = vmatpush1.msra.mxu0 0.0
    %757 = vmatprep.subr.mxu0 0.0
    %758 = vmatpush1.msra.mxu0 0.0
    %759 = vmatprep.subr.mxu0 0.0
    %760 = vmatpush1.msra.mxu0 0.0
    %761 = vmatprep.subr.mxu0 0.0
    %762 = vmatpush1.msra.mxu0 0.0
    %763 = vmatprep.subr.mxu0 0.0
    %764 = vmatpush1.msra.mxu0 0.0
    %765 = vmatprep.subr.mxu0 0.0
    %766 = vmatpush1.msra.mxu0 0.0
    %767 = vmatprep.subr.mxu0 0.0
    %768 = vmatpush1.msra.mxu0 0.0
    %769 = vmatprep.subr.mxu0 0.0
    %770 = vmatpush1.msra.mxu0 0.0
    %771 = vmatprep.subr.mxu0 0.0
    %772 = vmatpush1.msra.mxu0 0.0
    %773 = vmatprep.subr.mxu0 0.0
    %774 = vmatpush1.msra.mxu0 0.0
    %775 = vmatprep.subr.mxu0 0.0
    %776 = vmatpush1.msra.mxu0 0.0
    %777 = vmatprep.subr.mxu0 0.0
    %778 = vmatpush1.msra.mxu0 0.0
    %779 = vmatprep.subr.mxu0 0.0
    %780 = vmatpush1.msra.mxu0 0.0
    %781 = vmatprep.subr.mxu0 0.0
    %782 = vmatpush1.msra.mxu0 0.0
    %783 = vmatprep.subr.mxu0 0.0
    %784 = vmatpush1.msra.mxu0 0.0
    %785 = vmatprep.subr.mxu0 0.0
    %786 = vmatpush1.msra.mxu0 0.0
    %787 = vmatprep.subr.mxu0 0.0
    %788 = vmatpush1.msra.mxu0 0.0
    %789 = vmatprep.subr.mxu0 0.0
    %790 = vmatpush1.msra.mxu0 0.0
    %791 = vmatprep.subr.mxu0 0.0
    %792 = vmatpush1.msra.mxu0 0.0
    %793 = vmatprep.subr.mxu0 0.0
    %794 = vmatpush1.msra.mxu0 0.0
    %795 = vmatprep.subr.mxu0 0.0
    %796 = vmatpush1.msra.mxu0 0.0
    %797 = vmatprep.mubr.f32.mxu0 0.0
    %798 = vmatmul.mubr.f32.gmra.mrb[0].mxu0 %v731
    %v799 = vpop.f32.mrb[0].mxu0
    %v800 = vadd.f32 0.0, %v799
    %v801 = vpop.f32.mrb[0].mxu0
    %v802 = vadd.f32 0.0, %v801
    %803 = vdwg.mxu0
    %v806 = vcombine.low %v800, %v802
    %v808 = vunpack.c.l.s4 1983009808
    %v809 = vunpack.c.0.s8 %v808
    %v810 = vlaneseq
    %v811 = vshrl.u32 %v810, 7
    %v812 = vsub.s32 %v809, %v811
    %v813 = vrot.slane %v806, %v812
    %v815 = vadd.f32 %v729, %v813
    %v816 = vxor.u32 %v815, 2147483648
    %v817 = vmul.f32 %v816, 1.442695
    %v818 = vpow.pop %v817
    %v819 = vadd.f32 %v818, 1.0
    %v820 = vrcp.pop %v819
    %v821 = vmul.f32 1.0, %v820
    %v822 = vtanh.pop %v815
    %v823 = vmul.f32 %v821, 0.0
    %v825 = vrot.slane %v822, 2
    %v827 = vmul.f32 %v821, %v825
    %829 = vrot.lane.b32.xlu0 %v827, 64
    %v830 = vpop.permute.xlu0 %829
    %v832 = vadd.f32 %v823, %v830
    %v833 = vtanh.pop %v832
    %835 = vrot.lane.b32.xlu0 %v821, 64
    %v836 = vpop.permute.xlu0 %835
    %v837 = vrot.slane %v836, 2
    %840 = vrot.lane.b32.xlu0 %v833, 64
    %v841 = vpop.permute.xlu0 %840
    %v843 = vmul.f32 %v837, %v841
    %v844 = vadd.f32 %v843, 0.0
    %v845 = vld [vmem:[%s567] sm:$0xf]
    %v847 = vsel %vm122, %v843, 0
    %849 = vmatprep.subr.mxu0 %v714
    %850 = vmatpush1.msra.mxu0 %v713
    %851 = vmatprep.subr.mxu0 %v716
    %852 = vmatpush1.msra.mxu0 %v715
    %853 = vmatprep.subr.mxu0 %v718
    %854 = vmatpush1.msra.mxu0 %v717
    %855 = vmatprep.subr.mxu0 %v720
    %856 = vmatpush1.msra.mxu0 %v719
    %857 = vmatprep.subr.mxu0 %v722
    %858 = vmatpush1.msra.mxu0 %v721
    %859 = vmatprep.subr.mxu0 %v724
    %860 = vmatpush1.msra.mxu0 %v723
    %861 = vmatprep.subr.mxu0 %v726
    %862 = vmatpush1.msra.mxu0 %v725
    %863 = vmatprep.subr.mxu0 %v728
    %864 = vmatpush1.msra.mxu0 %v727
    %865 = vmatprep.subr.mxu0 0.0
    %866 = vmatpush1.msra.mxu0 0.0
    %867 = vmatprep.subr.mxu0 0.0
    %868 = vmatpush1.msra.mxu0 0.0
    %869 = vmatprep.subr.mxu0 0.0
    %870 = vmatpush1.msra.mxu0 0.0
    %871 = vmatprep.subr.mxu0 0.0
    %872 = vmatpush1.msra.mxu0 0.0
    %873 = vmatprep.subr.mxu0 0.0
    %874 = vmatpush1.msra.mxu0 0.0
    %875 = vmatprep.subr.mxu0 0.0
    %876 = vmatpush1.msra.mxu0 0.0
    %877 = vmatprep.subr.mxu0 0.0
    %878 = vmatpush1.msra.mxu0 0.0
    %879 = vmatprep.subr.mxu0 0.0
    %880 = vmatpush1.msra.mxu0 0.0
    %881 = vmatprep.subr.mxu0 0.0
    %882 = vmatpush1.msra.mxu0 0.0
    %883 = vmatprep.subr.mxu0 0.0
    %884 = vmatpush1.msra.mxu0 0.0
    %885 = vmatprep.subr.mxu0 0.0
    %886 = vmatpush1.msra.mxu0 0.0
    %887 = vmatprep.subr.mxu0 0.0
    %888 = vmatpush1.msra.mxu0 0.0
    %889 = vmatprep.subr.mxu0 0.0
    %890 = vmatpush1.msra.mxu0 0.0
    %891 = vmatprep.subr.mxu0 0.0
    %892 = vmatpush1.msra.mxu0 0.0
    %893 = vmatprep.subr.mxu0 0.0
    %894 = vmatpush1.msra.mxu0 0.0
    %895 = vmatprep.subr.mxu0 0.0
    %896 = vmatpush1.msra.mxu0 0.0
    %897 = vmatprep.subr.mxu0 0.0
    %898 = vmatpush1.msra.mxu0 0.0
    %899 = vmatprep.subr.mxu0 0.0
    %900 = vmatpush1.msra.mxu0 0.0
    %901 = vmatprep.subr.mxu0 0.0
    %902 = vmatpush1.msra.mxu0 0.0
    %903 = vmatprep.subr.mxu0 0.0
    %904 = vmatpush1.msra.mxu0 0.0
    %905 = vmatprep.subr.mxu0 0.0
    %906 = vmatpush1.msra.mxu0 0.0
    %907 = vmatprep.subr.mxu0 0.0
    %908 = vmatpush1.msra.mxu0 0.0
    %909 = vmatprep.subr.mxu0 0.0
    %910 = vmatpush1.msra.mxu0 0.0
    %911 = vmatprep.subr.mxu0 0.0
    %912 = vmatpush1.msra.mxu0 0.0
    %913 = vmatprep.mubr.f32.mxu0 0.0
    %914 = vmatmul.mubr.f32.gmra.mrb[0].mxu0 %v847
    %v915 = vpop.f32.mrb[0].mxu0
    %v916 = vadd.f32 0.0, %v915
    %v917 = vpop.f32.mrb[0].mxu0
    %v918 = vadd.f32 0.0, %v917
    %919 = vdwg.mxu0
    %v922 = vcombine.low %v916, %v918
    %v924 = vunpack.c.l.s4 1983009808
    %v925 = vunpack.c.0.s8 %v924
    %v926 = vlaneseq
    %v927 = vshrl.u32 %v926, 7
    %v928 = vsub.s32 %v925, %v927
    %v929 = vrot.slane %v922, %v928
    %v931 = vadd.f32 %v845, %v929
    %v932 = vxor.u32 %v931, 2147483648
    %v933 = vmul.f32 %v932, 1.442695
    %v934 = vpow.pop %v933
    %v935 = vadd.f32 %v934, 1.0
    %v936 = vrcp.pop %v935
    %v937 = vmul.f32 1.0, %v936
    %v938 = vtanh.pop %v931
    %v939 = vmul.f32 %v937, %v832
    %v941 = vrot.slane %v938, 2
    %v943 = vmul.f32 %v937, %v941
    %945 = vrot.lane.b32.xlu0 %v943, 64
    %v946 = vpop.permute.xlu0 %945
    %v948 = vadd.f32 %v939, %v946
    %v949 = vtanh.pop %v948
    %951 = vrot.lane.b32.xlu0 %v937, 64
    %v952 = vpop.permute.xlu0 %951
    %v953 = vrot.slane %v952, 2
    %956 = vrot.lane.b32.xlu0 %v949, 64
    %v957 = vpop.permute.xlu0 %956
    %v959 = vmul.f32 %v953, %v957
    %v960 = vadd.f32 %v844, %v959
    %v961 = vld [vmem:[%s587] sm:$0xf]
    %v963 = vsel %vm122, %v959, 0
    %965 = vmatprep.subr.mxu0 %v714
    %966 = vmatpush1.msra.mxu0 %v713
    %967 = vmatprep.subr.mxu0 %v716
    %968 = vmatpush1.msra.mxu0 %v715
    %969 = vmatprep.subr.mxu0 %v718
    %970 = vmatpush1.msra.mxu0 %v717
    %971 = vmatprep.subr.mxu0 %v720
    %972 = vmatpush1.msra.mxu0 %v719
    %973 = vmatprep.subr.mxu0 %v722
    %974 = vmatpush1.msra.mxu0 %v721
    %975 = vmatprep.subr.mxu0 %v724
    %976 = vmatpush1.msra.mxu0 %v723
    %977 = vmatprep.subr.mxu0 %v726
    %978 = vmatpush1.msra.mxu0 %v725
    %979 = vmatprep.subr.mxu0 %v728
    %980 = vmatpush1.msra.mxu0 %v727
    %981 = vmatprep.subr.mxu0 0.0
    %982 = vmatpush1.msra.mxu0 0.0
    %983 = vmatprep.subr.mxu0 0.0
    %984 = vmatpush1.msra.mxu0 0.0
    %985 = vmatprep.subr.mxu0 0.0
    %986 = vmatpush1.msra.mxu0 0.0
    %987 = vmatprep.subr.mxu0 0.0
    %988 = vmatpush1.msra.mxu0 0.0
    %989 = vmatprep.subr.mxu0 0.0
    %990 = vmatpush1.msra.mxu0 0.0
    %991 = vmatprep.subr.mxu0 0.0
    %992 = vmatpush1.msra.mxu0 0.0
    %993 = vmatprep.subr.mxu0 0.0
    %994 = vmatpush1.msra.mxu0 0.0
    %995 = vmatprep.subr.mxu0 0.0
    %996 = vmatpush1.msra.mxu0 0.0
    %997 = vmatprep.subr.mxu0 0.0
    %998 = vmatpush1.msra.mxu0 0.0
    %999 = vmatprep.subr.mxu0 0.0
    %1000 = vmatpush1.msra.mxu0 0.0
    %1001 = vmatprep.subr.mxu0 0.0
    %1002 = vmatpush1.msra.mxu0 0.0
    %1003 = vmatprep.subr.mxu0 0.0
    %1004 = vmatpush1.msra.mxu0 0.0
    %1005 = vmatprep.subr.mxu0 0.0
    %1006 = vmatpush1.msra.mxu0 0.0
    %1007 = vmatprep.subr.mxu0 0.0
    %1008 = vmatpush1.msra.mxu0 0.0
    %1009 = vmatprep.subr.mxu0 0.0
    %1010 = vmatpush1.msra.mxu0 0.0
    %1011 = vmatprep.subr.mxu0 0.0
    %1012 = vmatpush1.msra.mxu0 0.0
    %1013 = vmatprep.subr.mxu0 0.0
    %1014 = vmatpush1.msra.mxu0 0.0
    %1015 = vmatprep.subr.mxu0 0.0
    %1016 = vmatpush1.msra.mxu0 0.0
    %1017 = vmatprep.subr.mxu0 0.0
    %1018 = vmatpush1.msra.mxu0 0.0
    %1019 = vmatprep.subr.mxu0 0.0
    %1020 = vmatpush1.msra.mxu0 0.0
    %1021 = vmatprep.subr.mxu0 0.0
    %1022 = vmatpush1.msra.mxu0 0.0
    %1023 = vmatprep.subr.mxu0 0.0
    %1024 = vmatpush1.msra.mxu0 0.0
    %1025 = vmatprep.subr.mxu0 0.0
    %1026 = vmatpush1.msra.mxu0 0.0
    %1027 = vmatprep.subr.mxu0 0.0
    %1028 = vmatpush1.msra.mxu0 0.0
    %1029 = vmatprep.mubr.f32.mxu0 0.0
    %1030 = vmatmul.mubr.f32.gmra.mrb[0].mxu0 %v963
    %v1031 = vpop.f32.mrb[0].mxu0
    %v1032 = vadd.f32 0.0, %v1031
    %v1033 = vpop.f32.mrb[0].mxu0
    %v1034 = vadd.f32 0.0, %v1033
    %1035 = vdwg.mxu0
    %v1038 = vcombine.low %v1032, %v1034
    %v1040 = vunpack.c.l.s4 1983009808
    %v1041 = vunpack.c.0.s8 %v1040
    %v1042 = vlaneseq
    %v1043 = vshrl.u32 %v1042, 7
    %v1044 = vsub.s32 %v1041, %v1043
    %v1045 = vrot.slane %v1038, %v1044
    %v1047 = vadd.f32 %v961, %v1045
    %v1048 = vxor.u32 %v1047, 2147483648
    %v1049 = vmul.f32 %v1048, 1.442695
    %v1050 = vpow.pop %v1049
    %v1051 = vadd.f32 %v1050, 1.0
    %v1052 = vrcp.pop %v1051
    %v1053 = vmul.f32 1.0, %v1052
    %v1054 = vtanh.pop %v1047
    %v1055 = vmul.f32 %v1053, %v948
    %v1057 = vrot.slane %v1054, 2
    %v1059 = vmul.f32 %v1053, %v1057
    %1061 = vrot.lane.b32.xlu0 %v1059, 64
    %v1062 = vpop.permute.xlu0 %1061
    %v1064 = vadd.f32 %v1055, %v1062
    %v1065 = vtanh.pop %v1064
    %1067 = vrot.lane.b32.xlu0 %v1053, 64
    %v1068 = vpop.permute.xlu0 %1067
    %v1069 = vrot.slane %v1068, 2
    %1072 = vrot.lane.b32.xlu0 %v1065, 64
    %v1073 = vpop.permute.xlu0 %1072
    %v1075 = vmul.f32 %v1069, %v1073
    %v1076 = vadd.f32 %v960, %v1075
    %v1077 = vld [vmem:[%s603] sm:$0xf]
    %v1079 = vsel %vm122, %v1075, 0
    %1081 = vmatprep.subr.mxu0 %v714
    %1082 = vmatpush1.msra.mxu0 %v713
    %1083 = vmatprep.subr.mxu0 %v716
    %1084 = vmatpush1.msra.mxu0 %v715
    %1085 = vmatprep.subr.mxu0 %v718
    %1086 = vmatpush1.msra.mxu0 %v717
    %1087 = vmatprep.subr.mxu0 %v720
    %1088 = vmatpush1.msra.mxu0 %v719
    %1089 = vmatprep.subr.mxu0 %v722
    %1090 = vmatpush1.msra.mxu0 %v721
    %1091 = vmatprep.subr.mxu0 %v724
    %1092 = vmatpush1.msra.mxu0 %v723
    %1093 = vmatprep.subr.mxu0 %v726
    %1094 = vmatpush1.msra.mxu0 %v725
    %1095 = vmatprep.subr.mxu0 %v728
    %1096 = vmatpush1.msra.mxu0 %v727
    %1097 = vmatprep.subr.mxu0 0.0
    %1098 = vmatpush1.msra.mxu0 0.0
    %1099 = vmatprep.subr.mxu0 0.0
    %1100 = vmatpush1.msra.mxu0 0.0
    %1101 = vmatprep.subr.mxu0 0.0
    %1102 = vmatpush1.msra.mxu0 0.0
    %1103 = vmatprep.subr.mxu0 0.0
    %1104 = vmatpush1.msra.mxu0 0.0
    %1105 = vmatprep.subr.mxu0 0.0
    %1106 = vmatpush1.msra.mxu0 0.0
    %1107 = vmatprep.subr.mxu0 0.0
    %1108 = vmatpush1.msra.mxu0 0.0
    %1109 = vmatprep.subr.mxu0 0.0
    %1110 = vmatpush1.msra.mxu0 0.0
    %1111 = vmatprep.subr.mxu0 0.0
    %1112 = vmatpush1.msra.mxu0 0.0
    %1113 = vmatprep.subr.mxu0 0.0
    %1114 = vmatpush1.msra.mxu0 0.0
    %1115 = vmatprep.subr.mxu0 0.0
    %1116 = vmatpush1.msra.mxu0 0.0
    %1117 = vmatprep.subr.mxu0 0.0
    %1118 = vmatpush1.msra.mxu0 0.0
    %1119 = vmatprep.subr.mxu0 0.0
    %1120 = vmatpush1.msra.mxu0 0.0
    %1121 = vmatprep.subr.mxu0 0.0
    %1122 = vmatpush1.msra.mxu0 0.0
    %1123 = vmatprep.subr.mxu0 0.0
    %1124 = vmatpush1.msra.mxu0 0.0
    %1125 = vmatprep.subr.mxu0 0.0
    %1126 = vmatpush1.msra.mxu0 0.0
    %1127 = vmatprep.subr.mxu0 0.0
    %1128 = vmatpush1.msra.mxu0 0.0
    %1129 = vmatprep.subr.mxu0 0.0
    %1130 = vmatpush1.msra.mxu0 0.0
    %1131 = vmatprep.subr.mxu0 0.0
    %1132 = vmatpush1.msra.mxu0 0.0
    %1133 = vmatprep.subr.mxu0 0.0
    %1134 = vmatpush1.msra.mxu0 0.0
    %1135 = vmatprep.subr.mxu0 0.0
    %1136 = vmatpush1.msra.mxu0 0.0
    %1137 = vmatprep.subr.mxu0 0.0
    %1138 = vmatpush1.msra.mxu0 0.0
    %1139 = vmatprep.subr.mxu0 0.0
    %1140 = vmatpush1.msra.mxu0 0.0
    %1141 = vmatprep.subr.mxu0 0.0
    %1142 = vmatpush1.msra.mxu0 0.0
    %1143 = vmatprep.subr.mxu0 0.0
    %1144 = vmatpush1.msra.mxu0 0.0
    %1145 = vmatprep.mubr.f32.mxu0 0.0
    %1146 = vmatmul.mubr.f32.gmra.mrb[0].mxu0 %v1079
    %v1147 = vpop.f32.mrb[0].mxu0
    %v1148 = vadd.f32 0.0, %v1147
    %v1149 = vpop.f32.mrb[0].mxu0
    %v1150 = vadd.f32 0.0, %v1149
    %1151 = vdwg.mxu0
    %v1154 = vcombine.low %v1148, %v1150
    %v1156 = vunpack.c.l.s4 1983009808
    %v1157 = vunpack.c.0.s8 %v1156
    %v1158 = vlaneseq
    %v1159 = vshrl.u32 %v1158, 7
    %v1160 = vsub.s32 %v1157, %v1159
    %v1161 = vrot.slane %v1154, %v1160
    %v1163 = vadd.f32 %v1077, %v1161
    %v1164 = vxor.u32 %v1163, 2147483648
    %v1165 = vmul.f32 %v1164, 1.442695
    %v1166 = vpow.pop %v1165
    %v1167 = vadd.f32 %v1166, 1.0
    %v1168 = vrcp.pop %v1167
    %v1169 = vmul.f32 1.0, %v1168
    %v1170 = vtanh.pop %v1163
    %v1171 = vmul.f32 %v1169, %v1064
    %v1173 = vrot.slane %v1170, 2
    %v1175 = vmul.f32 %v1169, %v1173
    %1177 = vrot.lane.b32.xlu0 %v1175, 64
    %v1178 = vpop.permute.xlu0 %1177
    %v1180 = vadd.f32 %v1171, %v1178
    %v1181 = vtanh.pop %v1180
    %1183 = vrot.lane.b32.xlu0 %v1169, 64
    %v1184 = vpop.permute.xlu0 %1183
    %v1185 = vrot.slane %v1184, 2
    %1188 = vrot.lane.b32.xlu0 %v1181, 64
    %v1189 = vpop.permute.xlu0 %1188
    %v1191 = vmul.f32 %v1185, %v1189
    %v1192 = vadd.f32 %v1076, %v1191
    %v1193 = vld [vmem:[%s623] sm:$0xf]
    %v1195 = vsel %vm122, %v1191, 0
    %1197 = vmatprep.subr.mxu0 %v714
    %1198 = vmatpush1.msra.mxu0 %v713
    %1199 = vmatprep.subr.mxu0 %v716
    %1200 = vmatpush1.msra.mxu0 %v715
    %1201 = vmatprep.subr.mxu0 %v718
    %1202 = vmatpush1.msra.mxu0 %v717
    %1203 = vmatprep.subr.mxu0 %v720
    %1204 = vmatpush1.msra.mxu0 %v719
    %1205 = vmatprep.subr.mxu0 %v722
    %1206 = vmatpush1.msra.mxu0 %v721
    %1207 = vmatprep.subr.mxu0 %v724
    %1208 = vmatpush1.msra.mxu0 %v723
    %1209 = vmatprep.subr.mxu0 %v726
    %1210 = vmatpush1.msra.mxu0 %v725
    %1211 = vmatprep.subr.mxu0 %v728
    %1212 = vmatpush1.msra.mxu0 %v727
    %1213 = vmatprep.subr.mxu0 0.0
    %1214 = vmatpush1.msra.mxu0 0.0
    %1215 = vmatprep.subr.mxu0 0.0
    %1216 = vmatpush1.msra.mxu0 0.0
    %1217 = vmatprep.subr.mxu0 0.0
    %1218 = vmatpush1.msra.mxu0 0.0
    %1219 = vmatprep.subr.mxu0 0.0
    %1220 = vmatpush1.msra.mxu0 0.0
    %1221 = vmatprep.subr.mxu0 0.0
    %1222 = vmatpush1.msra.mxu0 0.0
    %1223 = vmatprep.subr.mxu0 0.0
    %1224 = vmatpush1.msra.mxu0 0.0
    %1225 = vmatprep.subr.mxu0 0.0
    %1226 = vmatpush1.msra.mxu0 0.0
    %1227 = vmatprep.subr.mxu0 0.0
    %1228 = vmatpush1.msra.mxu0 0.0
    %1229 = vmatprep.subr.mxu0 0.0
    %1230 = vmatpush1.msra.mxu0 0.0
    %1231 = vmatprep.subr.mxu0 0.0
    %1232 = vmatpush1.msra.mxu0 0.0
    %1233 = vmatprep.subr.mxu0 0.0
    %1234 = vmatpush1.msra.mxu0 0.0
    %1235 = vmatprep.subr.mxu0 0.0
    %1236 = vmatpush1.msra.mxu0 0.0
    %1237 = vmatprep.subr.mxu0 0.0
    %1238 = vmatpush1.msra.mxu0 0.0
    %1239 = vmatprep.subr.mxu0 0.0
    %1240 = vmatpush1.msra.mxu0 0.0
    %1241 = vmatprep.subr.mxu0 0.0
    %1242 = vmatpush1.msra.mxu0 0.0
    %1243 = vmatprep.subr.mxu0 0.0
    %1244 = vmatpush1.msra.mxu0 0.0
    %1245 = vmatprep.subr.mxu0 0.0
    %1246 = vmatpush1.msra.mxu0 0.0
    %1247 = vmatprep.subr.mxu0 0.0
    %1248 = vmatpush1.msra.mxu0 0.0
    %1249 = vmatprep.subr.mxu0 0.0
    %1250 = vmatpush1.msra.mxu0 0.0
    %1251 = vmatprep.subr.mxu0 0.0
    %1252 = vmatpush1.msra.mxu0 0.0
    %1253 = vmatprep.subr.mxu0 0.0
    %1254 = vmatpush1.msra.mxu0 0.0
    %1255 = vmatprep.subr.mxu0 0.0
    %1256 = vmatpush1.msra.mxu0 0.0
    %1257 = vmatprep.subr.mxu0 0.0
    %1258 = vmatpush1.msra.mxu0 0.0
    %1259 = vmatprep.subr.mxu0 0.0
    %1260 = vmatpush1.msra.mxu0 0.0
    %1261 = vmatprep.mubr.f32.mxu0 0.0
    %1262 = vmatmul.mubr.f32.gmra.mrb[0].mxu0 %v1195
    %v1263 = vpop.f32.mrb[0].mxu0
    %v1264 = vadd.f32 0.0, %v1263
    %v1265 = vpop.f32.mrb[0].mxu0
    %v1266 = vadd.f32 0.0, %v1265
    %1267 = vdwg.mxu0
    %v1270 = vcombine.low %v1264, %v1266
    %v1272 = vunpack.c.l.s4 1983009808
    %v1273 = vunpack.c.0.s8 %v1272
    %v1274 = vlaneseq
    %v1275 = vshrl.u32 %v1274, 7
    %v1276 = vsub.s32 %v1273, %v1275
    %v1277 = vrot.slane %v1270, %v1276
    %v1279 = vadd.f32 %v1193, %v1277
    %v1280 = vxor.u32 %v1279, 2147483648
    %v1281 = vmul.f32 %v1280, 1.442695
    %v1282 = vpow.pop %v1281
    %v1283 = vadd.f32 %v1282, 1.0
    %v1284 = vrcp.pop %v1283
    %v1285 = vmul.f32 1.0, %v1284
    %v1286 = vtanh.pop %v1279
    %v1287 = vmul.f32 %v1285, %v1180
    %v1289 = vrot.slane %v1286, 2
    %v1291 = vmul.f32 %v1285, %v1289
    %1293 = vrot.lane.b32.xlu0 %v1291, 64
    %v1294 = vpop.permute.xlu0 %1293
    %v1296 = vadd.f32 %v1287, %v1294
    %v1297 = vtanh.pop %v1296
    %1299 = vrot.lane.b32.xlu0 %v1285, 64
    %v1300 = vpop.permute.xlu0 %1299
    %v1301 = vrot.slane %v1300, 2
    %1304 = vrot.lane.b32.xlu0 %v1297, 64
    %v1305 = vpop.permute.xlu0 %1304
    %v1307 = vmul.f32 %v1301, %v1305
    %v1308 = vadd.f32 %v1192, %v1307
    %v1309 = vld [vmem:[%s639] sm:$0xf]
    %v1311 = vsel %vm122, %v1307, 0
    %1313 = vmatprep.subr.mxu0 %v714
    %1314 = vmatpush1.msra.mxu0 %v713
    %1315 = vmatprep.subr.mxu0 %v716
    %1316 = vmatpush1.msra.mxu0 %v715
    %1317 = vmatprep.subr.mxu0 %v718
    %1318 = vmatpush1.msra.mxu0 %v717
    %1319 = vmatprep.subr.mxu0 %v720
    %1320 = vmatpush1.msra.mxu0 %v719
    %1321 = vmatprep.subr.mxu0 %v722
    %1322 = vmatpush1.msra.mxu0 %v721
    %1323 = vmatprep.subr.mxu0 %v724
    %1324 = vmatpush1.msra.mxu0 %v723
    %1325 = vmatprep.subr.mxu0 %v726
    %1326 = vmatpush1.msra.mxu0 %v725
    %1327 = vmatprep.subr.mxu0 %v728
    %1328 = vmatpush1.msra.mxu0 %v727
    %1329 = vmatprep.subr.mxu0 0.0
    %1330 = vmatpush1.msra.mxu0 0.0
    %1331 = vmatprep.subr.mxu0 0.0
    %1332 = vmatpush1.msra.mxu0 0.0
    %1333 = vmatprep.subr.mxu0 0.0
    %1334 = vmatpush1.msra.mxu0 0.0
    %1335 = vmatprep.subr.mxu0 0.0
    %1336 = vmatpush1.msra.mxu0 0.0
    %1337 = vmatprep.subr.mxu0 0.0
    %1338 = vmatpush1.msra.mxu0 0.0
    %1339 = vmatprep.subr.mxu0 0.0
    %1340 = vmatpush1.msra.mxu0 0.0
    %1341 = vmatprep.subr.mxu0 0.0
    %1342 = vmatpush1.msra.mxu0 0.0
    %1343 = vmatprep.subr.mxu0 0.0
    %1344 = vmatpush1.msra.mxu0 0.0
    %1345 = vmatprep.subr.mxu0 0.0
    %1346 = vmatpush1.msra.mxu0 0.0
    %1347 = vmatprep.subr.mxu0 0.0
    %1348 = vmatpush1.msra.mxu0 0.0
    %1349 = vmatprep.subr.mxu0 0.0
    %1350 = vmatpush1.msra.mxu0 0.0
    %1351 = vmatprep.subr.mxu0 0.0
    %1352 = vmatpush1.msra.mxu0 0.0
    %1353 = vmatprep.subr.mxu0 0.0
    %1354 = vmatpush1.msra.mxu0 0.0
    %1355 = vmatprep.subr.mxu0 0.0
    %1356 = vmatpush1.msra.mxu0 0.0
    %1357 = vmatprep.subr.mxu0 0.0
    %1358 = vmatpush1.msra.mxu0 0.0
    %1359 = vmatprep.subr.mxu0 0.0
    %1360 = vmatpush1.msra.mxu0 0.0
    %1361 = vmatprep.subr.mxu0 0.0
    %1362 = vmatpush1.msra.mxu0 0.0
    %1363 = vmatprep.subr.mxu0 0.0
    %1364 = vmatpush1.msra.mxu0 0.0
    %1365 = vmatprep.subr.mxu0 0.0
    %1366 = vmatpush1.msra.mxu0 0.0
    %1367 = vmatprep.subr.mxu0 0.0
    %1368 = vmatpush1.msra.mxu0 0.0
    %1369 = vmatprep.subr.mxu0 0.0
    %1370 = vmatpush1.msra.mxu0 0.0
    %1371 = vmatprep.subr.mxu0 0.0
    %1372 = vmatpush1.msra.mxu0 0.0
    %1373 = vmatprep.subr.mxu0 0.0
    %1374 = vmatpush1.msra.mxu0 0.0
    %1375 = vmatprep.subr.mxu0 0.0
    %1376 = vmatpush1.msra.mxu0 0.0
    %1377 = vmatprep.mubr.f32.mxu0 0.0
    %1378 = vmatmul.mubr.f32.gmra.mrb[0].mxu0 %v1311
    %v1379 = vpop.f32.mrb[0].mxu0
    %v1380 = vadd.f32 0.0, %v1379
    %v1381 = vpop.f32.mrb[0].mxu0
    %v1382 = vadd.f32 0.0, %v1381
    %1383 = vdwg.mxu0
    %v1386 = vcombine.low %v1380, %v1382
    %v1388 = vunpack.c.l.s4 1983009808
    %v1389 = vunpack.c.0.s8 %v1388
    %v1390 = vlaneseq
    %v1391 = vshrl.u32 %v1390, 7
    %v1392 = vsub.s32 %v1389, %v1391
    %v1393 = vrot.slane %v1386, %v1392
    %v1395 = vadd.f32 %v1309, %v1393
    %v1396 = vxor.u32 %v1395, 2147483648
    %v1397 = vmul.f32 %v1396, 1.442695
    %v1398 = vpow.pop %v1397
    %v1399 = vadd.f32 %v1398, 1.0
    %v1400 = vrcp.pop %v1399
    %v1401 = vmul.f32 1.0, %v1400
    %v1402 = vtanh.pop %v1395
    %v1403 = vmul.f32 %v1401, %v1296
    %v1405 = vrot.slane %v1402, 2
    %v1407 = vmul.f32 %v1401, %v1405
    %1409 = vrot.lane.b32.xlu0 %v1407, 64
    %v1410 = vpop.permute.xlu0 %1409
    %v1412 = vadd.f32 %v1403, %v1410
    %v1413 = vtanh.pop %v1412
    %1415 = vrot.lane.b32.xlu0 %v1401, 64
    %v1416 = vpop.permute.xlu0 %1415
    %v1417 = vrot.slane %v1416, 2
    %1420 = vrot.lane.b32.xlu0 %v1413, 64
    %v1421 = vpop.permute.xlu0 %1420
    %v1423 = vmul.f32 %v1417, %v1421
    %v1424 = vadd.f32 %v1308, %v1423
    %v1425 = vld [vmem:[%s659] sm:$0xf]
    %v1427 = vsel %vm122, %v1423, 0
    %1429 = vmatprep.subr.mxu0 %v714
    %1430 = vmatpush1.msra.mxu0 %v713
    %1431 = vmatprep.subr.mxu0 %v716
    %1432 = vmatpush1.msra.mxu0 %v715
    %1433 = vmatprep.subr.mxu0 %v718
    %1434 = vmatpush1.msra.mxu0 %v717
    %1435 = vmatprep.subr.mxu0 %v720
    %1436 = vmatpush1.msra.mxu0 %v719
    %1437 = vmatprep.subr.mxu0 %v722
    %1438 = vmatpush1.msra.mxu0 %v721
    %1439 = vmatprep.subr.mxu0 %v724
    %1440 = vmatpush1.msra.mxu0 %v723
    %1441 = vmatprep.subr.mxu0 %v726
    %1442 = vmatpush1.msra.mxu0 %v725
    %1443 = vmatprep.subr.mxu0 %v728
    %1444 = vmatpush1.msra.mxu0 %v727
    %1445 = vmatprep.subr.mxu0 0.0
    %1446 = vmatpush1.msra.mxu0 0.0
    %1447 = vmatprep.subr.mxu0 0.0
    %1448 = vmatpush1.msra.mxu0 0.0
    %1449 = vmatprep.subr.mxu0 0.0
    %1450 = vmatpush1.msra.mxu0 0.0
    %1451 = vmatprep.subr.mxu0 0.0
    %1452 = vmatpush1.msra.mxu0 0.0
    %1453 = vmatprep.subr.mxu0 0.0
    %1454 = vmatpush1.msra.mxu0 0.0
    %1455 = vmatprep.subr.mxu0 0.0
    %1456 = vmatpush1.msra.mxu0 0.0
    %1457 = vmatprep.subr.mxu0 0.0
    %1458 = vmatpush1.msra.mxu0 0.0
    %1459 = vmatprep.subr.mxu0 0.0
    %1460 = vmatpush1.msra.mxu0 0.0
    %1461 = vmatprep.subr.mxu0 0.0
    %1462 = vmatpush1.msra.mxu0 0.0
    %1463 = vmatprep.subr.mxu0 0.0
    %1464 = vmatpush1.msra.mxu0 0.0
    %1465 = vmatprep.subr.mxu0 0.0
    %1466 = vmatpush1.msra.mxu0 0.0
    %1467 = vmatprep.subr.mxu0 0.0
    %1468 = vmatpush1.msra.mxu0 0.0
    %1469 = vmatprep.subr.mxu0 0.0
    %1470 = vmatpush1.msra.mxu0 0.0
    %1471 = vmatprep.subr.mxu0 0.0
    %1472 = vmatpush1.msra.mxu0 0.0
    %1473 = vmatprep.subr.mxu0 0.0
    %1474 = vmatpush1.msra.mxu0 0.0
    %1475 = vmatprep.subr.mxu0 0.0
    %1476 = vmatpush1.msra.mxu0 0.0
    %1477 = vmatprep.subr.mxu0 0.0
    %1478 = vmatpush1.msra.mxu0 0.0
    %1479 = vmatprep.subr.mxu0 0.0
    %1480 = vmatpush1.msra.mxu0 0.0
    %1481 = vmatprep.subr.mxu0 0.0
    %1482 = vmatpush1.msra.mxu0 0.0
    %1483 = vmatprep.subr.mxu0 0.0
    %1484 = vmatpush1.msra.mxu0 0.0
    %1485 = vmatprep.subr.mxu0 0.0
    %1486 = vmatpush1.msra.mxu0 0.0
    %1487 = vmatprep.subr.mxu0 0.0
    %1488 = vmatpush1.msra.mxu0 0.0
    %1489 = vmatprep.subr.mxu0 0.0
    %1490 = vmatpush1.msra.mxu0 0.0
    %1491 = vmatprep.subr.mxu0 0.0
    %1492 = vmatpush1.msra.mxu0 0.0
    %1493 = vmatprep.mubr.f32.mxu0 0.0
    %1494 = vmatmul.mubr.f32.gmra.mrb[0].mxu0 %v1427
    %v1495 = vpop.f32.mrb[0].mxu0
    %v1496 = vadd.f32 0.0, %v1495
    %v1497 = vpop.f32.mrb[0].mxu0
    %v1498 = vadd.f32 0.0, %v1497
    %1499 = vdwg.mxu0
    %v1502 = vcombine.low %v1496, %v1498
    %v1504 = vunpack.c.l.s4 1983009808
    %v1505 = vunpack.c.0.s8 %v1504
    %v1506 = vlaneseq
    %v1507 = vshrl.u32 %v1506, 7
    %v1508 = vsub.s32 %v1505, %v1507
    %v1509 = vrot.slane %v1502, %v1508
    %v1511 = vadd.f32 %v1425, %v1509
    %v1512 = vxor.u32 %v1511, 2147483648
    %v1513 = vmul.f32 %v1512, 1.442695
    %v1514 = vpow.pop %v1513
    %v1515 = vadd.f32 %v1514, 1.0
    %v1516 = vrcp.pop %v1515
    %v1517 = vmul.f32 1.0, %v1516
    %v1518 = vtanh.pop %v1511
    %v1519 = vmul.f32 %v1517, %v1412
    %v1521 = vrot.slane %v1518, 2
    %v1523 = vmul.f32 %v1517, %v1521
    %1525 = vrot.lane.b32.xlu0 %v1523, 64
    %v1526 = vpop.permute.xlu0 %1525
    %v1528 = vadd.f32 %v1519, %v1526
    %v1529 = vtanh.pop %v1528
    %1531 = vrot.lane.b32.xlu0 %v1517, 64
    %v1532 = vpop.permute.xlu0 %1531
    %v1533 = vrot.slane %v1532, 2
    %1536 = vrot.lane.b32.xlu0 %v1529, 64
    %v1537 = vpop.permute.xlu0 %1536
    %v1539 = vmul.f32 %v1533, %v1537
    %v1540 = vadd.f32 %v1424, %v1539
    %v1541 = vld [vmem:[%s675] sm:$0xf]
    %v1543 = vsel %vm122, %v1539, 0
    %1545 = vmatprep.subr.mxu0 %v714
    %1546 = vmatpush1.msra.mxu0 %v713
    %1547 = vmatprep.subr.mxu0 %v716
    %1548 = vmatpush1.msra.mxu0 %v715
    %1549 = vmatprep.subr.mxu0 %v718
    %1550 = vmatpush1.msra.mxu0 %v717
    %1551 = vmatprep.subr.mxu0 %v720
    %1552 = vmatpush1.msra.mxu0 %v719
    %1553 = vmatprep.subr.mxu0 %v722
    %1554 = vmatpush1.msra.mxu0 %v721
    %1555 = vmatprep.subr.mxu0 %v724
    %1556 = vmatpush1.msra.mxu0 %v723
    %1557 = vmatprep.subr.mxu0 %v726
    %1558 = vmatpush1.msra.mxu0 %v725
    %1559 = vmatprep.subr.mxu0 %v728
    %1560 = vmatpush1.msra.mxu0 %v727
    %1561 = vmatprep.subr.mxu0 0.0
    %1562 = vmatpush1.msra.mxu0 0.0
    %1563 = vmatprep.subr.mxu0 0.0
    %1564 = vmatpush1.msra.mxu0 0.0
    %1565 = vmatprep.subr.mxu0 0.0
    %1566 = vmatpush1.msra.mxu0 0.0
    %1567 = vmatprep.subr.mxu0 0.0
    %1568 = vmatpush1.msra.mxu0 0.0
    %1569 = vmatprep.subr.mxu0 0.0
    %1570 = vmatpush1.msra.mxu0 0.0
    %1571 = vmatprep.subr.mxu0 0.0
    %1572 = vmatpush1.msra.mxu0 0.0
    %1573 = vmatprep.subr.mxu0 0.0
    %1574 = vmatpush1.msra.mxu0 0.0
    %1575 = vmatprep.subr.mxu0 0.0
    %1576 = vmatpush1.msra.mxu0 0.0
    %1577 = vmatprep.subr.mxu0 0.0
    %1578 = vmatpush1.msra.mxu0 0.0
    %1579 = vmatprep.subr.mxu0 0.0
    %1580 = vmatpush1.msra.mxu0 0.0
    %1581 = vmatprep.subr.mxu0 0.0
    %1582 = vmatpush1.msra.mxu0 0.0
    %1583 = vmatprep.subr.mxu0 0.0
    %1584 = vmatpush1.msra.mxu0 0.0
    %1585 = vmatprep.subr.mxu0 0.0
    %1586 = vmatpush1.msra.mxu0 0.0
    %1587 = vmatprep.subr.mxu0 0.0
    %1588 = vmatpush1.msra.mxu0 0.0
    %1589 = vmatprep.subr.mxu0 0.0
    %1590 = vmatpush1.msra.mxu0 0.0
    %1591 = vmatprep.subr.mxu0 0.0
    %1592 = vmatpush1.msra.mxu0 0.0
    %1593 = vmatprep.subr.mxu0 0.0
    %1594 = vmatpush1.msra.mxu0 0.0
    %1595 = vmatprep.subr.mxu0 0.0
    %1596 = vmatpush1.msra.mxu0 0.0
    %1597 = vmatprep.subr.mxu0 0.0
    %1598 = vmatpush1.msra.mxu0 0.0
    %1599 = vmatprep.subr.mxu0 0.0
    %1600 = vmatpush1.msra.mxu0 0.0
    %1601 = vmatprep.subr.mxu0 0.0
    %1602 = vmatpush1.msra.mxu0 0.0
    %1603 = vmatprep.subr.mxu0 0.0
    %1604 = vmatpush1.msra.mxu0 0.0
    %1605 = vmatprep.subr.mxu0 0.0
    %1606 = vmatpush1.msra.mxu0 0.0
    %1607 = vmatprep.subr.mxu0 0.0
    %1608 = vmatpush1.msra.mxu0 0.0
    %1609 = vmatprep.mubr.f32.mxu0 0.0
    %1610 = vmatmul.mubr.f32.gmra.mrb[0].mxu0 %v1543
    %v1611 = vpop.f32.mrb[0].mxu0
    %v1612 = vadd.f32 0.0, %v1611
    %v1613 = vpop.f32.mrb[0].mxu0
    %v1614 = vadd.f32 0.0, %v1613
    %1615 = vdwg.mxu0
    %v1618 = vcombine.low %v1612, %v1614
    %v1620 = vunpack.c.l.s4 1983009808
    %v1621 = vunpack.c.0.s8 %v1620
    %v1622 = vlaneseq
    %v1623 = vshrl.u32 %v1622, 7
    %v1624 = vsub.s32 %v1621, %v1623
    %v1625 = vrot.slane %v1618, %v1624
    %v1627 = vadd.f32 %v1541, %v1625
    %v1628 = vxor.u32 %v1627, 2147483648
    %v1629 = vmul.f32 %v1628, 1.442695
    %v1630 = vpow.pop %v1629
    %v1631 = vadd.f32 %v1630, 1.0
    %v1632 = vrcp.pop %v1631
    %v1633 = vmul.f32 1.0, %v1632
    %v1634 = vtanh.pop %v1627
    %v1635 = vmul.f32 %v1633, %v1528
    %v1637 = vrot.slane %v1634, 2
    %v1639 = vmul.f32 %v1633, %v1637
    %1641 = vrot.lane.b32.xlu0 %v1639, 64
    %v1642 = vpop.permute.xlu0 %1641
    %v1644 = vadd.f32 %v1635, %v1642
    %v1645 = vtanh.pop %v1644
    %1647 = vrot.lane.b32.xlu0 %v1633, 64
    %v1648 = vpop.permute.xlu0 %1647
    %v1649 = vrot.slane %v1648, 2
    %1652 = vrot.lane.b32.xlu0 %v1645, 64
    %v1653 = vpop.permute.xlu0 %1652
    %v1655 = vmul.f32 %v1649, %v1653
    %v1656 = vadd.f32 %v1540, %v1655
    %v1657 = vld [vmem:[%s695] sm:$0xf]
    %v1659 = vsel %vm122, %v1655, 0
    %1661 = vmatprep.subr.mxu0 %v714
    %1662 = vmatpush1.msra.mxu0 %v713
    %1663 = vmatprep.subr.mxu0 %v716
    %1664 = vmatpush1.msra.mxu0 %v715
    %1665 = vmatprep.subr.mxu0 %v718
    %1666 = vmatpush1.msra.mxu0 %v717
    %1667 = vmatprep.subr.mxu0 %v720
    %1668 = vmatpush1.msra.mxu0 %v719
    %1669 = vmatprep.subr.mxu0 %v722
    %1670 = vmatpush1.msra.mxu0 %v721
    %1671 = vmatprep.subr.mxu0 %v724
    %1672 = vmatpush1.msra.mxu0 %v723
    %1673 = vmatprep.subr.mxu0 %v726
    %1674 = vmatpush1.msra.mxu0 %v725
    %1675 = vmatprep.subr.mxu0 %v728
    %1676 = vmatpush1.msra.mxu0 %v727
    %1677 = vmatprep.subr.mxu0 0.0
    %1678 = vmatpush1.msra.mxu0 0.0
    %1679 = vmatprep.subr.mxu0 0.0
    %1680 = vmatpush1.msra.mxu0 0.0
    %1681 = vmatprep.subr.mxu0 0.0
    %1682 = vmatpush1.msra.mxu0 0.0
    %1683 = vmatprep.subr.mxu0 0.0
    %1684 = vmatpush1.msra.mxu0 0.0
    %1685 = vmatprep.subr.mxu0 0.0
    %1686 = vmatpush1.msra.mxu0 0.0
    %1687 = vmatprep.subr.mxu0 0.0
    %1688 = vmatpush1.msra.mxu0 0.0
    %1689 = vmatprep.subr.mxu0 0.0
    %1690 = vmatpush1.msra.mxu0 0.0
    %1691 = vmatprep.subr.mxu0 0.0
    %1692 = vmatpush1.msra.mxu0 0.0
    %1693 = vmatprep.subr.mxu0 0.0
    %1694 = vmatpush1.msra.mxu0 0.0
    %1695 = vmatprep.subr.mxu0 0.0
    %1696 = vmatpush1.msra.mxu0 0.0
    %1697 = vmatprep.subr.mxu0 0.0
    %1698 = vmatpush1.msra.mxu0 0.0
    %1699 = vmatprep.subr.mxu0 0.0
    %1700 = vmatpush1.msra.mxu0 0.0
    %1701 = vmatprep.subr.mxu0 0.0
    %1702 = vmatpush1.msra.mxu0 0.0
    %1703 = vmatprep.subr.mxu0 0.0
    %1704 = vmatpush1.msra.mxu0 0.0
    %1705 = vmatprep.subr.mxu0 0.0
    %1706 = vmatpush1.msra.mxu0 0.0
    %1707 = vmatprep.subr.mxu0 0.0
    %1708 = vmatpush1.msra.mxu0 0.0
    %1709 = vmatprep.subr.mxu0 0.0
    %1710 = vmatpush1.msra.mxu0 0.0
    %1711 = vmatprep.subr.mxu0 0.0
    %1712 = vmatpush1.msra.mxu0 0.0
    %1713 = vmatprep.subr.mxu0 0.0
    %1714 = vmatpush1.msra.mxu0 0.0
    %1715 = vmatprep.subr.mxu0 0.0
    %1716 = vmatpush1.msra.mxu0 0.0
    %1717 = vmatprep.subr.mxu0 0.0
    %1718 = vmatpush1.msra.mxu0 0.0
    %1719 = vmatprep.subr.mxu0 0.0
    %1720 = vmatpush1.msra.mxu0 0.0
    %1721 = vmatprep.subr.mxu0 0.0
    %1722 = vmatpush1.msra.mxu0 0.0
    %1723 = vmatprep.subr.mxu0 0.0
    %1724 = vmatpush1.msra.mxu0 0.0
    %1725 = vmatprep.mubr.f32.mxu0 0.0
    %1726 = vmatmul.mubr.f32.gmra.mrb[0].mxu0 %v1659
    %v1727 = vpop.f32.mrb[0].mxu0
    %v1728 = vadd.f32 0.0, %v1727
    %v1729 = vpop.f32.mrb[0].mxu0
    %v1730 = vadd.f32 0.0, %v1729
    %1731 = vdwg.mxu0
    %v1734 = vcombine.low %v1728, %v1730
    %v1736 = vunpack.c.l.s4 1983009808
    %v1737 = vunpack.c.0.s8 %v1736
    %v1738 = vlaneseq
    %v1739 = vshrl.u32 %v1738, 7
    %v1740 = vsub.s32 %v1737, %v1739
    %v1741 = vrot.slane %v1734, %v1740
    %v1743 = vadd.f32 %v1657, %v1741
    %v1744 = vxor.u32 %v1743, 2147483648
    %v1745 = vmul.f32 %v1744, 1.442695
    %v1746 = vpow.pop %v1745
    %v1747 = vadd.f32 %v1746, 1.0
    %v1748 = vrcp.pop %v1747
    %v1749 = vmul.f32 1.0, %v1748
    %v1750 = vtanh.pop %v1743
    %v1751 = vmul.f32 %v1749, %v1644
    %v1753 = vrot.slane %v1750, 2
    %v1755 = vmul.f32 %v1749, %v1753
    %1757 = vrot.lane.b32.xlu0 %v1755, 64
    %v1758 = vpop.permute.xlu0 %1757
    %v1760 = vadd.f32 %v1751, %v1758
    %v1761 = vtanh.pop %v1760
    %1763 = vrot.lane.b32.xlu0 %v1749, 64
    %v1764 = vpop.permute.xlu0 %1763
    %v1765 = vrot.slane %v1764, 2
    %1768 = vrot.lane.b32.xlu0 %v1761, 64
    %v1769 = vpop.permute.xlu0 %1768
    %v1771 = vmul.f32 %v1765, %v1769
    %v1772 = vadd.f32 %v1656, %v1771
    %v1773 = vld [vmem:[%s711] sm:$0xf]
    %v1775 = vsel %vm122, %v1771, 0
    %1777 = vmatprep.subr.mxu0 %v714
    %1778 = vmatpush1.msra.mxu0 %v713
    %1779 = vmatprep.subr.mxu0 %v716
    %1780 = vmatpush1.msra.mxu0 %v715
    %1781 = vmatprep.subr.mxu0 %v718
    %1782 = vmatpush1.msra.mxu0 %v717
    %1783 = vmatprep.subr.mxu0 %v720
    %1784 = vmatpush1.msra.mxu0 %v719
    %1785 = vmatprep.subr.mxu0 %v722
    %1786 = vmatpush1.msra.mxu0 %v721
    %1787 = vmatprep.subr.mxu0 %v724
    %1788 = vmatpush1.msra.mxu0 %v723
    %1789 = vmatprep.subr.mxu0 %v726
    %1790 = vmatpush1.msra.mxu0 %v725
    %1791 = vmatprep.subr.mxu0 %v728
    %1792 = vmatpush1.msra.mxu0 %v727
    %1793 = vmatprep.subr.mxu0 0.0
    %1794 = vmatpush1.msra.mxu0 0.0
    %1795 = vmatprep.subr.mxu0 0.0
    %1796 = vmatpush1.msra.mxu0 0.0
    %1797 = vmatprep.subr.mxu0 0.0
    %1798 = vmatpush1.msra.mxu0 0.0
    %1799 = vmatprep.subr.mxu0 0.0
    %1800 = vmatpush1.msra.mxu0 0.0
    %1801 = vmatprep.subr.mxu0 0.0
    %1802 = vmatpush1.msra.mxu0 0.0
    %1803 = vmatprep.subr.mxu0 0.0
    %1804 = vmatpush1.msra.mxu0 0.0
    %1805 = vmatprep.subr.mxu0 0.0
    %1806 = vmatpush1.msra.mxu0 0.0
    %1807 = vmatprep.subr.mxu0 0.0
    %1808 = vmatpush1.msra.mxu0 0.0
    %1809 = vmatprep.subr.mxu0 0.0
    %1810 = vmatpush1.msra.mxu0 0.0
    %1811 = vmatprep.subr.mxu0 0.0
    %1812 = vmatpush1.msra.mxu0 0.0
    %1813 = vmatprep.subr.mxu0 0.0
    %1814 = vmatpush1.msra.mxu0 0.0
    %1815 = vmatprep.subr.mxu0 0.0
    %1816 = vmatpush1.msra.mxu0 0.0
    %1817 = vmatprep.subr.mxu0 0.0
    %1818 = vmatpush1.msra.mxu0 0.0
    %1819 = vmatprep.subr.mxu0 0.0
    %1820 = vmatpush1.msra.mxu0 0.0
    %1821 = vmatprep.subr.mxu0 0.0
    %1822 = vmatpush1.msra.mxu0 0.0
    %1823 = vmatprep.subr.mxu0 0.0
    %1824 = vmatpush1.msra.mxu0 0.0
    %1825 = vmatprep.subr.mxu0 0.0
    %1826 = vmatpush1.msra.mxu0 0.0
    %1827 = vmatprep.subr.mxu0 0.0
    %1828 = vmatpush1.msra.mxu0 0.0
    %1829 = vmatprep.subr.mxu0 0.0
    %1830 = vmatpush1.msra.mxu0 0.0
    %1831 = vmatprep.subr.mxu0 0.0
    %1832 = vmatpush1.msra.mxu0 0.0
    %1833 = vmatprep.subr.mxu0 0.0
    %1834 = vmatpush1.msra.mxu0 0.0
    %1835 = vmatprep.subr.mxu0 0.0
    %1836 = vmatpush1.msra.mxu0 0.0
    %1837 = vmatprep.subr.mxu0 0.0
    %1838 = vmatpush1.msra.mxu0 0.0
    %1839 = vmatprep.subr.mxu0 0.0
    %1840 = vmatpush1.msra.mxu0 0.0
    %1841 = vmatprep.mubr.f32.mxu0 0.0
    %1842 = vmatmul.mubr.f32.gmra.mrb[0].mxu0 %v1775
    %v1843 = vpop.f32.mrb[0].mxu0
    %v1844 = vadd.f32 0.0, %v1843
    %v1845 = vpop.f32.mrb[0].mxu0
    %v1846 = vadd.f32 0.0, %v1845
    %1847 = vdwg.mxu0
    %v1850 = vcombine.low %v1844, %v1846
    %v1852 = vunpack.c.l.s4 1983009808
    %v1853 = vunpack.c.0.s8 %v1852
    %v1854 = vlaneseq
    %v1855 = vshrl.u32 %v1854, 7
    %v1856 = vsub.s32 %v1853, %v1855
    %v1857 = vrot.slane %v1850, %v1856
    %v1859 = vadd.f32 %v1773, %v1857
    %v1860 = vxor.u32 %v1859, 2147483648
    %v1861 = vmul.f32 %v1860, 1.442695
    %v1862 = vpow.pop %v1861
    %v1863 = vadd.f32 %v1862, 1.0
    %v1864 = vrcp.pop %v1863
    %v1865 = vmul.f32 1.0, %v1864
    %v1866 = vtanh.pop %v1859
    %v1867 = vmul.f32 %v1865, %v1760
    %v1869 = vrot.slane %v1866, 2
    %v1871 = vmul.f32 %v1865, %v1869
    %1873 = vrot.lane.b32.xlu0 %v1871, 64
    %v1874 = vpop.permute.xlu0 %1873
    %v1876 = vadd.f32 %v1867, %v1874
    %v1877 = vtanh.pop %v1876
    %1879 = vrot.lane.b32.xlu0 %v1865, 64
    %v1880 = vpop.permute.xlu0 %1879
    %v1881 = vrot.slane %v1880, 2
    %1884 = vrot.lane.b32.xlu0 %v1877, 64
    %v1885 = vpop.permute.xlu0 %1884
    %v1887 = vmul.f32 %v1881, %v1885
    %v1888 = vadd.f32 %v1772, %v1887
    %v1889 = vmul.f32 %v1888, 0.1
    %v1890 = vld [vmem:[%s8] sm:$0xff]
    %v1891 = vld [vmem:[%s8 + $0x8] sm:$0xff]
    %v1892 = vld [vmem:[%s8 + $0x10] sm:$0xff]
    %v1893 = vld [vmem:[%s8 + $0x18] sm:$0xff]
    %v1894 = vld [vmem:[%s8 + $0x20] sm:$0xff]
    %v1895 = vld [vmem:[%s8 + $0x28] sm:$0xff]
    %v1896 = vld [vmem:[%s8 + $0x30] sm:$0xff]
    %v1897 = vld [vmem:[%s8 + $0x38] sm:$0xff]
    %v1898 = vld [vmem:[%s10] sm:$0xff]
    %v1899 = vld [vmem:[%s10 + $0x8] sm:$0xff]
    %v1900 = vld [vmem:[%s10 + $0x10] sm:$0xff]
    %v1901 = vld [vmem:[%s10 + $0x18] sm:$0xff]
    %v1902 = vld [vmem:[%s10 + $0x20] sm:$0xff]
    %v1903 = vld [vmem:[%s10 + $0x28] sm:$0xff]
    %v1904 = vld [vmem:[%s10 + $0x30] sm:$0xff]
    %v1905 = vld [vmem:[%s10 + $0x38] sm:$0xff]
    %v1906 = vld [vmem:[%s10 + $0x40] sm:$0xff]
    %v1907 = vld [vmem:[%s10 + $0x48] sm:$0xff]
    %v1908 = vld [vmem:[%s10 + $0x50] sm:$0xff]
    %v1909 = vld [vmem:[%s10 + $0x58] sm:$0xff]
    %v1910 = vld [vmem:[#allocation4] sm:$0x1]
    %v1911 = vld [vmem:[%s11] sm:$0x1]
    %v1912 = vld [vmem:[%s12] sm:$0xff]
    %v1913 = vld [vmem:[%s12 + $0x8] sm:$0xff]
    %v1914 = vld [vmem:[%s12 + $0x10] sm:$0xff]
    %v1915 = vld [vmem:[%s12 + $0x18] sm:$0xff]
    %v1916 = vld [vmem:[%s12 + $0x20] sm:$0xff]
    %v1917 = vld [vmem:[%s12 + $0x28] sm:$0xff]
    %v1918 = vld [vmem:[%s12 + $0x30] sm:$0xff]
    %v1919 = vld [vmem:[%s12 + $0x38] sm:$0xff]
    %v1920 = vld [vmem:[%s13] sm:$0x1]
    %v1921 = vld [vmem:[%s14] sm:$0xff]
    %v1922 = vld [vmem:[%s14 + $0x8] sm:$0xff]
    %v1923 = vld [vmem:[%s14 + $0x10] sm:$0xff]
    %v1924 = vld [vmem:[%s14 + $0x18] sm:$0xff]
    %v1925 = vld [vmem:[%s15] sm:$0x1]
    %v1926 = vld [vmem:[%s2] sm:$0xff]
    %v1927 = vld [vmem:[%s2 + $0x8] sm:$0xff]
    %v1928 = vld [vmem:[%s2 + $0x10] sm:$0xff]
    %1929 = vset.pattern.permute.xlu0 0
    %1930 = vperm.xlu0 %1929, %v1926
    %v1931 = vpop.permute.xlu0 %1930
    %1932 = vset.pattern.permute.xlu0 0
    %1933 = vperm.xlu0 %1932, %v1927
    %v1934 = vpop.permute.xlu0 %1933
    %1935 = vset.pattern.permute.xlu0 0
    %1936 = vperm.xlu0 %1935, %v1928
    %v1937 = vpop.permute.xlu0 %1936
    %vm1938 = vcmp.eq.s32.totalorder %v103, %v1931
    %vm1939 = vcmp.eq.s32.totalorder %v103, %v1934
    %vm1940 = vcmp.eq.s32.totalorder %v103, %v1937
    %v1941 = vsel %vm1938, 1, 0
    %v1942 = vsel %vm1939, 1, 0
    %v1943 = vsel %vm1940, 1, 0
    %v1944 = vcvt.s32.f32 %v1941
    %v1945 = vcvt.s32.f32 %v1942
    %v1946 = vcvt.s32.f32 %v1943
    %v1948 = vsel %vm122, %v1944, 0
    %v1951 = vsel %vm122, %v1945, 0
    %v1954 = vsel %vm122, %v1946, 0
    %1956 = vmatprep.subr.mxu0 0.0
    %1957 = vmatpush1.msra.mxu0 %v91
    %1958 = vmatprep.subr.mxu0 0.0
    %1959 = vmatpush1.msra.mxu0 %v92
    %1960 = vmatprep.subr.mxu0 0.0
    %1961 = vmatpush1.msra.mxu0 %v93
    %1962 = vmatprep.subr.mxu0 0.0
    %1963 = vmatpush1.msra.mxu0 %v94
    %1964 = vmatprep.subr.mxu0 0.0
    %1965 = vmatpush1.msra.mxu0 %v95
    %1966 = vmatprep.subr.mxu0 0.0
    %1967 = vmatpush1.msra.mxu0 %v96
    %1968 = vmatprep.subr.mxu0 0.0
    %1969 = vmatpush1.msra.mxu0 %v97
    %1970 = vmatprep.subr.mxu0 0.0
    %1971 = vmatpush1.msra.mxu0 %v98
    %1972 = vmatprep.subr.mxu0 0.0
    %1973 = vmatpush1.msra.mxu0 0.0
    %1974 = vmatprep.subr.mxu0 0.0
    %1975 = vmatpush1.msra.mxu0 0.0
    %1976 = vmatprep.subr.mxu0 0.0
    %1977 = vmatpush1.msra.mxu0 0.0
    %1978 = vmatprep.subr.mxu0 0.0
    %1979 = vmatpush1.msra.mxu0 0.0
    %1980 = vmatprep.subr.mxu0 0.0
    %1981 = vmatpush1.msra.mxu0 0.0
    %1982 = vmatprep.subr.mxu0 0.0
    %1983 = vmatpush1.msra.mxu0 0.0
    %1984 = vmatprep.subr.mxu0 0.0
    %1985 = vmatpush1.msra.mxu0 0.0
    %1986 = vmatprep.subr.mxu0 0.0
    %1987 = vmatpush1.msra.mxu0 0.0
    %1988 = vmatprep.subr.mxu0 0.0
    %1989 = vmatpush1.msra.mxu0 0.0
    %1990 = vmatprep.subr.mxu0 0.0
    %1991 = vmatpush1.msra.mxu0 0.0
    %1992 = vmatprep.subr.mxu0 0.0
    %1993 = vmatpush1.msra.mxu0 0.0
    %1994 = vmatprep.subr.mxu0 0.0
    %1995 = vmatpush1.msra.mxu0 0.0
    %1996 = vmatprep.subr.mxu0 0.0
    %1997 = vmatpush1.msra.mxu0 0.0
    %1998 = vmatprep.subr.mxu0 0.0
    %1999 = vmatpush1.msra.mxu0 0.0
    %2000 = vmatprep.subr.mxu0 0.0
    %2001 = vmatpush1.msra.mxu0 0.0
    %2002 = vmatprep.subr.mxu0 0.0
    %2003 = vmatpush1.msra.mxu0 0.0
    %2004 = vmatprep.subr.mxu0 0.0
    %2005 = vmatpush1.msra.mxu0 0.0
    %2006 = vmatprep.subr.mxu0 0.0
    %2007 = vmatpush1.msra.mxu0 0.0
    %2008 = vmatprep.subr.mxu0 0.0
    %2009 = vmatpush1.msra.mxu0 0.0
    %2010 = vmatprep.subr.mxu0 0.0
    %2011 = vmatpush1.msra.mxu0 0.0
    %2012 = vmatprep.subr.mxu0 0.0
    %2013 = vmatpush1.msra.mxu0 0.0
    %2014 = vmatprep.subr.mxu0 0.0
    %2015 = vmatpush1.msra.mxu0 0.0
    %2016 = vmatprep.subr.mxu0 0.0
    %2017 = vmatpush1.msra.mxu0 0.0
    %2018 = vmatprep.subr.mxu0 0.0
    %2019 = vmatpush1.msra.mxu0 0.0
    %2020 = vmatprep.mubr.f32.mxu0 0.0
    %2021 = vmatmul.mubr.f32.gmra.mrb[0].mxu0 %v1948
    %v2022 = vpop.f32.mrb[0].mxu0
    %v2023 = vadd.f32 0.0, %v2022
    %v2024 = vpop.f32.mrb[0].mxu0
    %2025 = vmatprep.mubr.f32.mxu0 0.0
    %2026 = vmatmul.mubr.f32.gmra.mrb[0].mxu0 %v1951
    %v2027 = vpop.f32.mrb[0].mxu0
    %v2028 = vadd.f32 0.0, %v2027
    %v2029 = vpop.f32.mrb[0].mxu0
    %2030 = vmatprep.mubr.f32.mxu0 0.0
    %2031 = vmatmul.mubr.f32.gmra.mrb[0].mxu0 %v1954
    %v2032 = vpop.f32.mrb[0].mxu0
    %v2033 = vadd.f32 0.0, %v2032
    %v2034 = vpop.f32.mrb[0].mxu0
    %2035 = vdwg.mxu0
    %v2039 = vcombine.high %v2023, %v2023
    %v2040 = vcombine.high %v2028, %v2028
    %v2041 = vcombine.high %v2033, %v2033
    %v2043 = vcombine.low %v2023, %v2039
    %v2044 = vcombine.low %v2040, %v2033
    %vm2047 = vcmask 1046528
    %v2048 = vrot.slane %v2043, 1
    %v2049 = vrot.slane %v2028, 1
    %v2050 = vsel %vm2047, %v2048, %v2049
    %v2051 = vrot.slane %v2044, 1
    %v2052 = vrot.slane %v2041, 1
    %v2053 = vsel %vm2047, %v2051, %v2052
    %2054 = vrot.lane.b32.xlu0 %v2050, 32
    %v2055 = vpop.permute.xlu0 %2054
    %2056 = vrot.lane.b32.xlu0 %v2049, 32
    %v2057 = vpop.permute.xlu0 %2056
    %2058 = vrot.lane.b32.xlu0 %v2053, 32
    %v2059 = vpop.permute.xlu0 %2058
    %2060 = vrot.lane.b32.xlu0 %v2052, 32
    %v2061 = vpop.permute.xlu0 %2060
    %v2066 = vsel %vm232, %v2043, %v2055
    %v2067 = vsel %vm232, %v2028, %v2057
    %v2068 = vsel %vm232, %v2044, %v2059
    %v2069 = vsel %vm232, %v2041, %v2061
    %v2074 = vcombine.high %v2066, %v2066
    %v2076 = vunpack.c.l.s4 1966171168
    %v2077 = vunpack.c.0.s8 %v2076
    %v2078 = vlaneseq
    %v2079 = vshrl.u32 %v2078, 7
    %v2080 = vsub.s32 %v2077, %v2079
    %v2081 = vrot.slane %v2066, %v2080
    %v2083 = vunpack.c.l.s4 1966171168
    %v2084 = vunpack.c.0.s8 %v2083
    %v2085 = vlaneseq
    %v2086 = vshrl.u32 %v2085, 7
    %v2087 = vsub.s32 %v2084, %v2086
    %v2088 = vrot.slane %v2074, %v2087
    %v2089 = vcombine.high %v2081, %v2081
    %v2090 = vcombine.high %v2088, %v2088
    %v2092 = vunpack.c.l.s4 1966171168
    %v2093 = vunpack.c.0.s8 %v2092
    %v2094 = vlaneseq
    %v2095 = vshrl.u32 %v2094, 7
    %v2096 = vsub.s32 %v2093, %v2095
    %v2097 = vrot.slane %v2081, %v2096
    %v2099 = vunpack.c.l.s4 1966171168
    %v2100 = vunpack.c.0.s8 %v2099
    %v2101 = vlaneseq
    %v2102 = vshrl.u32 %v2101, 7
    %v2103 = vsub.s32 %v2100, %v2102
    %v2104 = vrot.slane %v2088, %v2103
    %v2106 = vunpack.c.l.s4 1966171168
    %v2107 = vunpack.c.0.s8 %v2106
    %v2108 = vlaneseq
    %v2109 = vshrl.u32 %v2108, 7
    %v2110 = vsub.s32 %v2107, %v2109
    %v2111 = vrot.slane %v2089, %v2110
    %v2113 = vunpack.c.l.s4 1966171168
    %v2114 = vunpack.c.0.s8 %v2113
    %v2115 = vlaneseq
    %v2116 = vshrl.u32 %v2115, 7
    %v2117 = vsub.s32 %v2114, %v2116
    %v2118 = vrot.slane %v2090, %v2117
    %v2119 = vcombine.high %v2097, %v2097
    %v2120 = vcombine.high %v2104, %v2104
    %v2121 = vcombine.high %v2111, %v2111
    %v2122 = vcombine.high %v2118, %v2118
    %v2124 = vunpack.c.l.s4 1966171168
    %v2125 = vunpack.c.0.s8 %v2124
    %v2126 = vlaneseq
    %v2127 = vshrl.u32 %v2126, 7
    %v2128 = vsub.s32 %v2125, %v2127
    %v2129 = vrot.slane %v2067, %v2128
    %v2130 = vcombine.high %v2129, %v2129
    %v2132 = vunpack.c.l.s4 1966171168
    %v2133 = vunpack.c.0.s8 %v2132
    %v2134 = vlaneseq
    %v2135 = vshrl.u32 %v2134, 7
    %v2136 = vsub.s32 %v2133, %v2135
    %v2137 = vrot.slane %v2129, %v2136
    %v2139 = vunpack.c.l.s4 1966171168
    %v2140 = vunpack.c.0.s8 %v2139
    %v2141 = vlaneseq
    %v2142 = vshrl.u32 %v2141, 7
    %v2143 = vsub.s32 %v2140, %v2142
    %v2144 = vrot.slane %v2130, %v2143
    %v2145 = vcombine.high %v2137, %v2137
    %v2146 = vcombine.high %v2068, %v2068
    %v2148 = vunpack.c.l.s4 1966171168
    %v2149 = vunpack.c.0.s8 %v2148
    %v2150 = vlaneseq
    %v2151 = vshrl.u32 %v2150, 7
    %v2152 = vsub.s32 %v2149, %v2151
    %v2153 = vrot.slane %v2068, %v2152
    %v2155 = vunpack.c.l.s4 1966171168
    %v2156 = vunpack.c.0.s8 %v2155
    %v2157 = vlaneseq
    %v2158 = vshrl.u32 %v2157, 7
    %v2159 = vsub.s32 %v2156, %v2158
    %v2160 = vrot.slane %v2146, %v2159
    %v2161 = vcombine.high %v2153, %v2153
    %v2162 = vcombine.high %v2160, %v2160
    %v2164 = vunpack.c.l.s4 1966171168
    %v2165 = vunpack.c.0.s8 %v2164
    %v2166 = vlaneseq
    %v2167 = vshrl.u32 %v2166, 7
    %v2168 = vsub.s32 %v2165, %v2167
    %v2169 = vrot.slane %v2153, %v2168
    %v2171 = vunpack.c.l.s4 1966171168
    %v2172 = vunpack.c.0.s8 %v2171
    %v2173 = vlaneseq
    %v2174 = vshrl.u32 %v2173, 7
    %v2175 = vsub.s32 %v2172, %v2174
    %v2176 = vrot.slane %v2160, %v2175
    %v2178 = vunpack.c.l.s4 1966171168
    %v2179 = vunpack.c.0.s8 %v2178
    %v2180 = vlaneseq
    %v2181 = vshrl.u32 %v2180, 7
    %v2182 = vsub.s32 %v2179, %v2181
    %v2183 = vrot.slane %v2161, %v2182
    %v2185 = vunpack.c.l.s4 1966171168
    %v2186 = vunpack.c.0.s8 %v2185
    %v2187 = vlaneseq
    %v2188 = vshrl.u32 %v2187, 7
    %v2189 = vsub.s32 %v2186, %v2188
    %v2190 = vrot.slane %v2162, %v2189
    %v2191 = vcombine.high %v2169, %v2169
    %v2192 = vcombine.high %v2176, %v2176
    %v2193 = vcombine.high %v2183, %v2183
    %v2194 = vcombine.high %v2190, %v2190
    %v2196 = vunpack.c.l.s4 1966171168
    %v2197 = vunpack.c.0.s8 %v2196
    %v2198 = vlaneseq
    %v2199 = vshrl.u32 %v2198, 7
    %v2200 = vsub.s32 %v2197, %v2199
    %v2201 = vrot.slane %v2069, %v2200
    %v2202 = vcombine.high %v2201, %v2201
    %v2204 = vunpack.c.l.s4 1966171168
    %v2205 = vunpack.c.0.s8 %v2204
    %v2206 = vlaneseq
    %v2207 = vshrl.u32 %v2206, 7
    %v2208 = vsub.s32 %v2205, %v2207
    %v2209 = vrot.slane %v2201, %v2208
    %v2211 = vunpack.c.l.s4 1966171168
    %v2212 = vunpack.c.0.s8 %v2211
    %v2213 = vlaneseq
    %v2214 = vshrl.u32 %v2213, 7
    %v2215 = vsub.s32 %v2212, %v2214
    %v2216 = vrot.slane %v2202, %v2215
    %v2217 = vcombine.high %v2209, %v2209
    %v2218 = vcombine.low %v2097, %v2111
    %v2219 = vcombine.low %v2119, %v2121
    %v2220 = vcombine.low %v2104, %v2118
    %v2221 = vcombine.low %v2120, %v2122
    %v2223 = vunpack.c.l.s4 1966171168
    %v2224 = vunpack.c.0.s8 %v2223
    %v2225 = vlaneseq
    %v2226 = vshrl.u32 %v2225, 7
    %v2227 = vsub.s32 %v2224, %v2226
    %v2228 = vrot.slane %v2218, %v2227
    %v2230 = vunpack.c.l.s4 1966171168
    %v2231 = vunpack.c.0.s8 %v2230
    %v2232 = vlaneseq
    %v2233 = vshrl.u32 %v2232, 7
    %v2234 = vsub.s32 %v2231, %v2233
    %v2235 = vrot.slane %v2219, %v2234
    %v2237 = vunpack.c.l.s4 1966171168
    %v2238 = vunpack.c.0.s8 %v2237
    %v2239 = vlaneseq
    %v2240 = vshrl.u32 %v2239, 7
    %v2241 = vsub.s32 %v2238, %v2240
    %v2242 = vrot.slane %v2220, %v2241
    %v2244 = vunpack.c.l.s4 1966171168
    %v2245 = vunpack.c.0.s8 %v2244
    %v2246 = vlaneseq
    %v2247 = vshrl.u32 %v2246, 7
    %v2248 = vsub.s32 %v2245, %v2247
    %v2249 = vrot.slane %v2221, %v2248
    %v2250 = vcombine.low %v2228, %v2235
    %v2251 = vcombine.low %v2242, %v2249
    %v2253 = vunpack.c.l.s4 1966171168
    %v2254 = vunpack.c.0.s8 %v2253
    %v2255 = vlaneseq
    %v2256 = vshrl.u32 %v2255, 7
    %v2257 = vsub.s32 %v2254, %v2256
    %v2258 = vrot.slane %v2250, %v2257
    %v2260 = vunpack.c.l.s4 1966171168
    %v2261 = vunpack.c.0.s8 %v2260
    %v2262 = vlaneseq
    %v2263 = vshrl.u32 %v2262, 7
    %v2264 = vsub.s32 %v2261, %v2263
    %v2265 = vrot.slane %v2251, %v2264
    %v2266 = vcombine.low %v2258, %v2265
    %v2267 = vcombine.low %v2137, %v2144
    %v2268 = vcombine.low %v2145, %v2169
    %v2269 = vcombine.low %v2183, %v2191
    %v2270 = vcombine.low %v2193, %v2176
    %v2272 = vunpack.c.l.s4 1966171168
    %v2273 = vunpack.c.0.s8 %v2272
    %v2274 = vlaneseq
    %v2275 = vshrl.u32 %v2274, 7
    %v2276 = vsub.s32 %v2273, %v2275
    %v2277 = vrot.slane %v2267, %v2276
    %v2279 = vunpack.c.l.s4 1966171168
    %v2280 = vunpack.c.0.s8 %v2279
    %v2281 = vlaneseq
    %v2282 = vshrl.u32 %v2281, 7
    %v2283 = vsub.s32 %v2280, %v2282
    %v2284 = vrot.slane %v2268, %v2283
    %v2286 = vunpack.c.l.s4 1966171168
    %v2287 = vunpack.c.0.s8 %v2286
    %v2288 = vlaneseq
    %v2289 = vshrl.u32 %v2288, 7
    %v2290 = vsub.s32 %v2287, %v2289
    %v2291 = vrot.slane %v2269, %v2290
    %v2293 = vunpack.c.l.s4 1966171168
    %v2294 = vunpack.c.0.s8 %v2293
    %v2295 = vlaneseq
    %v2296 = vshrl.u32 %v2295, 7
    %v2297 = vsub.s32 %v2294, %v2296
    %v2298 = vrot.slane %v2270, %v2297
    %v2299 = vcombine.low %v2277, %v2284
    %v2300 = vcombine.low %v2291, %v2298
    %v2302 = vunpack.c.l.s4 1966171168
    %v2303 = vunpack.c.0.s8 %v2302
    %v2304 = vlaneseq
    %v2305 = vshrl.u32 %v2304, 7
    %v2306 = vsub.s32 %v2303, %v2305
    %v2307 = vrot.slane %v2299, %v2306
    %v2309 = vunpack.c.l.s4 1966171168
    %v2310 = vunpack.c.0.s8 %v2309
    %v2311 = vlaneseq
    %v2312 = vshrl.u32 %v2311, 7
    %v2313 = vsub.s32 %v2310, %v2312
    %v2314 = vrot.slane %v2300, %v2313
    %v2315 = vcombine.low %v2307, %v2314
    %v2316 = vcombine.low %v2190, %v2192
    %v2317 = vcombine.low %v2194, %v2209
    %v2318 = vcombine.low %v2216, %v2217
    %v2320 = vunpack.c.l.s4 1966171168
    %v2321 = vunpack.c.0.s8 %v2320
    %v2322 = vlaneseq
    %v2323 = vshrl.u32 %v2322, 7
    %v2324 = vsub.s32 %v2321, %v2323
    %v2325 = vrot.slane %v2316, %v2324
    %v2327 = vunpack.c.l.s4 1966171168
    %v2328 = vunpack.c.0.s8 %v2327
    %v2329 = vlaneseq
    %v2330 = vshrl.u32 %v2329, 7
    %v2331 = vsub.s32 %v2328, %v2330
    %v2332 = vrot.slane %v2317, %v2331
    %v2334 = vunpack.c.l.s4 1966171168
    %v2335 = vunpack.c.0.s8 %v2334
    %v2336 = vlaneseq
    %v2337 = vshrl.u32 %v2336, 7
    %v2338 = vsub.s32 %v2335, %v2337
    %v2339 = vrot.slane %v2318, %v2338
    %v2340 = vcombine.low %v2325, %v2332
    %v2342 = vunpack.c.l.s4 1966171168
    %v2343 = vunpack.c.0.s8 %v2342
    %v2344 = vlaneseq
    %v2345 = vshrl.u32 %v2344, 7
    %v2346 = vsub.s32 %v2343, %v2345
    %v2347 = vrot.slane %v2340, %v2346
    %v2349 = vunpack.c.l.s4 1966171168
    %v2350 = vunpack.c.0.s8 %v2349
    %v2351 = vlaneseq
    %v2352 = vshrl.u32 %v2351, 7
    %v2353 = vsub.s32 %v2350, %v2352
    %v2354 = vrot.slane %v2339, %v2353
    %v2355 = vcombine.low %v2347, %v2354
    %v2356 = vsel %vm122, %v2266, 0
    %v2358 = vsel %vm122, %v2315, 0
    %v2360 = vsel %vm122, %v2355, 0
    %2362 = vmatprep.subr.mxu0 0.0
    %2363 = vmatpush1.msra.mxu0 %v1890
    %2364 = vmatprep.subr.mxu0 0.0
    %2365 = vmatpush1.msra.mxu0 %v1891
    %2366 = vmatprep.subr.mxu0 0.0
    %2367 = vmatpush1.msra.mxu0 %v1892
    %2368 = vmatprep.subr.mxu0 0.0
    %2369 = vmatpush1.msra.mxu0 %v1893
    %2370 = vmatprep.subr.mxu0 0.0
    %2371 = vmatpush1.msra.mxu0 %v1894
    %2372 = vmatprep.subr.mxu0 0.0
    %2373 = vmatpush1.msra.mxu0 %v1895
    %2374 = vmatprep.subr.mxu0 0.0
    %2375 = vmatpush1.msra.mxu0 %v1896
    %2376 = vmatprep.subr.mxu0 0.0
    %2377 = vmatpush1.msra.mxu0 %v1897
    %2378 = vmatprep.subr.mxu0 0.0
    %2379 = vmatpush1.msra.mxu0 0.0
    %2380 = vmatprep.subr.mxu0 0.0
    %2381 = vmatpush1.msra.mxu0 0.0
    %2382 = vmatprep.subr.mxu0 0.0
    %2383 = vmatpush1.msra.mxu0 0.0
    %2384 = vmatprep.subr.mxu0 0.0
    %2385 = vmatpush1.msra.mxu0 0.0
    %2386 = vmatprep.subr.mxu0 0.0
    %2387 = vmatpush1.msra.mxu0 0.0
    %2388 = vmatprep.subr.mxu0 0.0
    %2389 = vmatpush1.msra.mxu0 0.0
    %2390 = vmatprep.subr.mxu0 0.0
    %2391 = vmatpush1.msra.mxu0 0.0
    %2392 = vmatprep.subr.mxu0 0.0
    %2393 = vmatpush1.msra.mxu0 0.0
    %2394 = vmatprep.subr.mxu0 0.0
    %2395 = vmatpush1.msra.mxu0 0.0
    %2396 = vmatprep.subr.mxu0 0.0
    %2397 = vmatpush1.msra.mxu0 0.0
    %2398 = vmatprep.subr.mxu0 0.0
    %2399 = vmatpush1.msra.mxu0 0.0
    %2400 = vmatprep.subr.mxu0 0.0
    %2401 = vmatpush1.msra.mxu0 0.0
    %2402 = vmatprep.subr.mxu0 0.0
    %2403 = vmatpush1.msra.mxu0 0.0
    %2404 = vmatprep.subr.mxu0 0.0
    %2405 = vmatpush1.msra.mxu0 0.0
    %2406 = vmatprep.subr.mxu0 0.0
    %2407 = vmatpush1.msra.mxu0 0.0
    %2408 = vmatprep.subr.mxu0 0.0
    %2409 = vmatpush1.msra.mxu0 0.0
    %2410 = vmatprep.subr.mxu0 0.0
    %2411 = vmatpush1.msra.mxu0 0.0
    %2412 = vmatprep.subr.mxu0 0.0
    %2413 = vmatpush1.msra.mxu0 0.0
    %2414 = vmatprep.subr.mxu0 0.0
    %2415 = vmatpush1.msra.mxu0 0.0
    %2416 = vmatprep.subr.mxu0 0.0
    %2417 = vmatpush1.msra.mxu0 0.0
    %2418 = vmatprep.subr.mxu0 0.0
    %2419 = vmatpush1.msra.mxu0 0.0
    %2420 = vmatprep.subr.mxu0 0.0
    %2421 = vmatpush1.msra.mxu0 0.0
    %2422 = vmatprep.subr.mxu0 0.0
    %2423 = vmatpush1.msra.mxu0 0.0
    %2424 = vmatprep.subr.mxu0 0.0
    %2425 = vmatpush1.msra.mxu0 0.0
    %2426 = vmatprep.mubr.f32.mxu0 0.0
    %2427 = vmatmul.mubr.f32.gmra.mrb[0].mxu0 %v2356
    %v2428 = vpop.f32.mrb[0].mxu0
    %v2429 = vadd.f32 0.0, %v2428
    %v2430 = vpop.f32.mrb[0].mxu0
    %2431 = vmatprep.mubr.f32.mxu0 0.0
    %2432 = vmatmul.mubr.f32.gmra.mrb[0].mxu0 %v2358
    %v2433 = vpop.f32.mrb[0].mxu0
    %v2434 = vadd.f32 0.0, %v2433
    %v2435 = vpop.f32.mrb[0].mxu0
    %2436 = vmatprep.mubr.f32.mxu0 0.0
    %2437 = vmatmul.mubr.f32.gmra.mrb[0].mxu0 %v2360
    %v2438 = vpop.f32.mrb[0].mxu0
    %v2439 = vadd.f32 0.0, %v2438
    %v2440 = vpop.f32.mrb[0].mxu0
    %2441 = vdwg.mxu0
    %v2445 = vcombine.high %v2429, %v2429
    %v2447 = vunpack.c.l.s4 1966171168
    %v2448 = vunpack.c.0.s8 %v2447
    %v2449 = vlaneseq
    %v2450 = vshrl.u32 %v2449, 7
    %v2451 = vsub.s32 %v2448, %v2450
    %v2452 = vrot.slane %v2429, %v2451
    %v2454 = vunpack.c.l.s4 1966171168
    %v2455 = vunpack.c.0.s8 %v2454
    %v2456 = vlaneseq
    %v2457 = vshrl.u32 %v2456, 7
    %v2458 = vsub.s32 %v2455, %v2457
    %v2459 = vrot.slane %v2445, %v2458
    %v2460 = vcombine.high %v2452, %v2452
    %v2461 = vcombine.high %v2459, %v2459
    %v2463 = vunpack.c.l.s4 1966171168
    %v2464 = vunpack.c.0.s8 %v2463
    %v2465 = vlaneseq
    %v2466 = vshrl.u32 %v2465, 7
    %v2467 = vsub.s32 %v2464, %v2466
    %v2468 = vrot.slane %v2452, %v2467
    %v2470 = vunpack.c.l.s4 1966171168
    %v2471 = vunpack.c.0.s8 %v2470
    %v2472 = vlaneseq
    %v2473 = vshrl.u32 %v2472, 7
    %v2474 = vsub.s32 %v2471, %v2473
    %v2475 = vrot.slane %v2459, %v2474
    %v2477 = vunpack.c.l.s4 1966171168
    %v2478 = vunpack.c.0.s8 %v2477
    %v2479 = vlaneseq
    %v2480 = vshrl.u32 %v2479, 7
    %v2481 = vsub.s32 %v2478, %v2480
    %v2482 = vrot.slane %v2460, %v2481
    %v2484 = vunpack.c.l.s4 1966171168
    %v2485 = vunpack.c.0.s8 %v2484
    %v2486 = vlaneseq
    %v2487 = vshrl.u32 %v2486, 7
    %v2488 = vsub.s32 %v2485, %v2487
    %v2489 = vrot.slane %v2461, %v2488
    %v2490 = vcombine.high %v2468, %v2468
    %v2491 = vcombine.high %v2475, %v2475
    %v2492 = vcombine.high %v2482, %v2482
    %v2493 = vcombine.high %v2489, %v2489
    %v2494 = vcombine.high %v2434, %v2434
    %v2496 = vunpack.c.l.s4 1966171168
    %v2497 = vunpack.c.0.s8 %v2496
    %v2498 = vlaneseq
    %v2499 = vshrl.u32 %v2498, 7
    %v2500 = vsub.s32 %v2497, %v2499
    %v2501 = vrot.slane %v2434, %v2500
    %v2503 = vunpack.c.l.s4 1966171168
    %v2504 = vunpack.c.0.s8 %v2503
    %v2505 = vlaneseq
    %v2506 = vshrl.u32 %v2505, 7
    %v2507 = vsub.s32 %v2504, %v2506
    %v2508 = vrot.slane %v2494, %v2507
    %v2509 = vcombine.high %v2501, %v2501
    %v2510 = vcombine.high %v2508, %v2508
    %v2512 = vunpack.c.l.s4 1966171168
    %v2513 = vunpack.c.0.s8 %v2512
    %v2514 = vlaneseq
    %v2515 = vshrl.u32 %v2514, 7
    %v2516 = vsub.s32 %v2513, %v2515
    %v2517 = vrot.slane %v2501, %v2516
    %v2519 = vunpack.c.l.s4 1966171168
    %v2520 = vunpack.c.0.s8 %v2519
    %v2521 = vlaneseq
    %v2522 = vshrl.u32 %v2521, 7
    %v2523 = vsub.s32 %v2520, %v2522
    %v2524 = vrot.slane %v2508, %v2523
    %v2526 = vunpack.c.l.s4 1966171168
    %v2527 = vunpack.c.0.s8 %v2526
    %v2528 = vlaneseq
    %v2529 = vshrl.u32 %v2528, 7
    %v2530 = vsub.s32 %v2527, %v2529
    %v2531 = vrot.slane %v2509, %v2530
    %v2533 = vunpack.c.l.s4 1966171168
    %v2534 = vunpack.c.0.s8 %v2533
    %v2535 = vlaneseq
    %v2536 = vshrl.u32 %v2535, 7
    %v2537 = vsub.s32 %v2534, %v2536
    %v2538 = vrot.slane %v2510, %v2537
    %v2539 = vcombine.high %v2517, %v2517
    %v2540 = vcombine.high %v2524, %v2524
    %v2541 = vcombine.high %v2531, %v2531
    %v2542 = vcombine.high %v2538, %v2538
    %v2543 = vcombine.high %v2439, %v2439
    %v2545 = vunpack.c.l.s4 1966171168
    %v2546 = vunpack.c.0.s8 %v2545
    %v2547 = vlaneseq
    %v2548 = vshrl.u32 %v2547, 7
    %v2549 = vsub.s32 %v2546, %v2548
    %v2550 = vrot.slane %v2439, %v2549
    %v2552 = vunpack.c.l.s4 1966171168
    %v2553 = vunpack.c.0.s8 %v2552
    %v2554 = vlaneseq
    %v2555 = vshrl.u32 %v2554, 7
    %v2556 = vsub.s32 %v2553, %v2555
    %v2557 = vrot.slane %v2543, %v2556
    %v2558 = vcombine.high %v2550, %v2550
    %v2559 = vcombine.high %v2557, %v2557
    %v2561 = vunpack.c.l.s4 1966171168
    %v2562 = vunpack.c.0.s8 %v2561
    %v2563 = vlaneseq
    %v2564 = vshrl.u32 %v2563, 7
    %v2565 = vsub.s32 %v2562, %v2564
    %v2566 = vrot.slane %v2550, %v2565
    %v2568 = vunpack.c.l.s4 1966171168
    %v2569 = vunpack.c.0.s8 %v2568
    %v2570 = vlaneseq
    %v2571 = vshrl.u32 %v2570, 7
    %v2572 = vsub.s32 %v2569, %v2571
    %v2573 = vrot.slane %v2557, %v2572
    %v2575 = vunpack.c.l.s4 1966171168
    %v2576 = vunpack.c.0.s8 %v2575
    %v2577 = vlaneseq
    %v2578 = vshrl.u32 %v2577, 7
    %v2579 = vsub.s32 %v2576, %v2578
    %v2580 = vrot.slane %v2558, %v2579
    %v2582 = vunpack.c.l.s4 1966171168
    %v2583 = vunpack.c.0.s8 %v2582
    %v2584 = vlaneseq
    %v2585 = vshrl.u32 %v2584, 7
    %v2586 = vsub.s32 %v2583, %v2585
    %v2587 = vrot.slane %v2559, %v2586
    %v2588 = vcombine.high %v2566, %v2566
    %v2589 = vcombine.high %v2580, %v2580
    %v2613 = vlaneseq
    %v2614 = vshrl.u32 %v2613, 7
    %v2615 = vsub.s32 0, %v2614
    %v2616 = vrot.slane %v1910, %v2615
    %v2617 = vcombine.high %v2616, %v2616
    %v2619 = vunpack.c.l.s4 1966171168
    %v2620 = vunpack.c.0.s8 %v2619
    %v2621 = vlaneseq
    %v2622 = vshrl.u32 %v2621, 7
    %v2623 = vsub.s32 %v2620, %v2622
    %v2624 = vrot.slane %v2616, %v2623
    %v2626 = vunpack.c.l.s4 1966171168
    %v2627 = vunpack.c.0.s8 %v2626
    %v2628 = vlaneseq
    %v2629 = vshrl.u32 %v2628, 7
    %v2630 = vsub.s32 %v2627, %v2629
    %v2631 = vrot.slane %v2617, %v2630
    %v2632 = vcombine.high %v2624, %v2624
    %v2633 = vcombine.high %v2631, %v2631
    %v2635 = vunpack.c.l.s4 1966171168
    %v2636 = vunpack.c.0.s8 %v2635
    %v2637 = vlaneseq
    %v2638 = vshrl.u32 %v2637, 7
    %v2639 = vsub.s32 %v2636, %v2638
    %v2640 = vrot.slane %v2624, %v2639
    %v2642 = vunpack.c.l.s4 1966171168
    %v2643 = vunpack.c.0.s8 %v2642
    %v2644 = vlaneseq
    %v2645 = vshrl.u32 %v2644, 7
    %v2646 = vsub.s32 %v2643, %v2645
    %v2647 = vrot.slane %v2631, %v2646
    %v2649 = vunpack.c.l.s4 1966171168
    %v2650 = vunpack.c.0.s8 %v2649
    %v2651 = vlaneseq
    %v2652 = vshrl.u32 %v2651, 7
    %v2653 = vsub.s32 %v2650, %v2652
    %v2654 = vrot.slane %v2632, %v2653
    %v2656 = vunpack.c.l.s4 1966171168
    %v2657 = vunpack.c.0.s8 %v2656
    %v2658 = vlaneseq
    %v2659 = vshrl.u32 %v2658, 7
    %v2660 = vsub.s32 %v2657, %v2659
    %v2661 = vrot.slane %v2633, %v2660
    %v2662 = vcombine.high %v2640, %v2640
    %v2663 = vcombine.high %v2647, %v2647
    %v2664 = vcombine.high %v2654, %v2654
    %v2665 = vcombine.high %v2661, %v2661
    %v2674 = vadd.f32 %v2468, %v2640
    %v2675 = vadd.f32 %v2482, %v2654
    %v2676 = vadd.f32 %v2490, %v2662
    %v2677 = vadd.f32 %v2492, %v2664
    %v2678 = vadd.f32 %v2475, %v2647
    %v2679 = vadd.f32 %v2489, %v2661
    %v2680 = vadd.f32 %v2491, %v2663
    %v2681 = vadd.f32 %v2493, %v2665
    %v2682 = vadd.f32 %v2517, %v2640
    %v2683 = vadd.f32 %v2531, %v2654
    %v2684 = vadd.f32 %v2539, %v2662
    %v2685 = vadd.f32 %v2541, %v2640
    %v2686 = vadd.f32 %v2524, %v2654
    %v2687 = vadd.f32 %v2538, %v2662
    %v2688 = vadd.f32 %v2540, %v2664
    %v2689 = vadd.f32 %v2542, %v2647
    %v2690 = vadd.f32 %v2566, %v2661
    %v2691 = vadd.f32 %v2580, %v2663
    %v2692 = vadd.f32 %v2588, %v2665
    %v2693 = vadd.f32 %v2589, %v2640
    %v2694 = vadd.f32 %v2573, %v2654
    %v2695 = vadd.f32 %v2587, %v2662
    %v2696 = vmax.f32 %v2674, 0.0
    %v2697 = vmax.f32 %v2675, 0.0
    %v2698 = vmax.f32 %v2676, 0.0
    %v2699 = vmax.f32 %v2677, 0.0
    %v2700 = vmax.f32 %v2678, 0.0
    %v2701 = vmax.f32 %v2679, 0.0
    %v2702 = vmax.f32 %v2680, 0.0
    %v2703 = vmax.f32 %v2681, 0.0
    %v2704 = vmax.f32 %v2682, 0.0
    %v2705 = vmax.f32 %v2683, 0.0
    %v2706 = vmax.f32 %v2684, 0.0
    %v2707 = vmax.f32 %v2685, 0.0
    %v2708 = vmax.f32 %v2686, 0.0
    %v2709 = vmax.f32 %v2687, 0.0
    %v2710 = vmax.f32 %v2688, 0.0
    %v2711 = vmax.f32 %v2689, 0.0
    %v2712 = vmax.f32 %v2690, 0.0
    %v2713 = vmax.f32 %v2691, 0.0
    %v2714 = vmax.f32 %v2692, 0.0
    %v2715 = vmax.f32 %v2693, 0.0
    %v2716 = vmax.f32 %v2694, 0.0
    %v2717 = vmax.f32 %v2695, 0.0
    %v2740 = vcombine.low %v2696, %v2697
    %v2741 = vcombine.low %v2698, %v2699
    %v2742 = vcombine.low %v2700, %v2701
    %v2743 = vcombine.low %v2702, %v2703
    %v2745 = vunpack.c.l.s4 1966171168
    %v2746 = vunpack.c.0.s8 %v2745
    %v2747 = vlaneseq
    %v2748 = vshrl.u32 %v2747, 7
    %v2749 = vsub.s32 %v2746, %v2748
    %v2750 = vrot.slane %v2740, %v2749
    %v2752 = vunpack.c.l.s4 1966171168
    %v2753 = vunpack.c.0.s8 %v2752
    %v2754 = vlaneseq
    %v2755 = vshrl.u32 %v2754, 7
    %v2756 = vsub.s32 %v2753, %v2755
    %v2757 = vrot.slane %v2741, %v2756
    %v2759 = vunpack.c.l.s4 1966171168
    %v2760 = vunpack.c.0.s8 %v2759
    %v2761 = vlaneseq
    %v2762 = vshrl.u32 %v2761, 7
    %v2763 = vsub.s32 %v2760, %v2762
    %v2764 = vrot.slane %v2742, %v2763
    %v2766 = vunpack.c.l.s4 1966171168
    %v2767 = vunpack.c.0.s8 %v2766
    %v2768 = vlaneseq
    %v2769 = vshrl.u32 %v2768, 7
    %v2770 = vsub.s32 %v2767, %v2769
    %v2771 = vrot.slane %v2743, %v2770
    %v2772 = vcombine.low %v2750, %v2757
    %v2773 = vcombine.low %v2764, %v2771
    %v2775 = vunpack.c.l.s4 1966171168
    %v2776 = vunpack.c.0.s8 %v2775
    %v2777 = vlaneseq
    %v2778 = vshrl.u32 %v2777, 7
    %v2779 = vsub.s32 %v2776, %v2778
    %v2780 = vrot.slane %v2772, %v2779
    %v2782 = vunpack.c.l.s4 1966171168
    %v2783 = vunpack.c.0.s8 %v2782
    %v2784 = vlaneseq
    %v2785 = vshrl.u32 %v2784, 7
    %v2786 = vsub.s32 %v2783, %v2785
    %v2787 = vrot.slane %v2773, %v2786
    %v2788 = vcombine.low %v2780, %v2787
    %v2789 = vcombine.low %v2704, %v2705
    %v2791 = vunpack.c.l.s4 1966171168
    %v2792 = vunpack.c.0.s8 %v2791
    %v2793 = vlaneseq
    %v2794 = vshrl.u32 %v2793, 7
    %v2795 = vsub.s32 %v2792, %v2794
    %v2796 = vrot.slane %v2789, %v2795
    %v2798 = vunpack.c.l.s4 1966171168
    %v2799 = vunpack.c.0.s8 %v2798
    %v2800 = vlaneseq
    %v2801 = vshrl.u32 %v2800, 7
    %v2802 = vsub.s32 %v2799, %v2801
    %v2803 = vrot.slane %v2706, %v2802
    %v2804 = vcombine.low %v2796, %v2803
    %v2806 = vunpack.c.l.s4 1966171168
    %v2807 = vunpack.c.0.s8 %v2806
    %v2808 = vlaneseq
    %v2809 = vshrl.u32 %v2808, 7
    %v2810 = vsub.s32 %v2807, %v2809
    %v2811 = vrot.slane %v2804, %v2810
    %v2812 = vcombine.low %v2707, %v2708
    %v2813 = vcombine.low %v2709, %v2710
    %v2814 = vcombine.low %v2711, %v2712
    %v2815 = vcombine.low %v2713, %v2714
    %v2817 = vunpack.c.l.s4 1966171168
    %v2818 = vunpack.c.0.s8 %v2817
    %v2819 = vlaneseq
    %v2820 = vshrl.u32 %v2819, 7
    %v2821 = vsub.s32 %v2818, %v2820
    %v2822 = vrot.slane %v2812, %v2821
    %v2824 = vunpack.c.l.s4 1966171168
    %v2825 = vunpack.c.0.s8 %v2824
    %v2826 = vlaneseq
    %v2827 = vshrl.u32 %v2826, 7
    %v2828 = vsub.s32 %v2825, %v2827
    %v2829 = vrot.slane %v2813, %v2828
    %v2831 = vunpack.c.l.s4 1966171168
    %v2832 = vunpack.c.0.s8 %v2831
    %v2833 = vlaneseq
    %v2834 = vshrl.u32 %v2833, 7
    %v2835 = vsub.s32 %v2832, %v2834
    %v2836 = vrot.slane %v2814, %v2835
    %v2838 = vunpack.c.l.s4 1966171168
    %v2839 = vunpack.c.0.s8 %v2838
    %v2840 = vlaneseq
    %v2841 = vshrl.u32 %v2840, 7
    %v2842 = vsub.s32 %v2839, %v2841
    %v2843 = vrot.slane %v2815, %v2842
    %v2844 = vcombine.low %v2822, %v2829
    %v2845 = vcombine.low %v2836, %v2843
    %v2847 = vunpack.c.l.s4 1966171168
    %v2848 = vunpack.c.0.s8 %v2847
    %v2849 = vlaneseq
    %v2850 = vshrl.u32 %v2849, 7
    %v2851 = vsub.s32 %v2848, %v2850
    %v2852 = vrot.slane %v2844, %v2851
    %v2854 = vunpack.c.l.s4 1966171168
    %v2855 = vunpack.c.0.s8 %v2854
    %v2856 = vlaneseq
    %v2857 = vshrl.u32 %v2856, 7
    %v2858 = vsub.s32 %v2855, %v2857
    %v2859 = vrot.slane %v2845, %v2858
    %v2860 = vcombine.low %v2852, %v2859
    %v2861 = vcombine.low %v2715, %v2716
    %v2863 = vunpack.c.l.s4 1966171168
    %v2864 = vunpack.c.0.s8 %v2863
    %v2865 = vlaneseq
    %v2866 = vshrl.u32 %v2865, 7
    %v2867 = vsub.s32 %v2864, %v2866
    %v2868 = vrot.slane %v2861, %v2867
    %v2870 = vunpack.c.l.s4 1966171168
    %v2871 = vunpack.c.0.s8 %v2870
    %v2872 = vlaneseq
    %v2873 = vshrl.u32 %v2872, 7
    %v2874 = vsub.s32 %v2871, %v2873
    %v2875 = vrot.slane %v2717, %v2874
    %v2876 = vcombine.low %v2868, %v2875
    %v2878 = vunpack.c.l.s4 1966171168
    %v2879 = vunpack.c.0.s8 %v2878
    %v2880 = vlaneseq
    %v2881 = vshrl.u32 %v2880, 7
    %v2882 = vsub.s32 %v2879, %v2881
    %v2883 = vrot.slane %v2876, %v2882
    %v2888 = vsel %vm232, %v2788, -inf
    %vm2889 = vcmask 256000
    %v2890 = vsel %vm2889, %v2811, -inf
    %v2891 = vmax.f32 %v2888, %v2890
    %v2892 = vrot.slane %v2891, 4
    %v2893 = vmax.f32 %v2891, %v2892
    %v2894 = vrot.slane %v2893, 2
    %v2895 = vmax.f32 %v2893, %v2894
    %v2896 = vrot.slane %v2895, 1
    %v2897 = vmax.f32 %v2895, %v2896
    %v2898 = vsel %vm232, %v2860, -inf
    %v2899 = vsel %vm2889, %v2883, -inf
    %v2900 = vmax.f32 %v2898, %v2899
    %v2901 = vrot.slane %v2900, 4
    %v2902 = vmax.f32 %v2900, %v2901
    %v2903 = vrot.slane %v2902, 2
    %v2904 = vmax.f32 %v2902, %v2903
    %v2905 = vrot.slane %v2904, 1
    %v2906 = vmax.f32 %v2904, %v2905
    %vm2907 = vcmask 1045504
    %v2908 = vrot.slane %v2043, 2
    %v2909 = vrot.slane %v2028, 2
    %v2910 = vsel %vm2907, %v2908, %v2909
    %v2911 = vrot.slane %v2044, 2
    %v2912 = vrot.slane %v2041, 2
    %v2913 = vsel %vm2907, %v2911, %v2912
    %2914 = vrot.lane.b32.xlu0 %v2910, 64
    %v2915 = vpop.permute.xlu0 %2914
    %2916 = vrot.lane.b32.xlu0 %v2909, 64
    %v2917 = vpop.permute.xlu0 %2916
    %2918 = vrot.lane.b32.xlu0 %v2913, 64
    %v2919 = vpop.permute.xlu0 %2918
    %2920 = vrot.lane.b32.xlu0 %v2912, 64
    %v2921 = vpop.permute.xlu0 %2920
    %v2926 = vsel %vm122, %v2066, %v2915
    %v2927 = vsel %vm122, %v2067, %v2917
    %v2928 = vsel %vm122, %v2068, %v2919
    %v2929 = vsel %vm122, %v2069, %v2921
    %v2934 = vcombine.high %v2926, %v2926
    %v2936 = vunpack.c.l.s4 1983009808
    %v2937 = vunpack.c.0.s8 %v2936
    %v2938 = vlaneseq
    %v2939 = vshrl.u32 %v2938, 7
    %v2940 = vsub.s32 %v2937, %v2939
    %v2941 = vrot.slane %v2926, %v2940
    %v2943 = vunpack.c.l.s4 1983009808
    %v2944 = vunpack.c.0.s8 %v2943
    %v2945 = vlaneseq
    %v2946 = vshrl.u32 %v2945, 7
    %v2947 = vsub.s32 %v2944, %v2946
    %v2948 = vrot.slane %v2934, %v2947
    %v2949 = vcombine.high %v2941, %v2941
    %v2950 = vcombine.high %v2948, %v2948
    %v2952 = vunpack.c.l.s4 1983009808
    %v2953 = vunpack.c.0.s8 %v2952
    %v2954 = vlaneseq
    %v2955 = vshrl.u32 %v2954, 7
    %v2956 = vsub.s32 %v2953, %v2955
    %v2957 = vrot.slane %v2927, %v2956
    %v2958 = vcombine.high %v2928, %v2928
    %v2960 = vunpack.c.l.s4 1983009808
    %v2961 = vunpack.c.0.s8 %v2960
    %v2962 = vlaneseq
    %v2963 = vshrl.u32 %v2962, 7
    %v2964 = vsub.s32 %v2961, %v2963
    %v2965 = vrot.slane %v2928, %v2964
    %v2967 = vunpack.c.l.s4 1983009808
    %v2968 = vunpack.c.0.s8 %v2967
    %v2969 = vlaneseq
    %v2970 = vshrl.u32 %v2969, 7
    %v2971 = vsub.s32 %v2968, %v2970
    %v2972 = vrot.slane %v2958, %v2971
    %v2973 = vcombine.high %v2965, %v2965
    %v2974 = vcombine.high %v2972, %v2972
    %v2976 = vunpack.c.l.s4 1983009808
    %v2977 = vunpack.c.0.s8 %v2976
    %v2978 = vlaneseq
    %v2979 = vshrl.u32 %v2978, 7
    %v2980 = vsub.s32 %v2977, %v2979
    %v2981 = vrot.slane %v2929, %v2980
    %v2982 = vcombine.low %v2941, %v2949
    %v2983 = vcombine.low %v2948, %v2950
    %v2985 = vunpack.c.l.s4 1983009808
    %v2986 = vunpack.c.0.s8 %v2985
    %v2987 = vlaneseq
    %v2988 = vshrl.u32 %v2987, 7
    %v2989 = vsub.s32 %v2986, %v2988
    %v2990 = vrot.slane %v2982, %v2989
    %v2992 = vunpack.c.l.s4 1983009808
    %v2993 = vunpack.c.0.s8 %v2992
    %v2994 = vlaneseq
    %v2995 = vshrl.u32 %v2994, 7
    %v2996 = vsub.s32 %v2993, %v2995
    %v2997 = vrot.slane %v2983, %v2996
    %v2998 = vcombine.low %v2990, %v2997
    %v2999 = vcombine.low %v2957, %v2965
    %v3000 = vcombine.low %v2973, %v2972
    %v3002 = vunpack.c.l.s4 1983009808
    %v3003 = vunpack.c.0.s8 %v3002
    %v3004 = vlaneseq
    %v3005 = vshrl.u32 %v3004, 7
    %v3006 = vsub.s32 %v3003, %v3005
    %v3007 = vrot.slane %v2999, %v3006
    %v3009 = vunpack.c.l.s4 1983009808
    %v3010 = vunpack.c.0.s8 %v3009
    %v3011 = vlaneseq
    %v3012 = vshrl.u32 %v3011, 7
    %v3013 = vsub.s32 %v3010, %v3012
    %v3014 = vrot.slane %v3000, %v3013
    %v3015 = vcombine.low %v3007, %v3014
    %v3016 = vcombine.low %v2974, %v2981
    %v3018 = vunpack.c.l.s4 1983009808
    %v3019 = vunpack.c.0.s8 %v3018
    %v3020 = vlaneseq
    %v3021 = vshrl.u32 %v3020, 7
    %v3022 = vsub.s32 %v3019, %v3021
    %v3023 = vrot.slane %v3016, %v3022
    %vm3024 = vcmask 785408
    %v3025 = vsel %vm3024, %v2998, 0
    %v3027 = vsel %vm3024, %v3015, 0
    %v3029 = vsel %vm3024, %v3023, 0
    %3031 = vmatprep.subr.mxu0 0.0
    %3032 = vmatpush1.msra.mxu0 %v1898
    %3033 = vmatprep.subr.mxu0 0.0
    %3034 = vmatpush1.msra.mxu0 %v1899
    %3035 = vmatprep.subr.mxu0 0.0
    %3036 = vmatpush1.msra.mxu0 %v1900
    %3037 = vmatprep.subr.mxu0 0.0
    %3038 = vmatpush1.msra.mxu0 %v1901
    %3039 = vmatprep.subr.mxu0 0.0
    %3040 = vmatpush1.msra.mxu0 %v1902
    %3041 = vmatprep.subr.mxu0 0.0
    %3042 = vmatpush1.msra.mxu0 %v1903
    %3043 = vmatprep.subr.mxu0 0.0
    %3044 = vmatpush1.msra.mxu0 %v1904
    %3045 = vmatprep.subr.mxu0 0.0
    %3046 = vmatpush1.msra.mxu0 %v1905
    %3047 = vmatprep.subr.mxu0 0.0
    %3048 = vmatpush1.msra.mxu0 %v1906
    %3049 = vmatprep.subr.mxu0 0.0
    %3050 = vmatpush1.msra.mxu0 %v1907
    %3051 = vmatprep.subr.mxu0 0.0
    %3052 = vmatpush1.msra.mxu0 %v1908
    %3053 = vmatprep.subr.mxu0 0.0
    %3054 = vmatpush1.msra.mxu0 %v1909
    %3055 = vmatprep.subr.mxu0 0.0
    %3056 = vmatpush1.msra.mxu0 0.0
    %3057 = vmatprep.subr.mxu0 0.0
    %3058 = vmatpush1.msra.mxu0 0.0
    %3059 = vmatprep.subr.mxu0 0.0
    %3060 = vmatpush1.msra.mxu0 0.0
    %3061 = vmatprep.subr.mxu0 0.0
    %3062 = vmatpush1.msra.mxu0 0.0
    %3063 = vmatprep.subr.mxu0 0.0
    %3064 = vmatpush1.msra.mxu0 0.0
    %3065 = vmatprep.subr.mxu0 0.0
    %3066 = vmatpush1.msra.mxu0 0.0
    %3067 = vmatprep.subr.mxu0 0.0
    %3068 = vmatpush1.msra.mxu0 0.0
    %3069 = vmatprep.subr.mxu0 0.0
    %3070 = vmatpush1.msra.mxu0 0.0
    %3071 = vmatprep.subr.mxu0 0.0
    %3072 = vmatpush1.msra.mxu0 0.0
    %3073 = vmatprep.subr.mxu0 0.0
    %3074 = vmatpush1.msra.mxu0 0.0
    %3075 = vmatprep.subr.mxu0 0.0
    %3076 = vmatpush1.msra.mxu0 0.0
    %3077 = vmatprep.subr.mxu0 0.0
    %3078 = vmatpush1.msra.mxu0 0.0
    %3079 = vmatprep.subr.mxu0 0.0
    %3080 = vmatpush1.msra.mxu0 0.0
    %3081 = vmatprep.subr.mxu0 0.0
    %3082 = vmatpush1.msra.mxu0 0.0
    %3083 = vmatprep.subr.mxu0 0.0
    %3084 = vmatpush1.msra.mxu0 0.0
    %3085 = vmatprep.subr.mxu0 0.0
    %3086 = vmatpush1.msra.mxu0 0.0
    %3087 = vmatprep.subr.mxu0 0.0
    %3088 = vmatpush1.msra.mxu0 0.0
    %3089 = vmatprep.subr.mxu0 0.0
    %3090 = vmatpush1.msra.mxu0 0.0
    %3091 = vmatprep.subr.mxu0 0.0
    %3092 = vmatpush1.msra.mxu0 0.0
    %3093 = vmatprep.subr.mxu0 0.0
    %3094 = vmatpush1.msra.mxu0 0.0
    %3095 = vmatprep.mubr.f32.mxu0 0.0
    %3096 = vmatmul.mubr.f32.gmra.mrb[0].mxu0 %v3025
    %v3097 = vpop.f32.mrb[0].mxu0
    %v3098 = vadd.f32 0.0, %v3097
    %v3099 = vpop.f32.mrb[0].mxu0
    %3100 = vmatprep.mubr.f32.mxu0 0.0
    %3101 = vmatmul.mubr.f32.gmra.mrb[0].mxu0 %v3027
    %v3102 = vpop.f32.mrb[0].mxu0
    %v3103 = vadd.f32 0.0, %v3102
    %v3104 = vpop.f32.mrb[0].mxu0
    %3105 = vmatprep.mubr.f32.mxu0 0.0
    %3106 = vmatmul.mubr.f32.gmra.mrb[0].mxu0 %v3029
    %v3107 = vpop.f32.mrb[0].mxu0
    %v3108 = vadd.f32 0.0, %v3107
    %v3109 = vpop.f32.mrb[0].mxu0
    %3110 = vdwg.mxu0
    %v3114 = vcombine.high %v3098, %v3098
    %v3116 = vunpack.c.l.s4 1983009808
    %v3117 = vunpack.c.0.s8 %v3116
    %v3118 = vlaneseq
    %v3119 = vshrl.u32 %v3118, 7
    %v3120 = vsub.s32 %v3117, %v3119
    %v3121 = vrot.slane %v3098, %v3120
    %v3123 = vunpack.c.l.s4 1983009808
    %v3124 = vunpack.c.0.s8 %v3123
    %v3125 = vlaneseq
    %v3126 = vshrl.u32 %v3125, 7
    %v3127 = vsub.s32 %v3124, %v3126
    %v3128 = vrot.slane %v3114, %v3127
    %v3129 = vcombine.high %v3121, %v3121
    %v3130 = vcombine.high %v3128, %v3128
    %v3131 = vcombine.high %v3103, %v3103
    %v3133 = vunpack.c.l.s4 1983009808
    %v3134 = vunpack.c.0.s8 %v3133
    %v3135 = vlaneseq
    %v3136 = vshrl.u32 %v3135, 7
    %v3137 = vsub.s32 %v3134, %v3136
    %v3138 = vrot.slane %v3103, %v3137
    %v3140 = vunpack.c.l.s4 1983009808
    %v3141 = vunpack.c.0.s8 %v3140
    %v3142 = vlaneseq
    %v3143 = vshrl.u32 %v3142, 7
    %v3144 = vsub.s32 %v3141, %v3143
    %v3145 = vrot.slane %v3131, %v3144
    %v3146 = vcombine.high %v3138, %v3138
    %v3147 = vcombine.high %v3145, %v3145
    %v3149 = vunpack.c.l.s4 1983009808
    %v3150 = vunpack.c.0.s8 %v3149
    %v3151 = vlaneseq
    %v3152 = vshrl.u32 %v3151, 7
    %v3153 = vsub.s32 %v3150, %v3152
    %v3154 = vrot.slane %v3108, %v3153
    %v3155 = vcombine.high %v3154, %v3154
    %v3167 = vlaneseq
    %v3168 = vshrl.u32 %v3167, 7
    %v3169 = vsub.s32 0, %v3168
    %v3170 = vrot.slane %v1911, %v3169
    %v3171 = vcombine.high %v3170, %v3170
    %v3173 = vunpack.c.l.s4 1983009808
    %v3174 = vunpack.c.0.s8 %v3173
    %v3175 = vlaneseq
    %v3176 = vshrl.u32 %v3175, 7
    %v3177 = vsub.s32 %v3174, %v3176
    %v3178 = vrot.slane %v3170, %v3177
    %v3180 = vunpack.c.l.s4 1983009808
    %v3181 = vunpack.c.0.s8 %v3180
    %v3182 = vlaneseq
    %v3183 = vshrl.u32 %v3182, 7
    %v3184 = vsub.s32 %v3181, %v3183
    %v3185 = vrot.slane %v3171, %v3184
    %v3186 = vcombine.high %v3178, %v3178
    %v3187 = vcombine.high %v3185, %v3185
    %v3192 = vadd.f32 %v3121, %v3178
    %v3193 = vadd.f32 %v3129, %v3186
    %v3194 = vadd.f32 %v3128, %v3185
    %v3195 = vadd.f32 %v3130, %v3187
    %v3196 = vadd.f32 %v3138, %v3178
    %v3197 = vadd.f32 %v3146, %v3178
    %v3198 = vadd.f32 %v3145, %v3186
    %v3199 = vadd.f32 %v3147, %v3185
    %v3200 = vadd.f32 %v3154, %v3187
    %v3201 = vadd.f32 %v3155, %v3178
    %v3202 = vmax.f32 %v3192, 0.0
    %v3203 = vmax.f32 %v3193, 0.0
    %v3204 = vmax.f32 %v3194, 0.0
    %v3205 = vmax.f32 %v3195, 0.0
    %v3206 = vmax.f32 %v3196, 0.0
    %v3207 = vmax.f32 %v3197, 0.0
    %v3208 = vmax.f32 %v3198, 0.0
    %v3209 = vmax.f32 %v3199, 0.0
    %v3210 = vmax.f32 %v3200, 0.0
    %v3211 = vmax.f32 %v3201, 0.0
    %v3222 = vcombine.low %v3202, %v3203
    %v3223 = vcombine.low %v3204, %v3205
    %v3225 = vunpack.c.l.s4 1983009808
    %v3226 = vunpack.c.0.s8 %v3225
    %v3227 = vlaneseq
    %v3228 = vshrl.u32 %v3227, 7
    %v3229 = vsub.s32 %v3226, %v3228
    %v3230 = vrot.slane %v3222, %v3229
    %v3232 = vunpack.c.l.s4 1983009808
    %v3233 = vunpack.c.0.s8 %v3232
    %v3234 = vlaneseq
    %v3235 = vshrl.u32 %v3234, 7
    %v3236 = vsub.s32 %v3233, %v3235
    %v3237 = vrot.slane %v3223, %v3236
    %v3238 = vcombine.low %v3230, %v3237
    %v3240 = vunpack.c.l.s4 1983009808
    %v3241 = vunpack.c.0.s8 %v3240
    %v3242 = vlaneseq
    %v3243 = vshrl.u32 %v3242, 7
    %v3244 = vsub.s32 %v3241, %v3243
    %v3245 = vrot.slane %v3206, %v3244
    %v3246 = vcombine.low %v3207, %v3208
    %v3247 = vcombine.low %v3209, %v3210
    %v3249 = vunpack.c.l.s4 1983009808
    %v3250 = vunpack.c.0.s8 %v3249
    %v3251 = vlaneseq
    %v3252 = vshrl.u32 %v3251, 7
    %v3253 = vsub.s32 %v3250, %v3252
    %v3254 = vrot.slane %v3246, %v3253
    %v3256 = vunpack.c.l.s4 1983009808
    %v3257 = vunpack.c.0.s8 %v3256
    %v3258 = vlaneseq
    %v3259 = vshrl.u32 %v3258, 7
    %v3260 = vsub.s32 %v3257, %v3259
    %v3261 = vrot.slane %v3247, %v3260
    %v3262 = vcombine.low %v3254, %v3261
    %v3264 = vunpack.c.l.s4 1983009808
    %v3265 = vunpack.c.0.s8 %v3264
    %v3266 = vlaneseq
    %v3267 = vshrl.u32 %v3266, 7
    %v3268 = vsub.s32 %v3265, %v3267
    %v3269 = vrot.slane %v3211, %v3268
    %v3274 = vsel %vm232, %v3238, -inf
    %vm3275 = vcmask 254976
    %v3276 = vsel %vm3275, %v3245, -inf
    %v3277 = vmax.f32 %v3274, %v3276
    %v3278 = vrot.slane %v3277, 4
    %v3279 = vmax.f32 %v3277, %v3278
    %v3280 = vrot.slane %v3279, 2
    %v3281 = vmax.f32 %v3279, %v3280
    %v3282 = vrot.slane %v3281, 1
    %v3283 = vmax.f32 %v3281, %v3282
    %v3284 = vsel %vm232, %v3262, -inf
    %v3285 = vsel %vm3275, %v3269, -inf
    %v3286 = vmax.f32 %v3284, %v3285
    %v3287 = vrot.slane %v3286, 4
    %v3288 = vmax.f32 %v3286, %v3287
    %v3289 = vrot.slane %v3288, 2
    %v3290 = vmax.f32 %v3288, %v3289
    %v3291 = vrot.slane %v3290, 1
    %v3292 = vmax.f32 %v3290, %v3291
    %v3295 = vsel %vm543, %v2906, %v2897
    %v3299 = vsel %vm543, %v3292, %v3283
    %3300 = vrot.lane.b32.xlu0 %v3299, 32
    %v3301 = vpop.permute.xlu0 %3300
    %v3303 = vsel %vm232, %v3295, %v3301
    %v3305 = vlaneseq
    %v3306 = vshrl.u32 %v3305, 7
    %v3307 = vsub.s32 0, %v3306
    %v3308 = vrot.slane %v1920, %v3307
    %v3311 = vsel %vm122, %v3303, 0
    %3313 = vmatprep.subr.mxu0 0.0
    %3314 = vmatpush1.msra.mxu0 %v1912
    %3315 = vmatprep.subr.mxu0 0.0
    %3316 = vmatpush1.msra.mxu0 %v1913
    %3317 = vmatprep.subr.mxu0 0.0
    %3318 = vmatpush1.msra.mxu0 %v1914
    %3319 = vmatprep.subr.mxu0 0.0
    %3320 = vmatpush1.msra.mxu0 %v1915
    %3321 = vmatprep.subr.mxu0 0.0
    %3322 = vmatpush1.msra.mxu0 %v1916
    %3323 = vmatprep.subr.mxu0 0.0
    %3324 = vmatpush1.msra.mxu0 %v1917
    %3325 = vmatprep.subr.mxu0 0.0
    %3326 = vmatpush1.msra.mxu0 %v1918
    %3327 = vmatprep.subr.mxu0 0.0
    %3328 = vmatpush1.msra.mxu0 %v1919
    %3329 = vmatprep.subr.mxu0 0.0
    %3330 = vmatpush1.msra.mxu0 0.0
    %3331 = vmatprep.subr.mxu0 0.0
    %3332 = vmatpush1.msra.mxu0 0.0
    %3333 = vmatprep.subr.mxu0 0.0
    %3334 = vmatpush1.msra.mxu0 0.0
    %3335 = vmatprep.subr.mxu0 0.0
    %3336 = vmatpush1.msra.mxu0 0.0
    %3337 = vmatprep.subr.mxu0 0.0
    %3338 = vmatpush1.msra.mxu0 0.0
    %3339 = vmatprep.subr.mxu0 0.0
    %3340 = vmatpush1.msra.mxu0 0.0
    %3341 = vmatprep.subr.mxu0 0.0
    %3342 = vmatpush1.msra.mxu0 0.0
    %3343 = vmatprep.subr.mxu0 0.0
    %3344 = vmatpush1.msra.mxu0 0.0
    %3345 = vmatprep.subr.mxu0 0.0
    %3346 = vmatpush1.msra.mxu0 0.0
    %3347 = vmatprep.subr.mxu0 0.0
    %3348 = vmatpush1.msra.mxu0 0.0
    %3349 = vmatprep.subr.mxu0 0.0
    %3350 = vmatpush1.msra.mxu0 0.0
    %3351 = vmatprep.subr.mxu0 0.0
    %3352 = vmatpush1.msra.mxu0 0.0
    %3353 = vmatprep.subr.mxu0 0.0
    %3354 = vmatpush1.msra.mxu0 0.0
    %3355 = vmatprep.subr.mxu0 0.0
    %3356 = vmatpush1.msra.mxu0 0.0
    %3357 = vmatprep.subr.mxu0 0.0
    %3358 = vmatpush1.msra.mxu0 0.0
    %3359 = vmatprep.subr.mxu0 0.0
    %3360 = vmatpush1.msra.mxu0 0.0
    %3361 = vmatprep.subr.mxu0 0.0
    %3362 = vmatpush1.msra.mxu0 0.0
    %3363 = vmatprep.subr.mxu0 0.0
    %3364 = vmatpush1.msra.mxu0 0.0
    %3365 = vmatprep.subr.mxu0 0.0
    %3366 = vmatpush1.msra.mxu0 0.0
    %3367 = vmatprep.subr.mxu0 0.0
    %3368 = vmatpush1.msra.mxu0 0.0
    %3369 = vmatprep.subr.mxu0 0.0
    %3370 = vmatpush1.msra.mxu0 0.0
    %3371 = vmatprep.subr.mxu0 0.0
    %3372 = vmatpush1.msra.mxu0 0.0
    %3373 = vmatprep.subr.mxu0 0.0
    %3374 = vmatpush1.msra.mxu0 0.0
    %3375 = vmatprep.subr.mxu0 0.0
    %3376 = vmatpush1.msra.mxu0 0.0
    %3377 = vmatprep.mubr.f32.mxu0 0.0
    %3378 = vmatmul.mubr.f32.gmra.mrb[0].mxu0 %v3311
    %v3379 = vpop.f32.mrb[0].mxu0
    %v3380 = vadd.f32 %v3308, %v3379
    %v3381 = vpop.f32.mrb[0].mxu0
    %3382 = vdwg.mxu0
    %v3384 = vlaneseq
    %v3385 = vshrl.u32 %v3384, 7
    %v3386 = vsub.s32 0, %v3385
    %v3387 = vrot.slane %v1925, %v3386
    %v3390 = vsel %vm232, %v3380, 0
    %3392 = vmatprep.subr.mxu0 0.0
    %3393 = vmatpush1.msra.mxu0 %v1921
    %3394 = vmatprep.subr.mxu0 0.0
    %3395 = vmatpush1.msra.mxu0 %v1922
    %3396 = vmatprep.subr.mxu0 0.0
    %3397 = vmatpush1.msra.mxu0 %v1923
    %3398 = vmatprep.subr.mxu0 0.0
    %3399 = vmatpush1.msra.mxu0 %v1924
    %3400 = vmatprep.subr.mxu0 0.0
    %3401 = vmatpush1.msra.mxu0 0.0
    %3402 = vmatprep.subr.mxu0 0.0
    %3403 = vmatpush1.msra.mxu0 0.0
    %3404 = vmatprep.subr.mxu0 0.0
    %3405 = vmatpush1.msra.mxu0 0.0
    %3406 = vmatprep.subr.mxu0 0.0
    %3407 = vmatpush1.msra.mxu0 0.0
    %3408 = vmatprep.subr.mxu0 0.0
    %3409 = vmatpush1.msra.mxu0 0.0
    %3410 = vmatprep.subr.mxu0 0.0
    %3411 = vmatpush1.msra.mxu0 0.0
    %3412 = vmatprep.subr.mxu0 0.0
    %3413 = vmatpush1.msra.mxu0 0.0
    %3414 = vmatprep.subr.mxu0 0.0
    %3415 = vmatpush1.msra.mxu0 0.0
    %3416 = vmatprep.subr.mxu0 0.0
    %3417 = vmatpush1.msra.mxu0 0.0
    %3418 = vmatprep.subr.mxu0 0.0
    %3419 = vmatpush1.msra.mxu0 0.0
    %3420 = vmatprep.subr.mxu0 0.0
    %3421 = vmatpush1.msra.mxu0 0.0
    %3422 = vmatprep.subr.mxu0 0.0
    %3423 = vmatpush1.msra.mxu0 0.0
    %3424 = vmatprep.subr.mxu0 0.0
    %3425 = vmatpush1.msra.mxu0 0.0
    %3426 = vmatprep.subr.mxu0 0.0
    %3427 = vmatpush1.msra.mxu0 0.0
    %3428 = vmatprep.subr.mxu0 0.0
    %3429 = vmatpush1.msra.mxu0 0.0
    %3430 = vmatprep.subr.mxu0 0.0
    %3431 = vmatpush1.msra.mxu0 0.0
    %3432 = vmatprep.subr.mxu0 0.0
    %3433 = vmatpush1.msra.mxu0 0.0
    %3434 = vmatprep.subr.mxu0 0.0
    %3435 = vmatpush1.msra.mxu0 0.0
    %3436 = vmatprep.subr.mxu0 0.0
    %3437 = vmatpush1.msra.mxu0 0.0
    %3438 = vmatprep.subr.mxu0 0.0
    %3439 = vmatpush1.msra.mxu0 0.0
    %3440 = vmatprep.subr.mxu0 0.0
    %3441 = vmatpush1.msra.mxu0 0.0
    %3442 = vmatprep.subr.mxu0 0.0
    %3443 = vmatpush1.msra.mxu0 0.0
    %3444 = vmatprep.subr.mxu0 0.0
    %3445 = vmatpush1.msra.mxu0 0.0
    %3446 = vmatprep.subr.mxu0 0.0
    %3447 = vmatpush1.msra.mxu0 0.0
    %3448 = vmatprep.subr.mxu0 0.0
    %3449 = vmatpush1.msra.mxu0 0.0
    %3450 = vmatprep.subr.mxu0 0.0
    %3451 = vmatpush1.msra.mxu0 0.0
    %3452 = vmatprep.subr.mxu0 0.0
    %3453 = vmatpush1.msra.mxu0 0.0
    %3454 = vmatprep.subr.mxu0 0.0
    %3455 = vmatpush1.msra.mxu0 0.0
    %3456 = vmatprep.mubr.f32.mxu0 0.0
    %3457 = vmatmul.mubr.f32.gmra.mrb[0].mxu0 %v3390
    %v3458 = vpop.f32.mrb[0].mxu0
    %v3459 = vadd.f32 %v3387, %v3458
    %v3460 = vpop.f32.mrb[0].mxu0
    %3461 = vdwg.mxu0
    %v3462 = vld [vmem:[%s0] sm:$0xff]
    %v3463 = vld [vmem:[%s0 + $0x8] sm:$0xff]
    %3464 = vset.pattern.permute.xlu0 0
    %3465 = vperm.xlu0 %3464, %v3462
    %v3466 = vpop.permute.xlu0 %3465
    %3467 = vset.pattern.permute.xlu0 0
    %3468 = vperm.xlu0 %3467, %v3463
    %v3469 = vpop.permute.xlu0 %3468
    %vm3470 = vcmp.eq.s32.totalorder %v103, %v3466
    %vm3471 = vcmp.eq.s32.totalorder %v103, %v3469
    %v3472 = vsel %vm3470, 1, 0
    %v3473 = vsel %vm3471, 1, 0
    %v3474 = vcvt.s32.f32 %v3472
    %v3475 = vcvt.s32.f32 %v3473
    %v3477 = vsel %vm122, %v3474, 0
    %v3480 = vsel %vm122, %v3475, 0
    %3482 = vmatprep.subr.mxu0 0.0
    %3483 = vmatpush1.msra.mxu0 %v91
    %3484 = vmatprep.subr.mxu0 0.0
    %3485 = vmatpush1.msra.mxu0 %v92
    %3486 = vmatprep.subr.mxu0 0.0
    %3487 = vmatpush1.msra.mxu0 %v93
    %3488 = vmatprep.subr.mxu0 0.0
    %3489 = vmatpush1.msra.mxu0 %v94
    %3490 = vmatprep.subr.mxu0 0.0
    %3491 = vmatpush1.msra.mxu0 %v95
    %3492 = vmatprep.subr.mxu0 0.0
    %3493 = vmatpush1.msra.mxu0 %v96
    %3494 = vmatprep.subr.mxu0 0.0
    %3495 = vmatpush1.msra.mxu0 %v97
    %3496 = vmatprep.subr.mxu0 0.0
    %3497 = vmatpush1.msra.mxu0 %v98
    %3498 = vmatprep.subr.mxu0 0.0
    %3499 = vmatpush1.msra.mxu0 0.0
    %3500 = vmatprep.subr.mxu0 0.0
    %3501 = vmatpush1.msra.mxu0 0.0
    %3502 = vmatprep.subr.mxu0 0.0
    %3503 = vmatpush1.msra.mxu0 0.0
    %3504 = vmatprep.subr.mxu0 0.0
    %3505 = vmatpush1.msra.mxu0 0.0
    %3506 = vmatprep.subr.mxu0 0.0
    %3507 = vmatpush1.msra.mxu0 0.0
    %3508 = vmatprep.subr.mxu0 0.0
    %3509 = vmatpush1.msra.mxu0 0.0
    %3510 = vmatprep.subr.mxu0 0.0
    %3511 = vmatpush1.msra.mxu0 0.0
    %3512 = vmatprep.subr.mxu0 0.0
    %3513 = vmatpush1.msra.mxu0 0.0
    %3514 = vmatprep.subr.mxu0 0.0
    %3515 = vmatpush1.msra.mxu0 0.0
    %3516 = vmatprep.subr.mxu0 0.0
    %3517 = vmatpush1.msra.mxu0 0.0
    %3518 = vmatprep.subr.mxu0 0.0
    %3519 = vmatpush1.msra.mxu0 0.0
    %3520 = vmatprep.subr.mxu0 0.0
    %3521 = vmatpush1.msra.mxu0 0.0
    %3522 = vmatprep.subr.mxu0 0.0
    %3523 = vmatpush1.msra.mxu0 0.0
    %3524 = vmatprep.subr.mxu0 0.0
    %3525 = vmatpush1.msra.mxu0 0.0
    %3526 = vmatprep.subr.mxu0 0.0
    %3527 = vmatpush1.msra.mxu0 0.0
    %3528 = vmatprep.subr.mxu0 0.0
    %3529 = vmatpush1.msra.mxu0 0.0
    %3530 = vmatprep.subr.mxu0 0.0
    %3531 = vmatpush1.msra.mxu0 0.0
    %3532 = vmatprep.subr.mxu0 0.0
    %3533 = vmatpush1.msra.mxu0 0.0
    %3534 = vmatprep.subr.mxu0 0.0
    %3535 = vmatpush1.msra.mxu0 0.0
    %3536 = vmatprep.subr.mxu0 0.0
    %3537 = vmatpush1.msra.mxu0 0.0
    %3538 = vmatprep.subr.mxu0 0.0
    %3539 = vmatpush1.msra.mxu0 0.0
    %3540 = vmatprep.subr.mxu0 0.0
    %3541 = vmatpush1.msra.mxu0 0.0
    %3542 = vmatprep.subr.mxu0 0.0
    %3543 = vmatpush1.msra.mxu0 0.0
    %3544 = vmatprep.subr.mxu0 0.0
    %3545 = vmatpush1.msra.mxu0 0.0
    %3546 = vmatprep.mubr.f32.mxu0 0.0
    %3547 = vmatmul.mubr.f32.gmra.mrb[0].mxu0 %v3477
    %v3548 = vpop.f32.mrb[0].mxu0
    %v3549 = vadd.f32 0.0, %v3548
    %v3550 = vpop.f32.mrb[0].mxu0
    %3551 = vmatprep.mubr.f32.mxu0 0.0
    %3552 = vmatmul.mubr.f32.gmra.mrb[0].mxu0 %v3480
    %v3553 = vpop.f32.mrb[0].mxu0
    %v3554 = vadd.f32 0.0, %v3553
    %v3555 = vpop.f32.mrb[0].mxu0
    %3556 = vdwg.mxu0
    %v3559 = vrot.slane %v3549, 1
    %v3560 = vrot.slane %v3554, 1
    %3561 = vrot.lane.b32.xlu0 %v3559, 32
    %v3562 = vpop.permute.xlu0 %3561
    %3563 = vrot.lane.b32.xlu0 %v3560, 32
    %v3564 = vpop.permute.xlu0 %3563
    %v3567 = vsel %vm232, %v3549, %v3562
    %v3568 = vsel %vm232, %v3554, %v3564
    %v3571 = vcombine.high %v3567, %v3567
    %v3573 = vunpack.c.l.s4 1966171168
    %v3574 = vunpack.c.0.s8 %v3573
    %v3575 = vlaneseq
    %v3576 = vshrl.u32 %v3575, 7
    %v3577 = vsub.s32 %v3574, %v3576
    %v3578 = vrot.slane %v3567, %v3577
    %v3580 = vunpack.c.l.s4 1966171168
    %v3581 = vunpack.c.0.s8 %v3580
    %v3582 = vlaneseq
    %v3583 = vshrl.u32 %v3582, 7
    %v3584 = vsub.s32 %v3581, %v3583
    %v3585 = vrot.slane %v3571, %v3584
    %v3586 = vcombine.high %v3578, %v3578
    %v3587 = vcombine.high %v3585, %v3585
    %v3589 = vunpack.c.l.s4 1966171168
    %v3590 = vunpack.c.0.s8 %v3589
    %v3591 = vlaneseq
    %v3592 = vshrl.u32 %v3591, 7
    %v3593 = vsub.s32 %v3590, %v3592
    %v3594 = vrot.slane %v3578, %v3593
    %v3596 = vunpack.c.l.s4 1966171168
    %v3597 = vunpack.c.0.s8 %v3596
    %v3598 = vlaneseq
    %v3599 = vshrl.u32 %v3598, 7
    %v3600 = vsub.s32 %v3597, %v3599
    %v3601 = vrot.slane %v3585, %v3600
    %v3603 = vunpack.c.l.s4 1966171168
    %v3604 = vunpack.c.0.s8 %v3603
    %v3605 = vlaneseq
    %v3606 = vshrl.u32 %v3605, 7
    %v3607 = vsub.s32 %v3604, %v3606
    %v3608 = vrot.slane %v3586, %v3607
    %v3610 = vunpack.c.l.s4 1966171168
    %v3611 = vunpack.c.0.s8 %v3610
    %v3612 = vlaneseq
    %v3613 = vshrl.u32 %v3612, 7
    %v3614 = vsub.s32 %v3611, %v3613
    %v3615 = vrot.slane %v3587, %v3614
    %v3616 = vcombine.high %v3594, %v3594
    %v3617 = vcombine.high %v3601, %v3601
    %v3618 = vcombine.high %v3608, %v3608
    %v3619 = vcombine.high %v3568, %v3568
    %v3621 = vunpack.c.l.s4 1966171168
    %v3622 = vunpack.c.0.s8 %v3621
    %v3623 = vlaneseq
    %v3624 = vshrl.u32 %v3623, 7
    %v3625 = vsub.s32 %v3622, %v3624
    %v3626 = vrot.slane %v3568, %v3625
    %v3628 = vunpack.c.l.s4 1966171168
    %v3629 = vunpack.c.0.s8 %v3628
    %v3630 = vlaneseq
    %v3631 = vshrl.u32 %v3630, 7
    %v3632 = vsub.s32 %v3629, %v3631
    %v3633 = vrot.slane %v3619, %v3632
    %v3634 = vcombine.high %v3626, %v3626
    %v3635 = vcombine.high %v3633, %v3633
    %v3637 = vunpack.c.l.s4 1966171168
    %v3638 = vunpack.c.0.s8 %v3637
    %v3639 = vlaneseq
    %v3640 = vshrl.u32 %v3639, 7
    %v3641 = vsub.s32 %v3638, %v3640
    %v3642 = vrot.slane %v3626, %v3641
    %v3644 = vunpack.c.l.s4 1966171168
    %v3645 = vunpack.c.0.s8 %v3644
    %v3646 = vlaneseq
    %v3647 = vshrl.u32 %v3646, 7
    %v3648 = vsub.s32 %v3645, %v3647
    %v3649 = vrot.slane %v3633, %v3648
    %v3651 = vunpack.c.l.s4 1966171168
    %v3652 = vunpack.c.0.s8 %v3651
    %v3653 = vlaneseq
    %v3654 = vshrl.u32 %v3653, 7
    %v3655 = vsub.s32 %v3652, %v3654
    %v3656 = vrot.slane %v3634, %v3655
    %v3658 = vunpack.c.l.s4 1966171168
    %v3659 = vunpack.c.0.s8 %v3658
    %v3660 = vlaneseq
    %v3661 = vshrl.u32 %v3660, 7
    %v3662 = vsub.s32 %v3659, %v3661
    %v3663 = vrot.slane %v3635, %v3662
    %v3664 = vcombine.high %v3642, %v3642
    %v3665 = vcombine.high %v3649, %v3649
    %v3666 = vcombine.high %v3656, %v3656
    %v3667 = vcombine.low %v3594, %v3608
    %v3668 = vcombine.low %v3616, %v3618
    %v3669 = vcombine.low %v3601, %v3615
    %v3670 = vcombine.low %v3617, %v3642
    %v3672 = vunpack.c.l.s4 1966171168
    %v3673 = vunpack.c.0.s8 %v3672
    %v3674 = vlaneseq
    %v3675 = vshrl.u32 %v3674, 7
    %v3676 = vsub.s32 %v3673, %v3675
    %v3677 = vrot.slane %v3667, %v3676
    %v3679 = vunpack.c.l.s4 1966171168
    %v3680 = vunpack.c.0.s8 %v3679
    %v3681 = vlaneseq
    %v3682 = vshrl.u32 %v3681, 7
    %v3683 = vsub.s32 %v3680, %v3682
    %v3684 = vrot.slane %v3668, %v3683
    %v3686 = vunpack.c.l.s4 1966171168
    %v3687 = vunpack.c.0.s8 %v3686
    %v3688 = vlaneseq
    %v3689 = vshrl.u32 %v3688, 7
    %v3690 = vsub.s32 %v3687, %v3689
    %v3691 = vrot.slane %v3669, %v3690
    %v3693 = vunpack.c.l.s4 1966171168
    %v3694 = vunpack.c.0.s8 %v3693
    %v3695 = vlaneseq
    %v3696 = vshrl.u32 %v3695, 7
    %v3697 = vsub.s32 %v3694, %v3696
    %v3698 = vrot.slane %v3670, %v3697
    %v3699 = vcombine.low %v3677, %v3684
    %v3700 = vcombine.low %v3691, %v3698
    %v3702 = vunpack.c.l.s4 1966171168
    %v3703 = vunpack.c.0.s8 %v3702
    %v3704 = vlaneseq
    %v3705 = vshrl.u32 %v3704, 7
    %v3706 = vsub.s32 %v3703, %v3705
    %v3707 = vrot.slane %v3699, %v3706
    %v3709 = vunpack.c.l.s4 1966171168
    %v3710 = vunpack.c.0.s8 %v3709
    %v3711 = vlaneseq
    %v3712 = vshrl.u32 %v3711, 7
    %v3713 = vsub.s32 %v3710, %v3712
    %v3714 = vrot.slane %v3700, %v3713
    %v3715 = vcombine.low %v3707, %v3714
    %v3716 = vcombine.low %v3656, %v3664
    %v3717 = vcombine.low %v3666, %v3649
    %v3718 = vcombine.low %v3663, %v3665
    %v3720 = vunpack.c.l.s4 1966171168
    %v3721 = vunpack.c.0.s8 %v3720
    %v3722 = vlaneseq
    %v3723 = vshrl.u32 %v3722, 7
    %v3724 = vsub.s32 %v3721, %v3723
    %v3725 = vrot.slane %v3716, %v3724
    %v3727 = vunpack.c.l.s4 1966171168
    %v3728 = vunpack.c.0.s8 %v3727
    %v3729 = vlaneseq
    %v3730 = vshrl.u32 %v3729, 7
    %v3731 = vsub.s32 %v3728, %v3730
    %v3732 = vrot.slane %v3717, %v3731
    %v3734 = vunpack.c.l.s4 1966171168
    %v3735 = vunpack.c.0.s8 %v3734
    %v3736 = vlaneseq
    %v3737 = vshrl.u32 %v3736, 7
    %v3738 = vsub.s32 %v3735, %v3737
    %v3739 = vrot.slane %v3718, %v3738
    %v3740 = vcombine.low %v3725, %v3732
    %v3742 = vunpack.c.l.s4 1966171168
    %v3743 = vunpack.c.0.s8 %v3742
    %v3744 = vlaneseq
    %v3745 = vshrl.u32 %v3744, 7
    %v3746 = vsub.s32 %v3743, %v3745
    %v3747 = vrot.slane %v3740, %v3746
    %v3749 = vunpack.c.l.s4 1966171168
    %v3750 = vunpack.c.0.s8 %v3749
    %v3751 = vlaneseq
    %v3752 = vshrl.u32 %v3751, 7
    %v3753 = vsub.s32 %v3750, %v3752
    %v3754 = vrot.slane %v3739, %v3753
    %v3755 = vcombine.low %v3747, %v3754
    %v3756 = vsel %vm122, %v3715, 0
    %v3758 = vsel %vm122, %v3755, 0
    %3760 = vmatprep.subr.mxu0 0.0
    %3761 = vmatpush1.msra.mxu0 %v1890
    %3762 = vmatprep.subr.mxu0 0.0
    %3763 = vmatpush1.msra.mxu0 %v1891
    %3764 = vmatprep.subr.mxu0 0.0
    %3765 = vmatpush1.msra.mxu0 %v1892
    %3766 = vmatprep.subr.mxu0 0.0
    %3767 = vmatpush1.msra.mxu0 %v1893
    %3768 = vmatprep.subr.mxu0 0.0
    %3769 = vmatpush1.msra.mxu0 %v1894
    %3770 = vmatprep.subr.mxu0 0.0
    %3771 = vmatpush1.msra.mxu0 %v1895
    %3772 = vmatprep.subr.mxu0 0.0
    %3773 = vmatpush1.msra.mxu0 %v1896
    %3774 = vmatprep.subr.mxu0 0.0
    %3775 = vmatpush1.msra.mxu0 %v1897
    %3776 = vmatprep.subr.mxu0 0.0
    %3777 = vmatpush1.msra.mxu0 0.0
    %3778 = vmatprep.subr.mxu0 0.0
    %3779 = vmatpush1.msra.mxu0 0.0
    %3780 = vmatprep.subr.mxu0 0.0
    %3781 = vmatpush1.msra.mxu0 0.0
    %3782 = vmatprep.subr.mxu0 0.0
    %3783 = vmatpush1.msra.mxu0 0.0
    %3784 = vmatprep.subr.mxu0 0.0
    %3785 = vmatpush1.msra.mxu0 0.0
    %3786 = vmatprep.subr.mxu0 0.0
    %3787 = vmatpush1.msra.mxu0 0.0
    %3788 = vmatprep.subr.mxu0 0.0
    %3789 = vmatpush1.msra.mxu0 0.0
    %3790 = vmatprep.subr.mxu0 0.0
    %3791 = vmatpush1.msra.mxu0 0.0
    %3792 = vmatprep.subr.mxu0 0.0
    %3793 = vmatpush1.msra.mxu0 0.0
    %3794 = vmatprep.subr.mxu0 0.0
    %3795 = vmatpush1.msra.mxu0 0.0
    %3796 = vmatprep.subr.mxu0 0.0
    %3797 = vmatpush1.msra.mxu0 0.0
    %3798 = vmatprep.subr.mxu0 0.0
    %3799 = vmatpush1.msra.mxu0 0.0
    %3800 = vmatprep.subr.mxu0 0.0
    %3801 = vmatpush1.msra.mxu0 0.0
    %3802 = vmatprep.subr.mxu0 0.0
    %3803 = vmatpush1.msra.mxu0 0.0
    %3804 = vmatprep.subr.mxu0 0.0
    %3805 = vmatpush1.msra.mxu0 0.0
    %3806 = vmatprep.subr.mxu0 0.0
    %3807 = vmatpush1.msra.mxu0 0.0
    %3808 = vmatprep.subr.mxu0 0.0
    %3809 = vmatpush1.msra.mxu0 0.0
    %3810 = vmatprep.subr.mxu0 0.0
    %3811 = vmatpush1.msra.mxu0 0.0
    %3812 = vmatprep.subr.mxu0 0.0
    %3813 = vmatpush1.msra.mxu0 0.0
    %3814 = vmatprep.subr.mxu0 0.0
    %3815 = vmatpush1.msra.mxu0 0.0
    %3816 = vmatprep.subr.mxu0 0.0
    %3817 = vmatpush1.msra.mxu0 0.0
    %3818 = vmatprep.subr.mxu0 0.0
    %3819 = vmatpush1.msra.mxu0 0.0
    %3820 = vmatprep.subr.mxu0 0.0
    %3821 = vmatpush1.msra.mxu0 0.0
    %3822 = vmatprep.subr.mxu0 0.0
    %3823 = vmatpush1.msra.mxu0 0.0
    %3824 = vmatprep.mubr.f32.mxu0 0.0
    %3825 = vmatmul.mubr.f32.gmra.mrb[0].mxu0 %v3756
    %v3826 = vpop.f32.mrb[0].mxu0
    %v3827 = vadd.f32 0.0, %v3826
    %v3828 = vpop.f32.mrb[0].mxu0
    %3829 = vmatprep.mubr.f32.mxu0 0.0
    %3830 = vmatmul.mubr.f32.gmra.mrb[0].mxu0 %v3758
    %v3831 = vpop.f32.mrb[0].mxu0
    %v3832 = vadd.f32 0.0, %v3831
    %v3833 = vpop.f32.mrb[0].mxu0
    %3834 = vdwg.mxu0
    %v3837 = vcombine.high %v3827, %v3827
    %v3839 = vunpack.c.l.s4 1966171168
    %v3840 = vunpack.c.0.s8 %v3839
    %v3841 = vlaneseq
    %v3842 = vshrl.u32 %v3841, 7
    %v3843 = vsub.s32 %v3840, %v3842
    %v3844 = vrot.slane %v3827, %v3843
    %v3846 = vunpack.c.l.s4 1966171168
    %v3847 = vunpack.c.0.s8 %v3846
    %v3848 = vlaneseq
    %v3849 = vshrl.u32 %v3848, 7
    %v3850 = vsub.s32 %v3847, %v3849
    %v3851 = vrot.slane %v3837, %v3850
    %v3852 = vcombine.high %v3844, %v3844
    %v3853 = vcombine.high %v3851, %v3851
    %v3855 = vunpack.c.l.s4 1966171168
    %v3856 = vunpack.c.0.s8 %v3855
    %v3857 = vlaneseq
    %v3858 = vshrl.u32 %v3857, 7
    %v3859 = vsub.s32 %v3856, %v3858
    %v3860 = vrot.slane %v3844, %v3859
    %v3862 = vunpack.c.l.s4 1966171168
    %v3863 = vunpack.c.0.s8 %v3862
    %v3864 = vlaneseq
    %v3865 = vshrl.u32 %v3864, 7
    %v3866 = vsub.s32 %v3863, %v3865
    %v3867 = vrot.slane %v3851, %v3866
    %v3869 = vunpack.c.l.s4 1966171168
    %v3870 = vunpack.c.0.s8 %v3869
    %v3871 = vlaneseq
    %v3872 = vshrl.u32 %v3871, 7
    %v3873 = vsub.s32 %v3870, %v3872
    %v3874 = vrot.slane %v3852, %v3873
    %v3876 = vunpack.c.l.s4 1966171168
    %v3877 = vunpack.c.0.s8 %v3876
    %v3878 = vlaneseq
    %v3879 = vshrl.u32 %v3878, 7
    %v3880 = vsub.s32 %v3877, %v3879
    %v3881 = vrot.slane %v3853, %v3880
    %v3882 = vcombine.high %v3860, %v3860
    %v3883 = vcombine.high %v3867, %v3867
    %v3884 = vcombine.high %v3874, %v3874
    %v3885 = vcombine.high %v3881, %v3881
    %v3886 = vcombine.high %v3832, %v3832
    %v3888 = vunpack.c.l.s4 1966171168
    %v3889 = vunpack.c.0.s8 %v3888
    %v3890 = vlaneseq
    %v3891 = vshrl.u32 %v3890, 7
    %v3892 = vsub.s32 %v3889, %v3891
    %v3893 = vrot.slane %v3832, %v3892
    %v3895 = vunpack.c.l.s4 1966171168
    %v3896 = vunpack.c.0.s8 %v3895
    %v3897 = vlaneseq
    %v3898 = vshrl.u32 %v3897, 7
    %v3899 = vsub.s32 %v3896, %v3898
    %v3900 = vrot.slane %v3886, %v3899
    %v3901 = vcombine.high %v3893, %v3893
    %v3902 = vcombine.high %v3900, %v3900
    %v3904 = vunpack.c.l.s4 1966171168
    %v3905 = vunpack.c.0.s8 %v3904
    %v3906 = vlaneseq
    %v3907 = vshrl.u32 %v3906, 7
    %v3908 = vsub.s32 %v3905, %v3907
    %v3909 = vrot.slane %v3893, %v3908
    %v3911 = vunpack.c.l.s4 1966171168
    %v3912 = vunpack.c.0.s8 %v3911
    %v3913 = vlaneseq
    %v3914 = vshrl.u32 %v3913, 7
    %v3915 = vsub.s32 %v3912, %v3914
    %v3916 = vrot.slane %v3900, %v3915
    %v3918 = vunpack.c.l.s4 1966171168
    %v3919 = vunpack.c.0.s8 %v3918
    %v3920 = vlaneseq
    %v3921 = vshrl.u32 %v3920, 7
    %v3922 = vsub.s32 %v3919, %v3921
    %v3923 = vrot.slane %v3901, %v3922
    %v3925 = vunpack.c.l.s4 1966171168
    %v3926 = vunpack.c.0.s8 %v3925
    %v3927 = vlaneseq
    %v3928 = vshrl.u32 %v3927, 7
    %v3929 = vsub.s32 %v3926, %v3928
    %v3930 = vrot.slane %v3902, %v3929
    %v3931 = vcombine.high %v3909, %v3909
    %v3932 = vcombine.high %v3923, %v3923
    %v3947 = vadd.f32 %v3860, %v2640
    %v3948 = vadd.f32 %v3874, %v2654
    %v3949 = vadd.f32 %v3882, %v2662
    %v3950 = vadd.f32 %v3884, %v2664
    %v3951 = vadd.f32 %v3867, %v2647
    %v3952 = vadd.f32 %v3881, %v2661
    %v3953 = vadd.f32 %v3883, %v2663
    %v3954 = vadd.f32 %v3885, %v2640
    %v3955 = vadd.f32 %v3909, %v2654
    %v3956 = vadd.f32 %v3923, %v2662
    %v3957 = vadd.f32 %v3931, %v2664
    %v3958 = vadd.f32 %v3932, %v2647
    %v3959 = vadd.f32 %v3916, %v2661
    %v3960 = vadd.f32 %v3930, %v2663
    %v3961 = vmax.f32 %v3947, 0.0
    %v3962 = vmax.f32 %v3948, 0.0
    %v3963 = vmax.f32 %v3949, 0.0
    %v3964 = vmax.f32 %v3950, 0.0
    %v3965 = vmax.f32 %v3951, 0.0
    %v3966 = vmax.f32 %v3952, 0.0
    %v3967 = vmax.f32 %v3953, 0.0
    %v3968 = vmax.f32 %v3954, 0.0
    %v3969 = vmax.f32 %v3955, 0.0
    %v3970 = vmax.f32 %v3956, 0.0
    %v3971 = vmax.f32 %v3957, 0.0
    %v3972 = vmax.f32 %v3958, 0.0
    %v3973 = vmax.f32 %v3959, 0.0
    %v3974 = vmax.f32 %v3960, 0.0
    %v3989 = vcombine.low %v3961, %v3962
    %v3990 = vcombine.low %v3963, %v3964
    %v3991 = vcombine.low %v3965, %v3966
    %v3993 = vunpack.c.l.s4 1966171168
    %v3994 = vunpack.c.0.s8 %v3993
    %v3995 = vlaneseq
    %v3996 = vshrl.u32 %v3995, 7
    %v3997 = vsub.s32 %v3994, %v3996
    %v3998 = vrot.slane %v3989, %v3997
    %v4000 = vunpack.c.l.s4 1966171168
    %v4001 = vunpack.c.0.s8 %v4000
    %v4002 = vlaneseq
    %v4003 = vshrl.u32 %v4002, 7
    %v4004 = vsub.s32 %v4001, %v4003
    %v4005 = vrot.slane %v3990, %v4004
    %v4007 = vunpack.c.l.s4 1966171168
    %v4008 = vunpack.c.0.s8 %v4007
    %v4009 = vlaneseq
    %v4010 = vshrl.u32 %v4009, 7
    %v4011 = vsub.s32 %v4008, %v4010
    %v4012 = vrot.slane %v3991, %v4011
    %v4014 = vunpack.c.l.s4 1966171168
    %v4015 = vunpack.c.0.s8 %v4014
    %v4016 = vlaneseq
    %v4017 = vshrl.u32 %v4016, 7
    %v4018 = vsub.s32 %v4015, %v4017
    %v4019 = vrot.slane %v3967, %v4018
    %v4020 = vcombine.low %v3998, %v4005
    %v4021 = vcombine.low %v4012, %v4019
    %v4023 = vunpack.c.l.s4 1966171168
    %v4024 = vunpack.c.0.s8 %v4023
    %v4025 = vlaneseq
    %v4026 = vshrl.u32 %v4025, 7
    %v4027 = vsub.s32 %v4024, %v4026
    %v4028 = vrot.slane %v4020, %v4027
    %v4030 = vunpack.c.l.s4 1966171168
    %v4031 = vunpack.c.0.s8 %v4030
    %v4032 = vlaneseq
    %v4033 = vshrl.u32 %v4032, 7
    %v4034 = vsub.s32 %v4031, %v4033
    %v4035 = vrot.slane %v4021, %v4034
    %v4036 = vcombine.low %v4028, %v4035
    %v4037 = vcombine.low %v3968, %v3969
    %v4038 = vcombine.low %v3970, %v3971
    %v4039 = vcombine.low %v3972, %v3973
    %v4041 = vunpack.c.l.s4 1966171168
    %v4042 = vunpack.c.0.s8 %v4041
    %v4043 = vlaneseq
    %v4044 = vshrl.u32 %v4043, 7
    %v4045 = vsub.s32 %v4042, %v4044
    %v4046 = vrot.slane %v4037, %v4045
    %v4048 = vunpack.c.l.s4 1966171168
    %v4049 = vunpack.c.0.s8 %v4048
    %v4050 = vlaneseq
    %v4051 = vshrl.u32 %v4050, 7
    %v4052 = vsub.s32 %v4049, %v4051
    %v4053 = vrot.slane %v4038, %v4052
    %v4055 = vunpack.c.l.s4 1966171168
    %v4056 = vunpack.c.0.s8 %v4055
    %v4057 = vlaneseq
    %v4058 = vshrl.u32 %v4057, 7
    %v4059 = vsub.s32 %v4056, %v4058
    %v4060 = vrot.slane %v4039, %v4059
    %v4062 = vunpack.c.l.s4 1966171168
    %v4063 = vunpack.c.0.s8 %v4062
    %v4064 = vlaneseq
    %v4065 = vshrl.u32 %v4064, 7
    %v4066 = vsub.s32 %v4063, %v4065
    %v4067 = vrot.slane %v3974, %v4066
    %v4068 = vcombine.low %v4046, %v4053
    %v4069 = vcombine.low %v4060, %v4067
    %v4071 = vunpack.c.l.s4 1966171168
    %v4072 = vunpack.c.0.s8 %v4071
    %v4073 = vlaneseq
    %v4074 = vshrl.u32 %v4073, 7
    %v4075 = vsub.s32 %v4072, %v4074
    %v4076 = vrot.slane %v4068, %v4075
    %v4078 = vunpack.c.l.s4 1966171168
    %v4079 = vunpack.c.0.s8 %v4078
    %v4080 = vlaneseq
    %v4081 = vshrl.u32 %v4080, 7
    %v4082 = vsub.s32 %v4079, %v4081
    %v4083 = vrot.slane %v4069, %v4082
    %v4084 = vcombine.low %v4076, %v4083
    %vm4087 = vcmask 260096
    %v4088 = vsel %vm4087, %v4036, -inf
    %v4089 = vrot.slane %v4088, 4
    %v4090 = vmax.f32 %v4088, %v4089
    %v4091 = vrot.slane %v4090, 2
    %v4092 = vmax.f32 %v4090, %v4091
    %v4093 = vrot.slane %v4092, 1
    %v4094 = vmax.f32 %v4092, %v4093
    %v4095 = vsel %vm4087, %v4084, -inf
    %v4096 = vrot.slane %v4095, 4
    %v4097 = vmax.f32 %v4095, %v4096
    %v4098 = vrot.slane %v4097, 2
    %v4099 = vmax.f32 %v4097, %v4098
    %v4100 = vrot.slane %v4099, 1
    %v4101 = vmax.f32 %v4099, %v4100
    %v4102 = vrot.slane %v3549, 2
    %v4103 = vrot.slane %v3554, 2
    %4104 = vrot.lane.b32.xlu0 %v4102, 64
    %v4105 = vpop.permute.xlu0 %4104
    %4106 = vrot.lane.b32.xlu0 %v4103, 64
    %v4107 = vpop.permute.xlu0 %4106
    %v4110 = vsel %vm122, %v3567, %v4105
    %v4111 = vsel %vm122, %v3568, %v4107
    %v4114 = vcombine.high %v4110, %v4110
    %v4116 = vunpack.c.l.s4 1983009808
    %v4117 = vunpack.c.0.s8 %v4116
    %v4118 = vlaneseq
    %v4119 = vshrl.u32 %v4118, 7
    %v4120 = vsub.s32 %v4117, %v4119
    %v4121 = vrot.slane %v4110, %v4120
    %v4123 = vunpack.c.l.s4 1983009808
    %v4124 = vunpack.c.0.s8 %v4123
    %v4125 = vlaneseq
    %v4126 = vshrl.u32 %v4125, 7
    %v4127 = vsub.s32 %v4124, %v4126
    %v4128 = vrot.slane %v4114, %v4127
    %v4129 = vcombine.high %v4121, %v4121
    %v4130 = vcombine.high %v4111, %v4111
    %v4132 = vunpack.c.l.s4 1983009808
    %v4133 = vunpack.c.0.s8 %v4132
    %v4134 = vlaneseq
    %v4135 = vshrl.u32 %v4134, 7
    %v4136 = vsub.s32 %v4133, %v4135
    %v4137 = vrot.slane %v4111, %v4136
    %v4139 = vunpack.c.l.s4 1983009808
    %v4140 = vunpack.c.0.s8 %v4139
    %v4141 = vlaneseq
    %v4142 = vshrl.u32 %v4141, 7
    %v4143 = vsub.s32 %v4140, %v4142
    %v4144 = vrot.slane %v4130, %v4143
    %v4145 = vcombine.high %v4137, %v4137
    %v4146 = vcombine.low %v4121, %v4129
    %v4147 = vcombine.low %v4128, %v4137
    %v4149 = vunpack.c.l.s4 1983009808
    %v4150 = vunpack.c.0.s8 %v4149
    %v4151 = vlaneseq
    %v4152 = vshrl.u32 %v4151, 7
    %v4153 = vsub.s32 %v4150, %v4152
    %v4154 = vrot.slane %v4146, %v4153
    %v4156 = vunpack.c.l.s4 1983009808
    %v4157 = vunpack.c.0.s8 %v4156
    %v4158 = vlaneseq
    %v4159 = vshrl.u32 %v4158, 7
    %v4160 = vsub.s32 %v4157, %v4159
    %v4161 = vrot.slane %v4147, %v4160
    %v4162 = vcombine.low %v4154, %v4161
    %v4163 = vcombine.low %v4145, %v4144
    %v4165 = vunpack.c.l.s4 1983009808
    %v4166 = vunpack.c.0.s8 %v4165
    %v4167 = vlaneseq
    %v4168 = vshrl.u32 %v4167, 7
    %v4169 = vsub.s32 %v4166, %v4168
    %v4170 = vrot.slane %v4163, %v4169
    %v4171 = vsel %vm3024, %v4162, 0
    %v4173 = vsel %vm3024, %v4170, 0
    %4175 = vmatprep.subr.mxu0 0.0
    %4176 = vmatpush1.msra.mxu0 %v1898
    %4177 = vmatprep.subr.mxu0 0.0
    %4178 = vmatpush1.msra.mxu0 %v1899
    %4179 = vmatprep.subr.mxu0 0.0
    %4180 = vmatpush1.msra.mxu0 %v1900
    %4181 = vmatprep.subr.mxu0 0.0
    %4182 = vmatpush1.msra.mxu0 %v1901
    %4183 = vmatprep.subr.mxu0 0.0
    %4184 = vmatpush1.msra.mxu0 %v1902
    %4185 = vmatprep.subr.mxu0 0.0
    %4186 = vmatpush1.msra.mxu0 %v1903
    %4187 = vmatprep.subr.mxu0 0.0
    %4188 = vmatpush1.msra.mxu0 %v1904
    %4189 = vmatprep.subr.mxu0 0.0
    %4190 = vmatpush1.msra.mxu0 %v1905
    %4191 = vmatprep.subr.mxu0 0.0
    %4192 = vmatpush1.msra.mxu0 %v1906
    %4193 = vmatprep.subr.mxu0 0.0
    %4194 = vmatpush1.msra.mxu0 %v1907
    %4195 = vmatprep.subr.mxu0 0.0
    %4196 = vmatpush1.msra.mxu0 %v1908
    %4197 = vmatprep.subr.mxu0 0.0
    %4198 = vmatpush1.msra.mxu0 %v1909
    %4199 = vmatprep.subr.mxu0 0.0
    %4200 = vmatpush1.msra.mxu0 0.0
    %4201 = vmatprep.subr.mxu0 0.0
    %4202 = vmatpush1.msra.mxu0 0.0
    %4203 = vmatprep.subr.mxu0 0.0
    %4204 = vmatpush1.msra.mxu0 0.0
    %4205 = vmatprep.subr.mxu0 0.0
    %4206 = vmatpush1.msra.mxu0 0.0
    %4207 = vmatprep.subr.mxu0 0.0
    %4208 = vmatpush1.msra.mxu0 0.0
    %4209 = vmatprep.subr.mxu0 0.0
    %4210 = vmatpush1.msra.mxu0 0.0
    %4211 = vmatprep.subr.mxu0 0.0
    %4212 = vmatpush1.msra.mxu0 0.0
    %4213 = vmatprep.subr.mxu0 0.0
    %4214 = vmatpush1.msra.mxu0 0.0
    %4215 = vmatprep.subr.mxu0 0.0
    %4216 = vmatpush1.msra.mxu0 0.0
    %4217 = vmatprep.subr.mxu0 0.0
    %4218 = vmatpush1.msra.mxu0 0.0
    %4219 = vmatprep.subr.mxu0 0.0
    %4220 = vmatpush1.msra.mxu0 0.0
    %4221 = vmatprep.subr.mxu0 0.0
    %4222 = vmatpush1.msra.mxu0 0.0
    %4223 = vmatprep.subr.mxu0 0.0
    %4224 = vmatpush1.msra.mxu0 0.0
    %4225 = vmatprep.subr.mxu0 0.0
    %4226 = vmatpush1.msra.mxu0 0.0
    %4227 = vmatprep.subr.mxu0 0.0
    %4228 = vmatpush1.msra.mxu0 0.0
    %4229 = vmatprep.subr.mxu0 0.0
    %4230 = vmatpush1.msra.mxu0 0.0
    %4231 = vmatprep.subr.mxu0 0.0
    %4232 = vmatpush1.msra.mxu0 0.0
    %4233 = vmatprep.subr.mxu0 0.0
    %4234 = vmatpush1.msra.mxu0 0.0
    %4235 = vmatprep.subr.mxu0 0.0
    %4236 = vmatpush1.msra.mxu0 0.0
    %4237 = vmatprep.subr.mxu0 0.0
    %4238 = vmatpush1.msra.mxu0 0.0
    %4239 = vmatprep.mubr.f32.mxu0 0.0
    %4240 = vmatmul.mubr.f32.gmra.mrb[0].mxu0 %v4171
    %v4241 = vpop.f32.mrb[0].mxu0
    %v4242 = vadd.f32 0.0, %v4241
    %v4243 = vpop.f32.mrb[0].mxu0
    %4244 = vmatprep.mubr.f32.mxu0 0.0
    %4245 = vmatmul.mubr.f32.gmra.mrb[0].mxu0 %v4173
    %v4246 = vpop.f32.mrb[0].mxu0
    %v4247 = vadd.f32 0.0, %v4246
    %v4248 = vpop.f32.mrb[0].mxu0
    %4249 = vdwg.mxu0
    %v4252 = vcombine.high %v4242, %v4242
    %v4254 = vunpack.c.l.s4 1983009808
    %v4255 = vunpack.c.0.s8 %v4254
    %v4256 = vlaneseq
    %v4257 = vshrl.u32 %v4256, 7
    %v4258 = vsub.s32 %v4255, %v4257
    %v4259 = vrot.slane %v4242, %v4258
    %v4261 = vunpack.c.l.s4 1983009808
    %v4262 = vunpack.c.0.s8 %v4261
    %v4263 = vlaneseq
    %v4264 = vshrl.u32 %v4263, 7
    %v4265 = vsub.s32 %v4262, %v4264
    %v4266 = vrot.slane %v4252, %v4265
    %v4267 = vcombine.high %v4259, %v4259
    %v4268 = vcombine.high %v4266, %v4266
    %v4270 = vunpack.c.l.s4 1983009808
    %v4271 = vunpack.c.0.s8 %v4270
    %v4272 = vlaneseq
    %v4273 = vshrl.u32 %v4272, 7
    %v4274 = vsub.s32 %v4271, %v4273
    %v4275 = vrot.slane %v4247, %v4274
    %v4276 = vcombine.high %v4275, %v4275
    %v4283 = vadd.f32 %v4259, %v3178
    %v4284 = vadd.f32 %v4267, %v3186
    %v4285 = vadd.f32 %v4266, %v3185
    %v4286 = vadd.f32 %v4268, %v3178
    %v4287 = vadd.f32 %v4275, %v3186
    %v4288 = vadd.f32 %v4276, %v3185
    %v4289 = vmax.f32 %v4283, 0.0
    %v4290 = vmax.f32 %v4284, 0.0
    %v4291 = vmax.f32 %v4285, 0.0
    %v4292 = vmax.f32 %v4286, 0.0
    %v4293 = vmax.f32 %v4287, 0.0
    %v4294 = vmax.f32 %v4288, 0.0
    %v4301 = vcombine.low %v4289, %v4290
    %v4303 = vunpack.c.l.s4 1983009808
    %v4304 = vunpack.c.0.s8 %v4303
    %v4305 = vlaneseq
    %v4306 = vshrl.u32 %v4305, 7
    %v4307 = vsub.s32 %v4304, %v4306
    %v4308 = vrot.slane %v4301, %v4307
    %v4310 = vunpack.c.l.s4 1983009808
    %v4311 = vunpack.c.0.s8 %v4310
    %v4312 = vlaneseq
    %v4313 = vshrl.u32 %v4312, 7
    %v4314 = vsub.s32 %v4311, %v4313
    %v4315 = vrot.slane %v4291, %v4314
    %v4316 = vcombine.low %v4308, %v4315
    %v4317 = vcombine.low %v4292, %v4293
    %v4319 = vunpack.c.l.s4 1983009808
    %v4320 = vunpack.c.0.s8 %v4319
    %v4321 = vlaneseq
    %v4322 = vshrl.u32 %v4321, 7
    %v4323 = vsub.s32 %v4320, %v4322
    %v4324 = vrot.slane %v4317, %v4323
    %v4326 = vunpack.c.l.s4 1983009808
    %v4327 = vunpack.c.0.s8 %v4326
    %v4328 = vlaneseq
    %v4329 = vshrl.u32 %v4328, 7
    %v4330 = vsub.s32 %v4327, %v4329
    %v4331 = vrot.slane %v4294, %v4330
    %v4332 = vcombine.low %v4324, %v4331
    %vm4335 = vcmask 259072
    %v4336 = vsel %vm4335, %v4316, -inf
    %v4337 = vrot.slane %v4336, 4
    %v4338 = vmax.f32 %v4336, %v4337
    %v4339 = vrot.slane %v4338, 2
    %v4340 = vmax.f32 %v4338, %v4339
    %v4341 = vrot.slane %v4340, 1
    %v4342 = vmax.f32 %v4340, %v4341
    %v4343 = vsel %vm4335, %v4332, -inf
    %v4344 = vrot.slane %v4343, 4
    %v4345 = vmax.f32 %v4343, %v4344
    %v4346 = vrot.slane %v4345, 2
    %v4347 = vmax.f32 %v4345, %v4346
    %v4348 = vrot.slane %v4347, 1
    %v4349 = vmax.f32 %v4347, %v4348
    %v4352 = vsel %vm543, %v4101, %v4094
    %v4356 = vsel %vm543, %v4349, %v4342
    %4357 = vrot.lane.b32.xlu0 %v4356, 32
    %v4358 = vpop.permute.xlu0 %4357
    %v4360 = vsel %vm232, %v4352, %v4358
    %v4362 = vsel %vm122, %v4360, 0
    %4364 = vmatprep.subr.mxu0 0.0
    %4365 = vmatpush1.msra.mxu0 %v1912
    %4366 = vmatprep.subr.mxu0 0.0
    %4367 = vmatpush1.msra.mxu0 %v1913
    %4368 = vmatprep.subr.mxu0 0.0
    %4369 = vmatpush1.msra.mxu0 %v1914
    %4370 = vmatprep.subr.mxu0 0.0
    %4371 = vmatpush1.msra.mxu0 %v1915
    %4372 = vmatprep.subr.mxu0 0.0
    %4373 = vmatpush1.msra.mxu0 %v1916
    %4374 = vmatprep.subr.mxu0 0.0
    %4375 = vmatpush1.msra.mxu0 %v1917
    %4376 = vmatprep.subr.mxu0 0.0
    %4377 = vmatpush1.msra.mxu0 %v1918
    %4378 = vmatprep.subr.mxu0 0.0
    %4379 = vmatpush1.msra.mxu0 %v1919
    %4380 = vmatprep.subr.mxu0 0.0
    %4381 = vmatpush1.msra.mxu0 0.0
    %4382 = vmatprep.subr.mxu0 0.0
    %4383 = vmatpush1.msra.mxu0 0.0
    %4384 = vmatprep.subr.mxu0 0.0
    %4385 = vmatpush1.msra.mxu0 0.0
    %4386 = vmatprep.subr.mxu0 0.0
    %4387 = vmatpush1.msra.mxu0 0.0
    %4388 = vmatprep.subr.mxu0 0.0
    %4389 = vmatpush1.msra.mxu0 0.0
    %4390 = vmatprep.subr.mxu0 0.0
    %4391 = vmatpush1.msra.mxu0 0.0
    %4392 = vmatprep.subr.mxu0 0.0
    %4393 = vmatpush1.msra.mxu0 0.0
    %4394 = vmatprep.subr.mxu0 0.0
    %4395 = vmatpush1.msra.mxu0 0.0
    %4396 = vmatprep.subr.mxu0 0.0
    %4397 = vmatpush1.msra.mxu0 0.0
    %4398 = vmatprep.subr.mxu0 0.0
    %4399 = vmatpush1.msra.mxu0 0.0
    %4400 = vmatprep.subr.mxu0 0.0
    %4401 = vmatpush1.msra.mxu0 0.0
    %4402 = vmatprep.subr.mxu0 0.0
    %4403 = vmatpush1.msra.mxu0 0.0
    %4404 = vmatprep.subr.mxu0 0.0
    %4405 = vmatpush1.msra.mxu0 0.0
    %4406 = vmatprep.subr.mxu0 0.0
    %4407 = vmatpush1.msra.mxu0 0.0
    %4408 = vmatprep.subr.mxu0 0.0
    %4409 = vmatpush1.msra.mxu0 0.0
    %4410 = vmatprep.subr.mxu0 0.0
    %4411 = vmatpush1.msra.mxu0 0.0
    %4412 = vmatprep.subr.mxu0 0.0
    %4413 = vmatpush1.msra.mxu0 0.0
    %4414 = vmatprep.subr.mxu0 0.0
    %4415 = vmatpush1.msra.mxu0 0.0
    %4416 = vmatprep.subr.mxu0 0.0
    %4417 = vmatpush1.msra.mxu0 0.0
    %4418 = vmatprep.subr.mxu0 0.0
    %4419 = vmatpush1.msra.mxu0 0.0
    %4420 = vmatprep.subr.mxu0 0.0
    %4421 = vmatpush1.msra.mxu0 0.0
    %4422 = vmatprep.subr.mxu0 0.0
    %4423 = vmatpush1.msra.mxu0 0.0
    %4424 = vmatprep.subr.mxu0 0.0
    %4425 = vmatpush1.msra.mxu0 0.0
    %4426 = vmatprep.subr.mxu0 0.0
    %4427 = vmatpush1.msra.mxu0 0.0
    %4428 = vmatprep.mubr.f32.mxu0 0.0
    %4429 = vmatmul.mubr.f32.gmra.mrb[0].mxu0 %v4362
    %v4430 = vpop.f32.mrb[0].mxu0
    %v4431 = vadd.f32 %v3308, %v4430
    %v4432 = vpop.f32.mrb[0].mxu0
    %4433 = vdwg.mxu0
    %v4435 = vsel %vm232, %v4431, 0
    %4437 = vmatprep.subr.mxu0 0.0
    %4438 = vmatpush1.msra.mxu0 %v1921
    %4439 = vmatprep.subr.mxu0 0.0
    %4440 = vmatpush1.msra.mxu0 %v1922
    %4441 = vmatprep.subr.mxu0 0.0
    %4442 = vmatpush1.msra.mxu0 %v1923
    %4443 = vmatprep.subr.mxu0 0.0
    %4444 = vmatpush1.msra.mxu0 %v1924
    %4445 = vmatprep.subr.mxu0 0.0
    %4446 = vmatpush1.msra.mxu0 0.0
    %4447 = vmatprep.subr.mxu0 0.0
    %4448 = vmatpush1.msra.mxu0 0.0
    %4449 = vmatprep.subr.mxu0 0.0
    %4450 = vmatpush1.msra.mxu0 0.0
    %4451 = vmatprep.subr.mxu0 0.0
    %4452 = vmatpush1.msra.mxu0 0.0
    %4453 = vmatprep.subr.mxu0 0.0
    %4454 = vmatpush1.msra.mxu0 0.0
    %4455 = vmatprep.subr.mxu0 0.0
    %4456 = vmatpush1.msra.mxu0 0.0
    %4457 = vmatprep.subr.mxu0 0.0
    %4458 = vmatpush1.msra.mxu0 0.0
    %4459 = vmatprep.subr.mxu0 0.0
    %4460 = vmatpush1.msra.mxu0 0.0
    %4461 = vmatprep.subr.mxu0 0.0
    %4462 = vmatpush1.msra.mxu0 0.0
    %4463 = vmatprep.subr.mxu0 0.0
    %4464 = vmatpush1.msra.mxu0 0.0
    %4465 = vmatprep.subr.mxu0 0.0
    %4466 = vmatpush1.msra.mxu0 0.0
    %4467 = vmatprep.subr.mxu0 0.0
    %4468 = vmatpush1.msra.mxu0 0.0
    %4469 = vmatprep.subr.mxu0 0.0
    %4470 = vmatpush1.msra.mxu0 0.0
    %4471 = vmatprep.subr.mxu0 0.0
    %4472 = vmatpush1.msra.mxu0 0.0
    %4473 = vmatprep.subr.mxu0 0.0
    %4474 = vmatpush1.msra.mxu0 0.0
    %4475 = vmatprep.subr.mxu0 0.0
    %4476 = vmatpush1.msra.mxu0 0.0
    %4477 = vmatprep.subr.mxu0 0.0
    %4478 = vmatpush1.msra.mxu0 0.0
    %4479 = vmatprep.subr.mxu0 0.0
    %4480 = vmatpush1.msra.mxu0 0.0
    %4481 = vmatprep.subr.mxu0 0.0
    %4482 = vmatpush1.msra.mxu0 0.0
    %4483 = vmatprep.subr.mxu0 0.0
    %4484 = vmatpush1.msra.mxu0 0.0
    %4485 = vmatprep.subr.mxu0 0.0
    %4486 = vmatpush1.msra.mxu0 0.0
    %4487 = vmatprep.subr.mxu0 0.0
    %4488 = vmatpush1.msra.mxu0 0.0
    %4489 = vmatprep.subr.mxu0 0.0
    %4490 = vmatpush1.msra.mxu0 0.0
    %4491 = vmatprep.subr.mxu0 0.0
    %4492 = vmatpush1.msra.mxu0 0.0
    %4493 = vmatprep.subr.mxu0 0.0
    %4494 = vmatpush1.msra.mxu0 0.0
    %4495 = vmatprep.subr.mxu0 0.0
    %4496 = vmatpush1.msra.mxu0 0.0
    %4497 = vmatprep.subr.mxu0 0.0
    %4498 = vmatpush1.msra.mxu0 0.0
    %4499 = vmatprep.subr.mxu0 0.0
    %4500 = vmatpush1.msra.mxu0 0.0
    %4501 = vmatprep.mubr.f32.mxu0 0.0
    %4502 = vmatmul.mubr.f32.gmra.mrb[0].mxu0 %v4435
    %v4503 = vpop.f32.mrb[0].mxu0
    %v4504 = vadd.f32 %v3387, %v4503
    %v4505 = vpop.f32.mrb[0].mxu0
    %4506 = vdwg.mxu0
    %v4509 = vunpack.c.l.s4 1983009808
    %v4510 = vunpack.c.0.s8 %v4509
    %v4511 = vlaneseq
    %v4512 = vshrl.u32 %v4511, 7
    %v4513 = vsub.s32 %v4510, %v4512
    %v4514 = vrot.slane %v1889, %v4513
    %4515 = vrot.lane.b32.xlu0 %v4514, 32
    %v4516 = vpop.permute.xlu0 %4515
    %4519 = vrot.lane.b32.xlu0 %v3459, 96
    %v4520 = vpop.permute.xlu0 %4519
    %v4522 = vsel %vm232, %v4504, %v4516
    %v4523 = vsel %vm3024, %v4522, %v4520
    %v4524 = vld [vmem:[%s16] sm:$0xff]
    %v4525 = vld [vmem:[%s16 + $0x8] sm:$0xff]
    %v4526 = vld [vmem:[%s16 + $0x10] sm:$0xff]
    %v4527 = vld [vmem:[%s16 + $0x18] sm:$0xff]
    %v4528 = vld [vmem:[%s16 + $0x20] sm:$0xff]
    %v4529 = vld [vmem:[%s16 + $0x28] sm:$0xff]
    %v4530 = vld [vmem:[%s16 + $0x30] sm:$0xff]
    %v4531 = vld [vmem:[%s16 + $0x38] sm:$0xff]
    %v4532 = vld [vmem:[%s16 + $0x40] sm:$0xff]
    %v4533 = vld [vmem:[%s16 + $0x48] sm:$0xff]
    %v4534 = vld [vmem:[%s16 + $0x50] sm:$0xff]
    %v4535 = vld [vmem:[%s16 + $0x58] sm:$0xff]
    %v4536 = vld [vmem:[%s16 + $0x60] sm:$0xff]
    %v4537 = vld [vmem:[%s16 + $0x68] sm:$0xff]
    %v4538 = vld [vmem:[%s16 + $0x70] sm:$0xff]
    %v4539 = vld [vmem:[%s16 + $0x78] sm:$0xff]
    %v4540 = vld [vmem:[%s17] sm:$0x1]
    %v4542 = vlaneseq
    %v4543 = vshrl.u32 %v4542, 7
    %v4544 = vsub.s32 0, %v4543
    %v4545 = vrot.slane %v4540, %v4544
    %4547 = vmatprep.subr.mxu0 0.0
    %4548 = vmatpush1.msra.mxu0 %v4524
    %4549 = vmatprep.subr.mxu0 0.0
    %4550 = vmatpush1.msra.mxu0 %v4525
    %4551 = vmatprep.subr.mxu0 0.0
    %4552 = vmatpush1.msra.mxu0 %v4526
    %4553 = vmatprep.subr.mxu0 0.0
    %4554 = vmatpush1.msra.mxu0 %v4527
    %4555 = vmatprep.subr.mxu0 0.0
    %4556 = vmatpush1.msra.mxu0 %v4528
    %4557 = vmatprep.subr.mxu0 0.0
    %4558 = vmatpush1.msra.mxu0 %v4529
    %4559 = vmatprep.subr.mxu0 0.0
    %4560 = vmatpush1.msra.mxu0 %v4530
    %4561 = vmatprep.subr.mxu0 0.0
    %4562 = vmatpush1.msra.mxu0 %v4531
    %4563 = vmatprep.subr.mxu0 0.0
    %4564 = vmatpush1.msra.mxu0 %v4532
    %4565 = vmatprep.subr.mxu0 0.0
    %4566 = vmatpush1.msra.mxu0 %v4533
    %4567 = vmatprep.subr.mxu0 0.0
    %4568 = vmatpush1.msra.mxu0 %v4534
    %4569 = vmatprep.subr.mxu0 0.0
    %4570 = vmatpush1.msra.mxu0 %v4535
    %4571 = vmatprep.subr.mxu0 0.0
    %4572 = vmatpush1.msra.mxu0 %v4536
    %4573 = vmatprep.subr.mxu0 0.0
    %4574 = vmatpush1.msra.mxu0 %v4537
    %4575 = vmatprep.subr.mxu0 0.0
    %4576 = vmatpush1.msra.mxu0 %v4538
    %4577 = vmatprep.subr.mxu0 0.0
    %4578 = vmatpush1.msra.mxu0 %v4539
    %4579 = vmatprep.subr.mxu0 0.0
    %4580 = vmatpush1.msra.mxu0 0.0
    %4581 = vmatprep.subr.mxu0 0.0
    %4582 = vmatpush1.msra.mxu0 0.0
    %4583 = vmatprep.subr.mxu0 0.0
    %4584 = vmatpush1.msra.mxu0 0.0
    %4585 = vmatprep.subr.mxu0 0.0
    %4586 = vmatpush1.msra.mxu0 0.0
    %4587 = vmatprep.subr.mxu0 0.0
    %4588 = vmatpush1.msra.mxu0 0.0
    %4589 = vmatprep.subr.mxu0 0.0
    %4590 = vmatpush1.msra.mxu0 0.0
    %4591 = vmatprep.subr.mxu0 0.0
    %4592 = vmatpush1.msra.mxu0 0.0
    %4593 = vmatprep.subr.mxu0 0.0
    %4594 = vmatpush1.msra.mxu0 0.0
    %4595 = vmatprep.subr.mxu0 0.0
    %4596 = vmatpush1.msra.mxu0 0.0
    %4597 = vmatprep.subr.mxu0 0.0
    %4598 = vmatpush1.msra.mxu0 0.0
    %4599 = vmatprep.subr.mxu0 0.0
    %4600 = vmatpush1.msra.mxu0 0.0
    %4601 = vmatprep.subr.mxu0 0.0
    %4602 = vmatpush1.msra.mxu0 0.0
    %4603 = vmatprep.subr.mxu0 0.0
    %4604 = vmatpush1.msra.mxu0 0.0
    %4605 = vmatprep.subr.mxu0 0.0
    %4606 = vmatpush1.msra.mxu0 0.0
    %4607 = vmatprep.subr.mxu0 0.0
    %4608 = vmatpush1.msra.mxu0 0.0
    %4609 = vmatprep.subr.mxu0 0.0
    %4610 = vmatpush1.msra.mxu0 0.0
    %4611 = vmatprep.mubr.f32.mxu0 0.0
    %4612 = vmatmul.mubr.f32.gmra.mrb[0].mxu0 %v4523
    %v4613 = vpop.f32.mrb[0].mxu0
    %v4614 = vadd.f32 %v4545, %v4613
    %v4615 = vpop.f32.mrb[0].mxu0
    %4616 = vdwg.mxu0
    %v4617 = vmax.f32 %v4614, 0.0
    %v4618 = vld [vmem:[%s18] sm:$0xff]
    %v4619 = vld [vmem:[%s18 + $0x8] sm:$0xff]
    %v4620 = vld [vmem:[%s18 + $0x10] sm:$0xff]
    %v4621 = vld [vmem:[%s18 + $0x18] sm:$0xff]
    %v4622 = vld [vmem:[%s18 + $0x20] sm:$0xff]
    %v4623 = vld [vmem:[%s18 + $0x28] sm:$0xff]
    %v4624 = vld [vmem:[%s18 + $0x30] sm:$0xff]
    %v4625 = vld [vmem:[%s18 + $0x38] sm:$0xff]
    %v4626 = vld [vmem:[%s18 + $0x40] sm:$0xff]
    %v4627 = vld [vmem:[%s18 + $0x48] sm:$0xff]
    %v4628 = vld [vmem:[%s18 + $0x50] sm:$0xff]
    %v4629 = vld [vmem:[%s18 + $0x58] sm:$0xff]
    %v4630 = vld [vmem:[%s18 + $0x60] sm:$0xff]
    %v4631 = vld [vmem:[%s18 + $0x68] sm:$0xff]
    %v4632 = vld [vmem:[%s18 + $0x70] sm:$0xff]
    %v4633 = vld [vmem:[%s18 + $0x78] sm:$0xff]
    %v4634 = vld [vmem:[%s19] sm:$0x3]
    %v4636 = vlaneseq
    %v4637 = vshrl.u32 %v4636, 7
    %v4638 = vsub.s32 0, %v4637
    %v4639 = vrot.slane %v4634, %v4638
    %v4640 = vlaneseq
    %v4641 = vshrl.u32 %v4640, 7
    %v4642 = vsub.s32 1, %v4641
    %v4643 = vrot.slane %v4634, %v4642
    %v4647 = vsel %vm122, %v4617, 0
    %4649 = vmatprep.subr.mxu0 %v4619
    %4650 = vmatpush1.msra.mxu0 %v4618
    %4651 = vmatprep.subr.mxu0 %v4621
    %4652 = vmatpush1.msra.mxu0 %v4620
    %4653 = vmatprep.subr.mxu0 %v4623
    %4654 = vmatpush1.msra.mxu0 %v4622
    %4655 = vmatprep.subr.mxu0 %v4625
    %4656 = vmatpush1.msra.mxu0 %v4624
    %4657 = vmatprep.subr.mxu0 %v4627
    %4658 = vmatpush1.msra.mxu0 %v4626
    %4659 = vmatprep.subr.mxu0 %v4629
    %4660 = vmatpush1.msra.mxu0 %v4628
    %4661 = vmatprep.subr.mxu0 %v4631
    %4662 = vmatpush1.msra.mxu0 %v4630
    %4663 = vmatprep.subr.mxu0 %v4633
    %4664 = vmatpush1.msra.mxu0 %v4632
    %4665 = vmatprep.subr.mxu0 0.0
    %4666 = vmatpush1.msra.mxu0 0.0
    %4667 = vmatprep.subr.mxu0 0.0
    %4668 = vmatpush1.msra.mxu0 0.0
    %4669 = vmatprep.subr.mxu0 0.0
    %4670 = vmatpush1.msra.mxu0 0.0
    %4671 = vmatprep.subr.mxu0 0.0
    %4672 = vmatpush1.msra.mxu0 0.0
    %4673 = vmatprep.subr.mxu0 0.0
    %4674 = vmatpush1.msra.mxu0 0.0
    %4675 = vmatprep.subr.mxu0 0.0
    %4676 = vmatpush1.msra.mxu0 0.0
    %4677 = vmatprep.subr.mxu0 0.0
    %4678 = vmatpush1.msra.mxu0 0.0
    %4679 = vmatprep.subr.mxu0 0.0
    %4680 = vmatpush1.msra.mxu0 0.0
    %4681 = vmatprep.subr.mxu0 0.0
    %4682 = vmatpush1.msra.mxu0 0.0
    %4683 = vmatprep.subr.mxu0 0.0
    %4684 = vmatpush1.msra.mxu0 0.0
    %4685 = vmatprep.subr.mxu0 0.0
    %4686 = vmatpush1.msra.mxu0 0.0
    %4687 = vmatprep.subr.mxu0 0.0
    %4688 = vmatpush1.msra.mxu0 0.0
    %4689 = vmatprep.subr.mxu0 0.0
    %4690 = vmatpush1.msra.mxu0 0.0
    %4691 = vmatprep.subr.mxu0 0.0
    %4692 = vmatpush1.msra.mxu0 0.0
    %4693 = vmatprep.subr.mxu0 0.0
    %4694 = vmatpush1.msra.mxu0 0.0
    %4695 = vmatprep.subr.mxu0 0.0
    %4696 = vmatpush1.msra.mxu0 0.0
    %4697 = vmatprep.subr.mxu0 0.0
    %4698 = vmatpush1.msra.mxu0 0.0
    %4699 = vmatprep.subr.mxu0 0.0
    %4700 = vmatpush1.msra.mxu0 0.0
    %4701 = vmatprep.subr.mxu0 0.0
    %4702 = vmatpush1.msra.mxu0 0.0
    %4703 = vmatprep.subr.mxu0 0.0
    %4704 = vmatpush1.msra.mxu0 0.0
    %4705 = vmatprep.subr.mxu0 0.0
    %4706 = vmatpush1.msra.mxu0 0.0
    %4707 = vmatprep.subr.mxu0 0.0
    %4708 = vmatpush1.msra.mxu0 0.0
    %4709 = vmatprep.subr.mxu0 0.0
    %4710 = vmatpush1.msra.mxu0 0.0
    %4711 = vmatprep.subr.mxu0 0.0
    %4712 = vmatpush1.msra.mxu0 0.0
    %4713 = vmatprep.mubr.f32.mxu0 0.0
    %4714 = vmatmul.mubr.f32.gmra.mrb[0].mxu0 %v4647
    %v4715 = vpop.f32.mrb[0].mxu0
    %v4716 = vadd.f32 %v4639, %v4715
    %v4717 = vpop.f32.mrb[0].mxu0
    %v4718 = vadd.f32 %v4643, %v4717
    %4719 = vdwg.mxu0
    %v4720 = vmax.f32 %v4716, 0.0
    %v4721 = vmax.f32 %v4718, 0.0
    %v4722 = vld [vmem:[%s20] sm:$0xff]
    %v4723 = vld [vmem:[%s20 + $0x8] sm:$0xff]
    %v4724 = vld [vmem:[%s20 + $0x10] sm:$0xff]
    %v4725 = vld [vmem:[%s20 + $0x18] sm:$0xff]
    %v4726 = vld [vmem:[%s20 + $0x20] sm:$0xff]
    %v4727 = vld [vmem:[%s20 + $0x28] sm:$0xff]
    %v4728 = vld [vmem:[%s20 + $0x30] sm:$0xff]
    %v4729 = vld [vmem:[%s20 + $0x38] sm:$0xff]
    %v4730 = vld [vmem:[%s20 + $0x40] sm:$0xff]
    %v4731 = vld [vmem:[%s20 + $0x48] sm:$0xff]
    %v4732 = vld [vmem:[%s20 + $0x50] sm:$0xff]
    %v4733 = vld [vmem:[%s20 + $0x58] sm:$0xff]
    %v4734 = vld [vmem:[%s20 + $0x60] sm:$0xff]
    %v4735 = vld [vmem:[%s20 + $0x68] sm:$0xff]
    %v4736 = vld [vmem:[%s20 + $0x70] sm:$0xff]
    %v4737 = vld [vmem:[%s20 + $0x78] sm:$0xff]
    %v4738 = vld [vmem:[%s20 + $0x80] sm:$0xff]
    %v4739 = vld [vmem:[%s20 + $0x88] sm:$0xff]
    %v4740 = vld [vmem:[%s20 + $0x90] sm:$0xff]
    %v4741 = vld [vmem:[%s20 + $0x98] sm:$0xff]
    %v4742 = vld [vmem:[%s20 + $0xa0] sm:$0xff]
    %v4743 = vld [vmem:[%s20 + $0xa8] sm:$0xff]
    %v4744 = vld [vmem:[%s20 + $0xb0] sm:$0xff]
    %v4745 = vld [vmem:[%s20 + $0xb8] sm:$0xff]
    %v4746 = vld [vmem:[%s20 + $0xc0] sm:$0xff]
    %v4747 = vld [vmem:[%s20 + $0xc8] sm:$0xff]
    %v4748 = vld [vmem:[%s20 + $0xd0] sm:$0xff]
    %v4749 = vld [vmem:[%s20 + $0xd8] sm:$0xff]
    %v4750 = vld [vmem:[%s20 + $0xe0] sm:$0xff]
    %v4751 = vld [vmem:[%s20 + $0xe8] sm:$0xff]
    %v4752 = vld [vmem:[%s20 + $0xf0] sm:$0xff]
    %v4753 = vld [vmem:[%s20 + $0xf8] sm:$0xff]
    %v4754 = vld [vmem:[%s21] sm:$0x1]
    %v4756 = vlaneseq
    %v4757 = vshrl.u32 %v4756, 7
    %v4758 = vsub.s32 0, %v4757
    %v4759 = vrot.slane %v4754, %v4758
    %4761 = vmatprep.subr.mxu0 0.0
    %4762 = vmatpush1.msra.mxu0 %v4722
    %4763 = vmatprep.subr.mxu0 0.0
    %4764 = vmatpush1.msra.mxu0 %v4723
    %4765 = vmatprep.subr.mxu0 0.0
    %4766 = vmatpush1.msra.mxu0 %v4724
    %4767 = vmatprep.subr.mxu0 0.0
    %4768 = vmatpush1.msra.mxu0 %v4725
    %4769 = vmatprep.subr.mxu0 0.0
    %4770 = vmatpush1.msra.mxu0 %v4726
    %4771 = vmatprep.subr.mxu0 0.0
    %4772 = vmatpush1.msra.mxu0 %v4727
    %4773 = vmatprep.subr.mxu0 0.0
    %4774 = vmatpush1.msra.mxu0 %v4728
    %4775 = vmatprep.subr.mxu0 0.0
    %4776 = vmatpush1.msra.mxu0 %v4729
    %4777 = vmatprep.subr.mxu0 0.0
    %4778 = vmatpush1.msra.mxu0 %v4730
    %4779 = vmatprep.subr.mxu0 0.0
    %4780 = vmatpush1.msra.mxu0 %v4731
    %4781 = vmatprep.subr.mxu0 0.0
    %4782 = vmatpush1.msra.mxu0 %v4732
    %4783 = vmatprep.subr.mxu0 0.0
    %4784 = vmatpush1.msra.mxu0 %v4733
    %4785 = vmatprep.subr.mxu0 0.0
    %4786 = vmatpush1.msra.mxu0 %v4734
    %4787 = vmatprep.subr.mxu0 0.0
    %4788 = vmatpush1.msra.mxu0 %v4735
    %4789 = vmatprep.subr.mxu0 0.0
    %4790 = vmatpush1.msra.mxu0 %v4736
    %4791 = vmatprep.subr.mxu0 0.0
    %4792 = vmatpush1.msra.mxu0 %v4737
    %4793 = vmatprep.subr.mxu0 0.0
    %4794 = vmatpush1.msra.mxu0 %v4738
    %4795 = vmatprep.subr.mxu0 0.0
    %4796 = vmatpush1.msra.mxu0 %v4739
    %4797 = vmatprep.subr.mxu0 0.0
    %4798 = vmatpush1.msra.mxu0 %v4740
    %4799 = vmatprep.subr.mxu0 0.0
    %4800 = vmatpush1.msra.mxu0 %v4741
    %4801 = vmatprep.subr.mxu0 0.0
    %4802 = vmatpush1.msra.mxu0 %v4742
    %4803 = vmatprep.subr.mxu0 0.0
    %4804 = vmatpush1.msra.mxu0 %v4743
    %4805 = vmatprep.subr.mxu0 0.0
    %4806 = vmatpush1.msra.mxu0 %v4744
    %4807 = vmatprep.subr.mxu0 0.0
    %4808 = vmatpush1.msra.mxu0 %v4745
    %4809 = vmatprep.subr.mxu0 0.0
    %4810 = vmatpush1.msra.mxu0 %v4746
    %4811 = vmatprep.subr.mxu0 0.0
    %4812 = vmatpush1.msra.mxu0 %v4747
    %4813 = vmatprep.subr.mxu0 0.0
    %4814 = vmatpush1.msra.mxu0 %v4748
    %4815 = vmatprep.subr.mxu0 0.0
    %4816 = vmatpush1.msra.mxu0 %v4749
    %4817 = vmatprep.subr.mxu0 0.0
    %4818 = vmatpush1.msra.mxu0 %v4750
    %4819 = vmatprep.subr.mxu0 0.0
    %4820 = vmatpush1.msra.mxu0 %v4751
    %4821 = vmatprep.subr.mxu0 0.0
    %4822 = vmatpush1.msra.mxu0 %v4752
    %4823 = vmatprep.subr.mxu0 0.0
    %4824 = vmatpush1.msra.mxu0 %v4753
    %4825 = vmatprep.mubr.f32.mxu0 %v4721
    %4826 = vmatmul.mubr.f32.gmra.mrb[0].mxu0 %v4720
    %v4827 = vpop.f32.mrb[0].mxu0
    %v4828 = vadd.f32 %v4759, %v4827
    %v4829 = vpop.f32.mrb[0].mxu0
    %4830 = vdwg.mxu0
    %v4831 = vmax.f32 %v4828, 0.0
    %v4832 = vld [vmem:[%s22] sm:$0xff]
    %v4833 = vld [vmem:[%s22 + $0x8] sm:$0xff]
    %v4834 = vld [vmem:[%s22 + $0x10] sm:$0xff]
    %v4835 = vld [vmem:[%s22 + $0x18] sm:$0xff]
    %v4836 = vld [vmem:[%s22 + $0x20] sm:$0xff]
    %v4837 = vld [vmem:[%s22 + $0x28] sm:$0xff]
    %v4838 = vld [vmem:[%s22 + $0x30] sm:$0xff]
    %v4839 = vld [vmem:[%s22 + $0x38] sm:$0xff]
    %v4840 = vld [vmem:[%s22 + $0x40] sm:$0xff]
    %v4841 = vld [vmem:[%s22 + $0x48] sm:$0xff]
    %v4842 = vld [vmem:[%s22 + $0x50] sm:$0xff]
    %v4843 = vld [vmem:[%s22 + $0x58] sm:$0xff]
    %v4844 = vld [vmem:[%s22 + $0x60] sm:$0xff]
    %v4845 = vld [vmem:[%s22 + $0x68] sm:$0xff]
    %v4846 = vld [vmem:[%s22 + $0x70] sm:$0xff]
    %v4847 = vld [vmem:[%s22 + $0x78] sm:$0xff]
    %v4848 = vld [vmem:[#allocation3] sm:$0x1]
    %v4850 = vlaneseq
    %v4851 = vshrl.u32 %v4850, 7
    %v4852 = vsub.s32 0, %v4851
    %v4853 = vrot.slane %v4848, %v4852
    %4855 = vmatprep.subr.mxu0 0.0
    %4856 = vmatpush1.msra.mxu0 %v4832
    %4857 = vmatprep.subr.mxu0 0.0
    %4858 = vmatpush1.msra.mxu0 %v4833
    %4859 = vmatprep.subr.mxu0 0.0
    %4860 = vmatpush1.msra.mxu0 %v4834
    %4861 = vmatprep.subr.mxu0 0.0
    %4862 = vmatpush1.msra.mxu0 %v4835
    %4863 = vmatprep.subr.mxu0 0.0
    %4864 = vmatpush1.msra.mxu0 %v4836
    %4865 = vmatprep.subr.mxu0 0.0
    %4866 = vmatpush1.msra.mxu0 %v4837
    %4867 = vmatprep.subr.mxu0 0.0
    %4868 = vmatpush1.msra.mxu0 %v4838
    %4869 = vmatprep.subr.mxu0 0.0
    %4870 = vmatpush1.msra.mxu0 %v4839
    %4871 = vmatprep.subr.mxu0 0.0
    %4872 = vmatpush1.msra.mxu0 %v4840
    %4873 = vmatprep.subr.mxu0 0.0
    %4874 = vmatpush1.msra.mxu0 %v4841
    %4875 = vmatprep.subr.mxu0 0.0
    %4876 = vmatpush1.msra.mxu0 %v4842
    %4877 = vmatprep.subr.mxu0 0.0
    %4878 = vmatpush1.msra.mxu0 %v4843
    %4879 = vmatprep.subr.mxu0 0.0
    %4880 = vmatpush1.msra.mxu0 %v4844
    %4881 = vmatprep.subr.mxu0 0.0
    %4882 = vmatpush1.msra.mxu0 %v4845
    %4883 = vmatprep.subr.mxu0 0.0
    %4884 = vmatpush1.msra.mxu0 %v4846
    %4885 = vmatprep.subr.mxu0 0.0
    %4886 = vmatpush1.msra.mxu0 %v4847
    %4887 = vmatprep.subr.mxu0 0.0
    %4888 = vmatpush1.msra.mxu0 0.0
    %4889 = vmatprep.subr.mxu0 0.0
    %4890 = vmatpush1.msra.mxu0 0.0
    %4891 = vmatprep.subr.mxu0 0.0
    %4892 = vmatpush1.msra.mxu0 0.0
    %4893 = vmatprep.subr.mxu0 0.0
    %4894 = vmatpush1.msra.mxu0 0.0
    %4895 = vmatprep.subr.mxu0 0.0
    %4896 = vmatpush1.msra.mxu0 0.0
    %4897 = vmatprep.subr.mxu0 0.0
    %4898 = vmatpush1.msra.mxu0 0.0
    %4899 = vmatprep.subr.mxu0 0.0
    %4900 = vmatpush1.msra.mxu0 0.0
    %4901 = vmatprep.subr.mxu0 0.0
    %4902 = vmatpush1.msra.mxu0 0.0
    %4903 = vmatprep.subr.mxu0 0.0
    %4904 = vmatpush1.msra.mxu0 0.0
    %4905 = vmatprep.subr.mxu0 0.0
    %4906 = vmatpush1.msra.mxu0 0.0
    %4907 = vmatprep.subr.mxu0 0.0
    %4908 = vmatpush1.msra.mxu0 0.0
    %4909 = vmatprep.subr.mxu0 0.0
    %4910 = vmatpush1.msra.mxu0 0.0
    %4911 = vmatprep.subr.mxu0 0.0
    %4912 = vmatpush1.msra.mxu0 0.0
    %4913 = vmatprep.subr.mxu0 0.0
    %4914 = vmatpush1.msra.mxu0 0.0
    %4915 = vmatprep.subr.mxu0 0.0
    %4916 = vmatpush1.msra.mxu0 0.0
    %4917 = vmatprep.subr.mxu0 0.0
    %4918 = vmatpush1.msra.mxu0 0.0
    %4919 = vmatprep.mubr.f32.mxu0 0.0
    %4920 = vmatmul.mubr.f32.gmra.mrb[0].mxu0 %v4831
    %v4921 = vpop.f32.mrb[0].mxu0
    %v4922 = vadd.f32 %v4853, %v4921
    %v4923 = vpop.f32.mrb[0].mxu0
    %4924 = vdwg.mxu0
    %v4925 = vxor.u32 %v4922, 2147483648
    %v4926 = vmul.f32 %v4925, 1.442695
    %v4927 = vpow.pop %v4926
    %v4928 = vadd.f32 %v4927, 1.0
    %v4929 = vrcp.pop %v4928
    %v4930 = vmul.f32 1.0, %v4929
    %vm4931 = vcmask 1024
    %4932 = vst.msk [vmem:[%s24] sm:$0x3] %vm4931, %v4930
    // Predicated region
    $region102: #{tpu_custom_call.1} parent=1 // pred_check
      _
    $region103: #{tpu_custom_call.1} parent=1 // pred_check_branch
      %4934 = sbr.rel (0) target = $region105
    $region104: #{tpu_custom_call.1} parent=1 // pred_region
      _
    $region105: #{tpu_custom_call.1} parent=1 // pred_fallthru
      _
    // Predicated region
    $region106: #{tpu_custom_call.1} parent=1 // pred_check
      _
    $region107: #{tpu_custom_call.1} parent=1 // pred_check_branch
      %4936 = sbr.rel (0) target = $region109
    $region108: #{tpu_custom_call.1} parent=1 // pred_region
      _
    $region109: #{tpu_custom_call.1} parent=1 // pred_fallthru
      _
    %4937 = vsyncpa [#allocation5], 1

</llo_original>
